<compile_context>
chip_gen: v5e
topology: v5e:2x2
jax: 0.10.0
libtpu: 0.0.40
codegen_flags: <defaults>
</compile_context>

<pallas_src>
from functools import partial

import jax
import jax.numpy as jnp
from jax import lax
from jax.experimental import pallas as pl
from jax.experimental.pallas import tpu as pltpu

# ---- model dims (matching the module's __init__ where it fixes them) ----
PATCH = 4                 # backbone stand-in patch size
IN_CHANNELS = 4           # input channels of the test image
FEAT_DIM = 128            # backbone.num_features stand-in
PROJ_DIM = 256            # projected_embed_dim (fixed to 256 in module)
RNN_HIDDEN = 256          # rnn_hidden_dim (fixed to 256 in module)
NUM_TYPES = 8
NUM_OBJECT_CLASSES = 16
CTC_VOCAB = 32

BATCH_PAD = 8             # pad batch to one full f32 sublane tile
K_PAD = 128               # pad the patch feature (contraction) dim to 128 lanes
HEAD_PAD = 128            # lane-dense padding for the fused type/object head
VOCAB_PAD = 128           # lane-dense padding for the CTC vocab


# --------------------------- the fused Pallas kernel -------------------------

def multi_head_kernel(x_ref, w_gx_ref, b_gx_ref, w_hh_ref,
                      w_heads_ref, b_heads_ref, w_fc_ref, b_fc_ref,
                      heads_ref, logp_ref,
                      gx_ref, hf_ref, hb_ref, *, seq_len, batch_p):
    # x:       (S, Bp, Kp) f32   time-major padded patches
    # w_gx:    (Kp, 8H)    bf16  folded patch-embed + input_proj + W_ih (fwd|bwd)
    # b_gx:    (1, 8H)     f32
    # w_hh:    (2, H, 4H)  bf16  recurrent weights per direction
    # w_heads: (Kp, 128)   bf16  folded pooled type/object heads
    # b_heads: (1, 128)    f32
    # w_fc:    (2, H, Vp)  bf16  CTC fc split into fwd/bwd halves
    # b_fc:    (1, Vp)     f32   (-1e30 on padded vocab columns)
    # outputs: heads (Bp, 128) f32,  logp (S, Bp, Vp) f32
    # scratch: gx (S*Bp, 8H) f32, hf/hb (S*Bp, H) f32
    S = seq_len
    Bp = batch_p
    H = w_hh_ref.shape[1]
    G = w_hh_ref.shape[2]          # 4H

    x3 = x_ref[...]                                   # (S, Bp, Kp) f32
    x2 = x3.reshape(S * Bp, x3.shape[-1])             # (M, Kp)

    # ---- pooled features + both classification heads (patch-embed folded in)
    pooled = jnp.mean(x3, axis=0)                     # (Bp, Kp) f32
    heads_ref[...] = (jnp.dot(pooled.astype(jnp.bfloat16), w_heads_ref[...],
                              preferred_element_type=jnp.float32)
                      + b_heads_ref[...])

    # ---- hoisted input-to-hidden gates for BOTH directions: one MXU call
    gx_ref[...] = (jnp.dot(x2.astype(jnp.bfloat16), w_gx_ref[...],
                           preferred_element_type=jnp.float32)
                   + b_gx_ref[...])

    def lstm_cell(gates, c):
        # gate order (i, f, o | g): one sigmoid over a contiguous 3H slice,
        # one tanh over the last H (fewer EUP issues per serial step).
        sfo = jax.nn.sigmoid(gates[:, :3 * H])
        g = jnp.tanh(gates[:, 3 * H:])
        i = sfo[:, :H]
        f = sfo[:, H:2 * H]
        o = sfo[:, 2 * H:]
        c_new = f * c + i * g
        h_new = o * jnp.tanh(c_new)
        return h_new, c_new

    def step(t, carry):
        h_f, c_f, h_b, c_b = carry
        rf = pl.multiple_of(t * Bp, Bp)               # forward  row offset (aligned)
        rb = pl.multiple_of((S - 1 - t) * Bp, Bp)     # backward row offset (aligned)
        gx_f = gx_ref[pl.ds(rf, Bp), pl.ds(0, G)]     # (Bp, 4H)
        gx_b = gx_ref[pl.ds(rb, Bp), pl.ds(G, G)]     # (Bp, 4H)
        gates_f = gx_f + jnp.dot(h_f.astype(jnp.bfloat16), w_hh_ref[0],
                                 preferred_element_type=jnp.float32)
        gates_b = gx_b + jnp.dot(h_b.astype(jnp.bfloat16), w_hh_ref[1],
                                 preferred_element_type=jnp.float32)
        h_f, c_f = lstm_cell(gates_f, c_f)
        h_b, c_b = lstm_cell(gates_b, c_b)
        # backward states are written back at their original time row, so the
        # hidden sequence comes out already in forward time order.
        hf_ref[pl.ds(rf, Bp), :] = h_f
        hb_ref[pl.ds(rb, Bp), :] = h_b
        return h_f, c_f, h_b, c_b

    z = jnp.zeros((Bp, H), jnp.float32)
    lax.fori_loop(0, S, step, (z, z, z, z))

    # ---- CTC fc + log_softmax epilogue over all (S*Bp) rows
    logits = (jnp.dot(hf_ref[...].astype(jnp.bfloat16), w_fc_ref[0],
                      preferred_element_type=jnp.float32)
              + jnp.dot(hb_ref[...].astype(jnp.bfloat16), w_fc_ref[1],
                        preferred_element_type=jnp.float32)
              + b_fc_ref[...])                        # (M, Vp) f32
    m = jnp.max(logits, axis=-1, keepdims=True)
    zc = logits - m
    lse = jnp.log(jnp.sum(jnp.exp(zc), axis=-1, keepdims=True))
    logp_ref[...] = (zc - lse).reshape(S, Bp, -1)


def pallas_multi_head(patches, pp, *, seq_len, batch_p):
    S, Bp, KP = patches.shape
    H = RNN_HIDDEN
    G = 4 * H
    M = S * Bp
    kernel = partial(multi_head_kernel, seq_len=S, batch_p=Bp)
    heads_out, logp = pl.pallas_call(
        kernel,
        grid=(1,),
        in_specs=[pl.BlockSpec((S, Bp, KP), lambda i: (0, 0, 0)),
                  pl.BlockSpec((KP, 2 * G), lambda i: (0, 0)),
                  pl.BlockSpec((1, 2 * G), lambda i: (0, 0)),
                  pl.BlockSpec((2, H, G), lambda i: (0, 0, 0)),
                  pl.BlockSpec((KP, HEAD_PAD), lambda i: (0, 0)),
                  pl.BlockSpec((1, HEAD_PAD), lambda i: (0, 0)),
                  pl.BlockSpec((2, H, VOCAB_PAD), lambda i: (0, 0, 0)),
                  pl.BlockSpec((1, VOCAB_PAD), lambda i: (0, 0))],
        out_specs=[pl.BlockSpec((Bp, HEAD_PAD), lambda i: (0, 0)),
                   pl.BlockSpec((S, Bp, VOCAB_PAD), lambda i: (0, 0, 0))],
        out_shape=[jax.ShapeDtypeStruct((Bp, HEAD_PAD), jnp.float32),
                   jax.ShapeDtypeStruct((S, Bp, VOCAB_PAD), jnp.float32)],
        scratch_shapes=[pltpu.VMEM((M, 2 * G), jnp.float32),
                        pltpu.VMEM((M, H), jnp.float32),
                        pltpu.VMEM((M, H), jnp.float32)],
        compiler_params=pltpu.CompilerParams(
            dimension_semantics=("arbitrary",)),
    )(patches, pp["w_gx"], pp["b_gx"], pp["w_hh"],
      pp["w_heads"], pp["b_heads"], pp["w_fc"], pp["b_fc"])
    return heads_out, logp


# --------------------------- parameters --------------------------------------

def init_params(key):
    """Base parameters in PyTorch-equivalent layout (f32, gate order i,f,g,o)."""
    ks = jax.random.split(key, 16)

    def w(k, shape, scale=0.05):
        return scale * jax.random.normal(k, shape, jnp.float32)

    in_patch = PATCH * PATCH * IN_CHANNELS
    return {
        # backbone stand-in (linear patch embed)
        "w_patch": w(ks[0], (in_patch, FEAT_DIM)),
        "b_patch": w(ks[1], (1, FEAT_DIM)),
        # type / object heads
        "w_type": w(ks[2], (FEAT_DIM, NUM_TYPES)),
        "b_type": w(ks[3], (1, NUM_TYPES)),
        "w_obj": w(ks[4], (FEAT_DIM, NUM_OBJECT_CLASSES)),
        "b_obj": w(ks[5], (1, NUM_OBJECT_CLASSES)),
        # input_proj: 1x1 conv == per-pixel linear
        "w_proj": w(ks[6], (FEAT_DIM, PROJ_DIM)),
        "b_proj": w(ks[7], (1, PROJ_DIM)),
        # bidirectional LSTM (fwd/bwd), gate order i,f,g,o; b = b_ih + b_hh
        "w_ih_f": w(ks[8], (PROJ_DIM, 4 * RNN_HIDDEN)),
        "w_hh_f": w(ks[9], (RNN_HIDDEN, 4 * RNN_HIDDEN)),
        "b_f": w(ks[10], (1, 4 * RNN_HIDDEN)),
        "w_ih_b": w(ks[11], (PROJ_DIM, 4 * RNN_HIDDEN)),
        "w_hh_b": w(ks[12], (RNN_HIDDEN, 4 * RNN_HIDDEN)),
        "b_b": w(ks[13], (1, 4 * RNN_HIDDEN)),
        # CTC fc head
        "w_fc": w(ks[14], (2 * RNN_HIDDEN, CTC_VOCAB)),
        "b_fc": w(ks[15], (1, CTC_VOCAB)),
    }


def _reorder_ifog(a):
    # PyTorch gate order (i, f, g, o) along 4H -> kernel order (i, f, o, g)
    i, f, g, o = jnp.split(a, 4, axis=-1)
    return jnp.concatenate([i, f, o, g], axis=-1)


def prepare_params(p):
    """One-time precompute (all folds in f32, single bf16 cast at the end):
      * fold the linear patch-embed stand-in + input_proj into the LSTM input
        weights; concat both directions along lanes -> (Kp, 8H).
      * fold the patch-embed into the pooled type/object heads (mean commutes
        with a linear map); pack both heads into 128 lanes.
      * reorder gates to (i, f, o, g); pad K to 128 lanes and vocab to 128
        lanes (-1e30 pad bias so padded log-probs vanish in the softmax)."""
    H = RNN_HIDDEN
    K = PATCH * PATCH * IN_CHANNELS

    # ---- fused type/object heads in backbone-feature space, packed to 128 lanes
    w_heads_feat = jnp.zeros((FEAT_DIM, HEAD_PAD), jnp.float32)
    w_heads_feat = w_heads_feat.at[:, :NUM_TYPES].set(p["w_type"])
    w_heads_feat = w_heads_feat.at[:, NUM_TYPES:NUM_TYPES + NUM_OBJECT_CLASSES].set(p["w_obj"])
    b_heads_feat = jnp.zeros((1, HEAD_PAD), jnp.float32)
    b_heads_feat = b_heads_feat.at[:, :NUM_TYPES].set(p["b_type"])
    b_heads_feat = b_heads_feat.at[:, NUM_TYPES:NUM_TYPES + NUM_OBJECT_CLASSES].set(p["b_obj"])
    # fold patch embed: pooled_feats = mean(patches) @ W_patch + b_patch
    w_heads = p["w_patch"] @ w_heads_feat                       # (K, 128)
    b_heads = p["b_patch"] @ w_heads_feat + b_heads_feat        # (1, 128)

    # ---- LSTM: fold patch-embed + input_proj into W_ih, reorder gates
    def fold_dir(w_ih, w_hh, bias):
        w1 = p["w_proj"] @ w_ih                                 # (F, 4H)
        b1 = p["b_proj"] @ w_ih + bias                          # (1, 4H)
        w0 = p["w_patch"] @ w1                                  # (K, 4H)
        b0 = p["b_patch"] @ w1 + b1                             # (1, 4H)
        return _reorder_ifog(w0), _reorder_ifog(w_hh), _reorder_ifog(b0)

    wf_gx, wf_hh, bf_ = fold_dir(p["w_ih_f"], p["w_hh_f"], p["b_f"])
    wb_gx, wb_hh, bb_ = fold_dir(p["w_ih_b"], p["w_hh_b"], p["b_b"])
    w_gx = jnp.concatenate([wf_gx, wb_gx], axis=1)              # (K, 8H)
    b_gx = jnp.concatenate([bf_, bb_], axis=1)                  # (1, 8H)
    w_hh = jnp.stack([wf_hh, wb_hh])                            # (2, H, 4H)

    # ---- pad the contraction dim K (= P*P*C = 64) to 128 lanes
    w_gx_p = jnp.zeros((K_PAD, w_gx.shape[1]), jnp.float32).at[:K].set(w_gx)
    w_heads_p = jnp.zeros((K_PAD, HEAD_PAD), jnp.float32).at[:K].set(w_heads)

    # ---- CTC fc: split into fwd/bwd halves, pad vocab to 128 lanes
    w_fc_pad = jnp.zeros((2, H, VOCAB_PAD), jnp.float32)
    w_fc_pad = w_fc_pad.at[0, :, :CTC_VOCAB].set(p["w_fc"][:H])
    w_fc_pad = w_fc_pad.at[1, :, :CTC_VOCAB].set(p["w_fc"][H:])
    b_fc_pad = jnp.full((1, VOCAB_PAD), -1e30, jnp.float32)
    b_fc_pad = b_fc_pad.at[0, :CTC_VOCAB].set(p["b_fc"][0])

    return {
        "w_gx": w_gx_p.astype(jnp.bfloat16), "b_gx": b_gx,
        "w_hh": w_hh.astype(jnp.bfloat16),
        "w_heads": w_heads_p.astype(jnp.bfloat16), "b_heads": b_heads,
        "w_fc": w_fc_pad.astype(jnp.bfloat16), "b_fc": b_fc_pad,
    }


# --------------------------- forward ------------------------------------------

def multi_head_forward(x, pp):
    B, C, Him, Wim = x.shape
    P = PATCH
    Hf, Wf = Him // P, Wim // P
    S = Hf * Wf                     # sequence length = number of spatial positions
    K = P * P * C
    Bp = BATCH_PAD
    assert B <= Bp and K <= K_PAD

    # NCHW -> time-major non-overlapping patches (S, B, K); the time index
    # s = hf*Wf + wf matches PyTorch's view(bs, c, h*w).permute(0, 2, 1) order.
    x_nhwc = jnp.transpose(x, (0, 2, 3, 1))                       # (B, H, W, C)
    patches = (x_nhwc.reshape(B, Hf, P, Wf, P, C)
               .transpose(1, 3, 0, 2, 4, 5)                       # (Hf, Wf, B, P, P, C)
               .reshape(S, B, K))
    # pad batch to a full 8-row sublane tile and K to 128 lanes
    patches = jnp.pad(patches, ((0, 0), (0, Bp - B), (0, K_PAD - K)))

    heads_out, logp = pallas_multi_head(patches, pp, seq_len=S, batch_p=Bp)

    type_logits = heads_out[:B, :NUM_TYPES]
    object_logits = heads_out[:B, NUM_TYPES:NUM_TYPES + NUM_OBJECT_CLASSES]
    # already time-major == PyTorch .permute(1, 0, 2)
    text_log_probs = logp[:, :B, :CTC_VOCAB]                      # (S, B, V)
    return type_logits, object_logits, text_log_probs


if __name__ == "__main__":
    key = jax.random.PRNGKey(0)
    k_param, k_x = jax.random.split(key)
    base_params = init_params(k_param)
    prepared = prepare_params(base_params)            # one-time weight precompute
    x = jax.random.normal(k_x, (2, 4, 16, 16), jnp.float32)  # NCHW input

    fwd = jax.jit(multi_head_forward)
    type_logits, object_logits, text_log_probs = fwd(x, prepared)
    jax.block_until_ready((type_logits, object_logits, text_log_probs))

    assert type_logits.shape == (2, NUM_TYPES)
    assert object_logits.shape == (2, NUM_OBJECT_CLASSES)
    assert text_log_probs.shape == (16, 2, CTC_VOCAB)             # (S, B, vocab)
    assert bool(jnp.all(jnp.isfinite(type_logits)))
    assert bool(jnp.all(jnp.isfinite(object_logits)))
    assert bool(jnp.all(jnp.isfinite(text_log_probs)))
    # log_softmax self-consistency: per-row probabilities sum to 1
    psum = jnp.exp(text_log_probs).sum(-1)
    assert bool(jnp.all(jnp.abs(psum - 1.0) < 1e-3))
    print("KERNEL_OK")
</pallas_src>

<mosaic_0001>
module attributes {stable_mosaic.version = 11 : i64} {
  func.func @multi_head_kernel(%arg0: i32, %arg1: memref<16x8x128xf32, #tpu.memory_space<vmem>>, %arg2: memref<128x2048xbf16, #tpu.memory_space<vmem>>, %arg3: memref<1x2048xf32, #tpu.memory_space<vmem>>, %arg4: memref<2x256x1024xbf16, #tpu.memory_space<vmem>>, %arg5: memref<128x128xbf16, #tpu.memory_space<vmem>>, %arg6: memref<1x128xf32, #tpu.memory_space<vmem>>, %arg7: memref<2x256x128xbf16, #tpu.memory_space<vmem>>, %arg8: memref<1x128xf32, #tpu.memory_space<vmem>>, %arg9: memref<8x128xf32, #tpu.memory_space<vmem>>, %arg10: memref<16x8x128xf32, #tpu.memory_space<vmem>>, %arg11: memref<128x2048xf32, #tpu.memory_space<vmem>>, %arg12: memref<128x256xf32, #tpu.memory_space<vmem>>, %arg13: memref<128x256xf32, #tpu.memory_space<vmem>>) attributes {dimension_semantics = [#tpu.dimension_semantics<arbitrary>], iteration_bounds = array<i64: 1>, scalar_prefetch = 0 : i64, scratch_operands = 3 : i64, tpu.core_type = #tpu.core_type<tc>, window_params = [{pipeline_mode = #tpu.pipeline_mode<synchronous>, transform_indices = @transform_0, window_bounds = array<i64: 16, 8, 128>}, {pipeline_mode = #tpu.pipeline_mode<synchronous>, transform_indices = @transform_1, window_bounds = array<i64: 128, 2048>}, {pipeline_mode = #tpu.pipeline_mode<synchronous>, transform_indices = @transform_2, window_bounds = array<i64: 1, 2048>}, {pipeline_mode = #tpu.pipeline_mode<synchronous>, transform_indices = @transform_3, window_bounds = array<i64: 2, 256, 1024>}, {pipeline_mode = #tpu.pipeline_mode<synchronous>, transform_indices = @transform_4, window_bounds = array<i64: 128, 128>}, {pipeline_mode = #tpu.pipeline_mode<synchronous>, transform_indices = @transform_5, window_bounds = array<i64: 1, 128>}, {pipeline_mode = #tpu.pipeline_mode<synchronous>, transform_indices = @transform_6, window_bounds = array<i64: 2, 256, 128>}, {pipeline_mode = #tpu.pipeline_mode<synchronous>, transform_indices = @transform_7, window_bounds = array<i64: 1, 128>}, {pipeline_mode = #tpu.pipeline_mode<synchronous>, transform_indices = @transform_8, window_bounds = array<i64: 8, 128>}, {pipeline_mode = #tpu.pipeline_mode<synchronous>, transform_indices = @transform_9, window_bounds = array<i64: 16, 8, 128>}]} {
    %c0 = arith.constant 0 : index
    %c0_0 = arith.constant 0 : index
    %c0_1 = arith.constant 0 : index
    %0 = vector.load %arg1[%c0, %c0_0, %c0_1] : memref<16x8x128xf32, #tpu.memory_space<vmem>>, vector<16x8x128xf32>
    %1 = vector.shape_cast %0 : vector<16x8x128xf32> to vector<128x128xf32>
    %cst = arith.constant dense<0.000000e+00> : vector<8x128xf32>
    %2 = vector.multi_reduction <add>, %0, %cst [0] : vector<16x8x128xf32> to vector<8x128xf32>
    %cst_2 = arith.constant 1.600000e+01 : f32
    %3 = vector.broadcast %cst_2 : f32 to vector<8x128xf32>
    %4 = arith.divf %2, %3 : vector<8x128xf32>
    %5 = arith.truncf %4 : vector<8x128xf32> to vector<8x128xbf16>
    %c0_3 = arith.constant 0 : index
    %c0_4 = arith.constant 0 : index
    %6 = vector.load %arg5[%c0_3, %c0_4] : memref<128x128xbf16, #tpu.memory_space<vmem>>, vector<128x128xbf16>
    %cst_5 = arith.constant dense<0.000000e+00> : vector<8x128xf32>
    %7 = tpu.matmul %5, %6, %cst_5 {dimension_numbers = #tpu.dot_dimension_numbers<[1], [0], [0], [1], [0, 0, 1, 1], [], []>} : vector<8x128xbf16>, vector<128x128xbf16>, vector<8x128xf32> -> vector<8x128xf32>
    %c0_6 = arith.constant 0 : index
    %c0_7 = arith.constant 0 : index
    %8 = vector.load %arg6[%c0_6, %c0_7] : memref<1x128xf32, #tpu.memory_space<vmem>>, vector<1x128xf32>
    %9 = vector.broadcast %8 : vector<1x128xf32> to vector<8x128xf32>
    %10 = arith.addf %7, %9 : vector<8x128xf32>
    %c0_8 = arith.constant 0 : index
    %c0_9 = arith.constant 0 : index
    %11 = vector.load %arg9[%c0_8, %c0_9] : memref<8x128xf32, #tpu.memory_space<vmem>>, vector<8x128xf32>
    tpu.vector_store %arg9[%c0_8, %c0_9], %10 {strides = array<i32>} : memref<8x128xf32, #tpu.memory_space<vmem>>, vector<8x128xf32>,
    %12 = arith.truncf %1 : vector<128x128xf32> to vector<128x128xbf16>
    %c0_10 = arith.constant 0 : index
    %c0_11 = arith.constant 0 : index
    %13 = vector.load %arg2[%c0_10, %c0_11] : memref<128x2048xbf16, #tpu.memory_space<vmem>>, vector<128x2048xbf16>
    %cst_12 = arith.constant dense<0.000000e+00> : vector<128x2048xf32>
    %14 = tpu.matmul %12, %13, %cst_12 {dimension_numbers = #tpu.dot_dimension_numbers<[1], [0], [0], [1], [0, 0, 1, 1], [], []>} : vector<128x128xbf16>, vector<128x2048xbf16>, vector<128x2048xf32> -> vector<128x2048xf32>
    %c0_13 = arith.constant 0 : index
    %c0_14 = arith.constant 0 : index
    %15 = vector.load %arg3[%c0_13, %c0_14] : memref<1x2048xf32, #tpu.memory_space<vmem>>, vector<1x2048xf32>
    %16 = vector.broadcast %15 : vector<1x2048xf32> to vector<128x2048xf32>
    %17 = arith.addf %14, %16 : vector<128x2048xf32>
    %c0_15 = arith.constant 0 : index
    %c0_16 = arith.constant 0 : index
    %18 = vector.load %arg11[%c0_15, %c0_16] : memref<128x2048xf32, #tpu.memory_space<vmem>>, vector<128x2048xf32>
    tpu.vector_store %arg11[%c0_15, %c0_16], %17 {strides = array<i32>} : memref<128x2048xf32, #tpu.memory_space<vmem>>, vector<128x2048xf32>,
    %cst_17 = arith.constant 0.000000e+00 : f32
    %19 = vector.broadcast %cst_17 : f32 to vector<8x256xf32>
    %c0_i32 = arith.constant 0 : i32
    %c16_i32 = arith.constant 16 : i32
    %20 = arith.addi %c0_i32, %c16_i32 : i32
    %c1_i32 = arith.constant 1 : i32
    %21:4 = scf.for %arg14 = %c0_i32 to %20 step %c1_i32 iter_args(%arg15 = %19, %arg16 = %19, %arg17 = %19, %arg18 = %19) -> (vector<8x256xf32>, vector<8x256xf32>, vector<8x256xf32>, vector<8x256xf32>)  : i32 {
      %c8_i32 = arith.constant 8 : i32
      %48 = arith.muli %arg14, %c8_i32 : i32
      %49 = tpu.assume_multiple %48, 8 : i32
      %c15_i32 = arith.constant 15 : i32
      %50 = arith.subi %c15_i32, %arg14 : i32
      %c8_i32_37 = arith.constant 8 : i32
      %51 = arith.muli %50, %c8_i32_37 : i32
      %52 = tpu.assume_multiple %51, 8 : i32
      %53 = arith.index_cast %49 : i32 to index
      %c0_38 = arith.constant 0 : index
      %54 = vector.load %arg11[%53, %c0_38] : memref<128x2048xf32, #tpu.memory_space<vmem>>, vector<8x1024xf32>
      %55 = arith.index_cast %52 : i32 to index
      %c1024 = arith.constant 1024 : index
      %56 = vector.load %arg11[%55, %c1024] : memref<128x2048xf32, #tpu.memory_space<vmem>>, vector<8x1024xf32>
      %57 = arith.truncf %arg15 : vector<8x256xf32> to vector<8x256xbf16>
      %c0_39 = arith.constant 0 : index
      %c0_40 = arith.constant 0 : index
      %c0_41 = arith.constant 0 : index
      %58 = vector.load %arg4[%c0_39, %c0_40, %c0_41] : memref<2x256x1024xbf16, #tpu.memory_space<vmem>>, vector<1x256x1024xbf16>
      %59 = vector.shape_cast %58 : vector<1x256x1024xbf16> to vector<256x1024xbf16>
      %cst_42 = arith.constant dense<0.000000e+00> : vector<8x1024xf32>
      %60 = tpu.matmul %57, %59, %cst_42 {dimension_numbers = #tpu.dot_dimension_numbers<[1], [0], [0], [1], [0, 0, 1, 1], [], []>} : vector<8x256xbf16>, vector<256x1024xbf16>, vector<8x1024xf32> -> vector<8x1024xf32>
      %61 = arith.addf %54, %60 : vector<8x1024xf32>
      %62 = arith.truncf %arg17 : vector<8x256xf32> to vector<8x256xbf16>
      %c1_43 = arith.constant 1 : index
      %c0_44 = arith.constant 0 : index
      %c0_45 = arith.constant 0 : index
      %63 = vector.load %arg4[%c1_43, %c0_44, %c0_45] : memref<2x256x1024xbf16, #tpu.memory_space<vmem>>, vector<1x256x1024xbf16>
      %64 = vector.shape_cast %63 : vector<1x256x1024xbf16> to vector<256x1024xbf16>
      %cst_46 = arith.constant dense<0.000000e+00> : vector<8x1024xf32>
      %65 = tpu.matmul %62, %64, %cst_46 {dimension_numbers = #tpu.dot_dimension_numbers<[1], [0], [0], [1], [0, 0, 1, 1], [], []>} : vector<8x256xbf16>, vector<256x1024xbf16>, vector<8x1024xf32> -> vector<8x1024xf32>
      %66 = arith.addf %56, %65 : vector<8x1024xf32>
      %67 = vector.extract_strided_slice %61 {offsets = [0, 0], sizes = [8, 768], strides = [1, 1]} : vector<8x1024xf32> to vector<8x768xf32>
      %68 = arith.negf %67 : vector<8x768xf32>
      %69 = math.exp %68 : vector<8x768xf32>
      %cst_47 = arith.constant 1.000000e+00 : f32
      %70 = vector.broadcast %cst_47 : f32 to vector<8x768xf32>
      %71 = arith.addf %70, %69 : vector<8x768xf32>
      %72 = arith.divf %70, %71 : vector<8x768xf32>
      %73 = vector.extract_strided_slice %61 {offsets = [0, 768], sizes = [8, 256], strides = [1, 1]} : vector<8x1024xf32> to vector<8x256xf32>
      %74 = math.tanh %73 : vector<8x256xf32>
      %75 = vector.extract_strided_slice %72 {offsets = [0, 0], sizes = [8, 256], strides = [1, 1]} : vector<8x768xf32> to vector<8x256xf32>
      %76 = vector.extract_strided_slice %72 {offsets = [0, 256], sizes = [8, 256], strides = [1, 1]} : vector<8x768xf32> to vector<8x256xf32>
      %77 = vector.extract_strided_slice %72 {offsets = [0, 512], sizes = [8, 256], strides = [1, 1]} : vector<8x768xf32> to vector<8x256xf32>
      %78 = arith.mulf %76, %arg16 : vector<8x256xf32>
      %79 = arith.mulf %75, %74 : vector<8x256xf32>
      %80 = arith.addf %78, %79 : vector<8x256xf32>
      %81 = math.tanh %80 : vector<8x256xf32>
      %82 = arith.mulf %77, %81 : vector<8x256xf32>
      %83 = vector.extract_strided_slice %66 {offsets = [0, 0], sizes = [8, 768], strides = [1, 1]} : vector<8x1024xf32> to vector<8x768xf32>
      %84 = arith.negf %83 : vector<8x768xf32>
      %85 = math.exp %84 : vector<8x768xf32>
      %cst_48 = arith.constant 1.000000e+00 : f32
      %86 = vector.broadcast %cst_48 : f32 to vector<8x768xf32>
      %87 = arith.addf %86, %85 : vector<8x768xf32>
      %88 = arith.divf %86, %87 : vector<8x768xf32>
      %89 = vector.extract_strided_slice %66 {offsets = [0, 768], sizes = [8, 256], strides = [1, 1]} : vector<8x1024xf32> to vector<8x256xf32>
      %90 = math.tanh %89 : vector<8x256xf32>
      %91 = vector.extract_strided_slice %88 {offsets = [0, 0], sizes = [8, 256], strides = [1, 1]} : vector<8x768xf32> to vector<8x256xf32>
      %92 = vector.extract_strided_slice %88 {offsets = [0, 256], sizes = [8, 256], strides = [1, 1]} : vector<8x768xf32> to vector<8x256xf32>
      %93 = vector.extract_strided_slice %88 {offsets = [0, 512], sizes = [8, 256], strides = [1, 1]} : vector<8x768xf32> to vector<8x256xf32>
      %94 = arith.mulf %92, %arg18 : vector<8x256xf32>
      %95 = arith.mulf %91, %90 : vector<8x256xf32>
      %96 = arith.addf %94, %95 : vector<8x256xf32>
      %97 = math.tanh %96 : vector<8x256xf32>
      %98 = arith.mulf %93, %97 : vector<8x256xf32>
      %99 = arith.index_cast %49 : i32 to index
      %c0_49 = arith.constant 0 : index
      %100 = vector.load %arg12[%99, %c0_49] : memref<128x256xf32, #tpu.memory_space<vmem>>, vector<8x256xf32>
      tpu.vector_store %arg12[%99, %c0_49], %82 {strides = array<i32>} : memref<128x256xf32, #tpu.memory_space<vmem>>, vector<8x256xf32>,
      %101 = arith.index_cast %52 : i32 to index
      %c0_50 = arith.constant 0 : index
      %102 = vector.load %arg13[%101, %c0_50] : memref<128x256xf32, #tpu.memory_space<vmem>>, vector<8x256xf32>
      tpu.vector_store %arg13[%101, %c0_50], %98 {strides = array<i32>} : memref<128x256xf32, #tpu.memory_space<vmem>>, vector<8x256xf32>,
      scf.yield %82, %80, %98, %96 : vector<8x256xf32>, vector<8x256xf32>, vector<8x256xf32>, vector<8x256xf32>
    }
    %c16_i32_18 = arith.constant 16 : i32
    %c0_19 = arith.constant 0 : index
    %c0_20 = arith.constant 0 : index
    %22 = vector.load %arg12[%c0_19, %c0_20] : memref<128x256xf32, #tpu.memory_space<vmem>>, vector<128x256xf32>
    %23 = arith.truncf %22 : vector<128x256xf32> to vector<128x256xbf16>
    %c0_21 = arith.constant 0 : index
    %c0_22 = arith.constant 0 : index
    %c0_23 = arith.constant 0 : index
    %24 = vector.load %arg7[%c0_21, %c0_22, %c0_23] : memref<2x256x128xbf16, #tpu.memory_space<vmem>>, vector<1x256x128xbf16>
    %25 = vector.shape_cast %24 : vector<1x256x128xbf16> to vector<256x128xbf16>
    %cst_24 = arith.constant dense<0.000000e+00> : vector<128x128xf32>
    %26 = tpu.matmul %23, %25, %cst_24 {dimension_numbers = #tpu.dot_dimension_numbers<[1], [0], [0], [1], [0, 0, 1, 1], [], []>} : vector<128x256xbf16>, vector<256x128xbf16>, vector<128x128xf32> -> vector<128x128xf32>
    %c0_25 = arith.constant 0 : index
    %c0_26 = arith.constant 0 : index
    %27 = vector.load %arg13[%c0_25, %c0_26] : memref<128x256xf32, #tpu.memory_space<vmem>>, vector<128x256xf32>
    %28 = arith.truncf %27 : vector<128x256xf32> to vector<128x256xbf16>
    %c1 = arith.constant 1 : index
    %c0_27 = arith.constant 0 : index
    %c0_28 = arith.constant 0 : index
    %29 = vector.load %arg7[%c1, %c0_27, %c0_28] : memref<2x256x128xbf16, #tpu.memory_space<vmem>>, vector<1x256x128xbf16>
    %30 = vector.shape_cast %29 : vector<1x256x128xbf16> to vector<256x128xbf16>
    %cst_29 = arith.constant dense<0.000000e+00> : vector<128x128xf32>
    %31 = tpu.matmul %28, %30, %cst_29 {dimension_numbers = #tpu.dot_dimension_numbers<[1], [0], [0], [1], [0, 0, 1, 1], [], []>} : vector<128x256xbf16>, vector<256x128xbf16>, vector<128x128xf32> -> vector<128x128xf32>
    %32 = arith.addf %26, %31 : vector<128x128xf32>
    %c0_30 = arith.constant 0 : index
    %c0_31 = arith.constant 0 : index
    %33 = vector.load %arg8[%c0_30, %c0_31] : memref<1x128xf32, #tpu.memory_space<vmem>>, vector<1x128xf32>
    %34 = vector.broadcast %33 : vector<1x128xf32> to vector<128x128xf32>
    %35 = arith.addf %32, %34 : vector<128x128xf32>
    %cst_32 = arith.constant dense<0xFF800000> : vector<128xf32>
    %36 = vector.multi_reduction <maximumf>, %35, %cst_32 [1] : vector<128x128xf32> to vector<128xf32>
    %37 = vector.shape_cast %36 : vector<128xf32> to vector<128x1xf32>
    %38 = vector.broadcast %37 : vector<128x1xf32> to vector<128x128xf32>
    %39 = arith.subf %35, %38 : vector<128x128xf32>
    %40 = math.exp %39 : vector<128x128xf32>
    %cst_33 = arith.constant dense<0.000000e+00> : vector<128xf32>
    %41 = vector.multi_reduction <add>, %40, %cst_33 [1] : vector<128x128xf32> to vector<128xf32>
    %42 = vector.shape_cast %41 : vector<128xf32> to vector<128x1xf32>
    %43 = math.log %42 : vector<128x1xf32>
    %44 = vector.broadcast %43 : vector<128x1xf32> to vector<128x128xf32>
    %45 = arith.subf %39, %44 : vector<128x128xf32>
    %46 = vector.shape_cast %45 : vector<128x128xf32> to vector<16x8x128xf32>
    %c0_34 = arith.constant 0 : index
    %c0_35 = arith.constant 0 : index
    %c0_36 = arith.constant 0 : index
    %47 = vector.load %arg10[%c0_34, %c0_35, %c0_36] : memref<16x8x128xf32, #tpu.memory_space<vmem>>, vector<16x8x128xf32>
    tpu.vector_store %arg10[%c0_34, %c0_35, %c0_36], %46 {strides = array<i32>} : memref<16x8x128xf32, #tpu.memory_space<vmem>>, vector<16x8x128xf32>,
    return
  }
  func.func @transform_0(%arg0: i32) -> (i32, i32, i32) {
    %c0_i32 = arith.constant 0 : i32
    %c0_i32_0 = arith.constant 0 : i32
    %c0_i32_1 = arith.constant 0 : i32
    %c0_i32_2 = arith.constant 0 : i32
    return %c0_i32, %c0_i32_0, %c0_i32_1 : i32, i32, i32
  }
  func.func @transform_1(%arg0: i32) -> (i32, i32) {
    %c0_i32 = arith.constant 0 : i32
    %c0_i32_0 = arith.constant 0 : i32
    %c0_i32_1 = arith.constant 0 : i32
    return %c0_i32, %c0_i32_0 : i32, i32
  }
  func.func @transform_2(%arg0: i32) -> (i32, i32) {
    %c0_i32 = arith.constant 0 : i32
    %c0_i32_0 = arith.constant 0 : i32
    %c0_i32_1 = arith.constant 0 : i32
    return %c0_i32, %c0_i32_0 : i32, i32
  }
  func.func @transform_3(%arg0: i32) -> (i32, i32, i32) {
    %c0_i32 = arith.constant 0 : i32
    %c0_i32_0 = arith.constant 0 : i32
    %c0_i32_1 = arith.constant 0 : i32
    %c0_i32_2 = arith.constant 0 : i32
    return %c0_i32, %c0_i32_0, %c0_i32_1 : i32, i32, i32
  }
  func.func @transform_4(%arg0: i32) -> (i32, i32) {
    %c0_i32 = arith.constant 0 : i32
    %c0_i32_0 = arith.constant 0 : i32
    %c0_i32_1 = arith.constant 0 : i32
    return %c0_i32, %c0_i32_0 : i32, i32
  }
  func.func @transform_5(%arg0: i32) -> (i32, i32) {
    %c0_i32 = arith.constant 0 : i32
    %c0_i32_0 = arith.constant 0 : i32
    %c0_i32_1 = arith.constant 0 : i32
    return %c0_i32, %c0_i32_0 : i32, i32
  }
  func.func @transform_6(%arg0: i32) -> (i32, i32, i32) {
    %c0_i32 = arith.constant 0 : i32
    %c0_i32_0 = arith.constant 0 : i32
    %c0_i32_1 = arith.constant 0 : i32
    %c0_i32_2 = arith.constant 0 : i32
    return %c0_i32, %c0_i32_0, %c0_i32_1 : i32, i32, i32
  }
  func.func @transform_7(%arg0: i32) -> (i32, i32) {
    %c0_i32 = arith.constant 0 : i32
    %c0_i32_0 = arith.constant 0 : i32
    %c0_i32_1 = arith.constant 0 : i32
    return %c0_i32, %c0_i32_0 : i32, i32
  }
  func.func @transform_8(%arg0: i32) -> (i32, i32) {
    %c0_i32 = arith.constant 0 : i32
    %c0_i32_0 = arith.constant 0 : i32
    %c0_i32_1 = arith.constant 0 : i32
    return %c0_i32, %c0_i32_0 : i32, i32
  }
  func.func @transform_9(%arg0: i32) -> (i32, i32, i32) {
    %c0_i32 = arith.constant 0 : i32
    %c0_i32_0 = arith.constant 0 : i32
    %c0_i32_1 = arith.constant 0 : i32
    %c0_i32_2 = arith.constant 0 : i32
    return %c0_i32, %c0_i32_0, %c0_i32_1 : i32, i32, i32
  }
}

</mosaic_0001>

<llo_original>
// kernel: multi_head_forward.1
$region0: #{multi_head_forward.1}
  #allocation0 [shape = 'u32[]', space=smem, size = 0x4, offset = 0x4, fixed_abs, tag = 'smem constant byte address 0x4 - core index']
  #allocation1 [shape = 'u32[72,128]{1,0:T(1,128)}', space=vmem, size = 0x9000, scoped, tag = 'internal scratch']
  #allocation2 [shape = 'f32[128,2048]{1,0:T(8,128)}', space=vmem, size = 0x100000, scoped, tag = 'scratch operand']
  #allocation3 [shape = 'f32[128,256]{1,0:T(8,128)}', space=vmem, size = 0x20000, scoped, tag = 'scratch operand']
  #allocation4 [shape = 'f32[128,256]{1,0:T(8,128)}', space=vmem, size = 0x20000, scoped, tag = 'scratch operand']
  %s0 = inlined_call_operand.vmem [shape: f32[16,8,128], index: 0, kind: input, shape index: {}]
  %s1 = inlined_call_operand.hbm [shape: bf16[128,2048], index: 1, kind: input, shape index: {}]
  %s2 = inlined_call_operand.hbm [shape: f32[1,2048], index: 2, kind: input, shape index: {}]
  %s3 = inlined_call_operand.vmem [shape: bf16[2,256,1024], index: 3, kind: input, shape index: {}]
  %s4 = inlined_call_operand.vmem [shape: bf16[128,128], index: 4, kind: input, shape index: {}]
  %s5 = inlined_call_operand.vmem [shape: f32[1,128], index: 5, kind: input, shape index: {}]
  %s6 = inlined_call_operand.vmem [shape: bf16[2,256,128], index: 6, kind: input, shape index: {}]
  %s7 = inlined_call_operand.vmem [shape: f32[1,128], index: 7, kind: input, shape index: {}]
  %s8 = inlined_call_operand.vmem [shape: f32[8,128], index: 8, kind: output, shape index: {0}]
  %s9 = inlined_call_operand.vmem [shape: f32[16,8,128], index: 9, kind: output, shape index: {1}]
  %10 = xla_tuple %s8, %s9
  %s11 = sld [smem:[#allocation0]]
  $region65: #{multi_head_forward.1} parent=0
    _
  %s13 = ssub.s32 1, %s11
  %s14 = scalar_select 0, %s13, %s11
  $region1: #{multi_head_forward.1} parent=0
    #allocation5 [shape = 'u8[524288]{0}', space=vmem, size = 0x80000, scoped, tag = 'input window, operand 1, single buffered']
    #allocation6 [shape = 's32[1]{0}', space=sflag, size = 0x4, scoped, tag = 'scoped memory for multi_head_forward.1']
    #allocation7 [shape = 'u8[8192]{0}', space=vmem, size = 0x2000, scoped, tag = 'input window, operand 2, single buffered']
    #allocation8 [shape = 's32[1]{0}', space=sflag, size = 0x4, scoped, tag = 'scoped memory for multi_head_forward.1']
    %15 = vsyncpa [#allocation6], 0
    %16 = vsyncpa [#allocation8], 0
    // Predicated region
    $region2: #{multi_head_forward.1} parent=1 // pred_check
      _
    $region3: #{multi_head_forward.1} parent=1 // pred_check_branch
      %18 = sbr.rel (0) target = $region5
    $region4: #{multi_head_forward.1} parent=1 // pred_region
      _
    $region5: #{multi_head_forward.1} parent=1 // pred_fallthru
      _
    // Predicated region
    $region6: #{multi_head_forward.1} parent=1 // pred_check
      _
    $region7: #{multi_head_forward.1} parent=1 // pred_check_branch
      %20 = sbr.rel (0) target = $region9
    $region8: #{multi_head_forward.1} parent=1 // pred_region
      %22 = vsyncadd [#allocation6], 0
      %s23 = sshll.u32 %s1, 4
      %s24 = int_to_ptr.hbm [resolvable:$true] %s23
      %s25 = sshll.u32 [#allocation5], 4
      %s26 = int_to_ptr.vmem [resolvable:$true] %s25
      %31 = dma.hbm_to_vmem [thread:$0]  %s24, 16384, %s26, [#allocation6], 1024, 1024, 64
    $region9: #{multi_head_forward.1} parent=1 // pred_fallthru
      _
    // Predicated region
    $region10: #{multi_head_forward.1} parent=1 // pred_check
      _
    $region11: #{multi_head_forward.1} parent=1 // pred_check_branch
      %33 = sbr.rel (0) target = $region13
    $region12: #{multi_head_forward.1} parent=1 // pred_region
      %35 = vsyncadd [#allocation8], 0
      %s37 = sshll.u32 %s2, 4
      %s38 = int_to_ptr.hbm [resolvable:$true] %s37
      %s39 = sshll.u32 [#allocation7], 4
      %s40 = int_to_ptr.vmem [resolvable:$true] %s39
      %42 = dma.hbm_to_vmem [thread:$0]  %s38, 256, %s40, [#allocation8]
    $region13: #{multi_head_forward.1} parent=1 // pred_fallthru
      _
    // Predicated region
    $region14: #{multi_head_forward.1} parent=1 // pred_check
      _
    $region15: #{multi_head_forward.1} parent=1 // pred_check_branch
      %44 = sbr.rel (0) target = $region17
    $region16: #{multi_head_forward.1} parent=1 // pred_region
      _
    $region17: #{multi_head_forward.1} parent=1 // pred_fallthru
      _
    // Predicated region
    $region18: #{multi_head_forward.1} parent=1 // pred_check
      _
    $region19: #{multi_head_forward.1} parent=1 // pred_check_branch
      %46 = sbr.rel (0) target = $region21
    $region20: #{multi_head_forward.1} parent=1 // pred_region
      _
    $region21: #{multi_head_forward.1} parent=1 // pred_fallthru
      _
    // Predicated region
    $region22: #{multi_head_forward.1} parent=1 // pred_check
      _
    $region23: #{multi_head_forward.1} parent=1 // pred_check_branch
      %48 = sbr.rel (0) target = $region25
    $region24: #{multi_head_forward.1} parent=1 // pred_region
      _
    $region25: #{multi_head_forward.1} parent=1 // pred_fallthru
      _
    // Predicated region
    $region26: #{multi_head_forward.1} parent=1 // pred_check
      _
    $region27: #{multi_head_forward.1} parent=1 // pred_check_branch
      %50 = sbr.rel (0) target = $region29
    $region28: #{multi_head_forward.1} parent=1 // pred_region
      _
    $region29: #{multi_head_forward.1} parent=1 // pred_fallthru
      _
    // Predicated region
    $region30: #{multi_head_forward.1} parent=1 // pred_check
      _
    $region31: #{multi_head_forward.1} parent=1 // pred_check_branch
      %52 = sbr.rel (0) target = $region33
    $region32: #{multi_head_forward.1} parent=1 // pred_region
      _
    $region33: #{multi_head_forward.1} parent=1 // pred_fallthru
      _
    // Predicated region
    $region34: #{multi_head_forward.1} parent=1 // pred_check
      _
    $region35: #{multi_head_forward.1} parent=1 // pred_check_branch
      %54 = sbr.rel (0) target = $region37
    $region36: #{multi_head_forward.1} parent=1 // pred_region
      %56 = dma.done [#allocation6], 16384
    $region37: #{multi_head_forward.1} parent=1 // pred_fallthru
      _
    // Predicated region
    $region38: #{multi_head_forward.1} parent=1 // pred_check
      _
    $region39: #{multi_head_forward.1} parent=1 // pred_check_branch
      %58 = sbr.rel (0) target = $region41
    $region40: #{multi_head_forward.1} parent=1 // pred_region
      %60 = dma.done [#allocation8], 256
    $region41: #{multi_head_forward.1} parent=1 // pred_fallthru
      _
    %v61 = vld [vmem:[%s0] sm:$0xff]
    %v62 = vld [vmem:[%s0 + $0x8] sm:$0xff]
    %v63 = vld [vmem:[%s0 + $0x10] sm:$0xff]
    %v64 = vld [vmem:[%s0 + $0x18] sm:$0xff]
    %v65 = vld [vmem:[%s0 + $0x20] sm:$0xff]
    %v66 = vld [vmem:[%s0 + $0x28] sm:$0xff]
    %v67 = vld [vmem:[%s0 + $0x30] sm:$0xff]
    %v68 = vld [vmem:[%s0 + $0x38] sm:$0xff]
    %v69 = vld [vmem:[%s0 + $0x40] sm:$0xff]
    %v70 = vld [vmem:[%s0 + $0x48] sm:$0xff]
    %v71 = vld [vmem:[%s0 + $0x50] sm:$0xff]
    %v72 = vld [vmem:[%s0 + $0x58] sm:$0xff]
    %v73 = vld [vmem:[%s0 + $0x60] sm:$0xff]
    %v74 = vld [vmem:[%s0 + $0x68] sm:$0xff]
    %v75 = vld [vmem:[%s0 + $0x70] sm:$0xff]
    %v76 = vld [vmem:[%s0 + $0x78] sm:$0xff]
    %v77 = vadd.f32 %v61, %v62
    %v78 = vadd.f32 %v77, %v63
    %v79 = vadd.f32 %v78, %v64
    %v80 = vadd.f32 %v79, %v65
    %v81 = vadd.f32 %v80, %v66
    %v82 = vadd.f32 %v81, %v67
    %v83 = vadd.f32 %v82, %v68
    %v84 = vadd.f32 %v83, %v69
    %v85 = vadd.f32 %v84, %v70
    %v86 = vadd.f32 %v85, %v71
    %v87 = vadd.f32 %v86, %v72
    %v88 = vadd.f32 %v87, %v73
    %v89 = vadd.f32 %v88, %v74
    %v90 = vadd.f32 %v89, %v75
    %v91 = vadd.f32 %v90, %v76
    %v92 = vrcp.pop 16.0
    %v93 = vmul.f32 16.0, %v92
    %v94 = vsub.f32 1.0, %v93
    %v95 = vmul.f32 %v92, %v94
    %v96 = vadd.f32 %v92, %v95
    %vm97 = vweird.f32 %v92
    %v98 = vsel %vm97, %v92, %v96
    %v99 = vmul.f32 %v91, %v98
    %v100 = vpack.c.bf16 %v99, %v99
    %v101 = vld [vmem:[%s4] sm:$0xf]
    %v102 = vld [vmem:[%s4 + $0x4] sm:$0xf]
    %v103 = vld [vmem:[%s4 + $0x8] sm:$0xf]
    %v104 = vld [vmem:[%s4 + $0xc] sm:$0xf]
    %v105 = vld [vmem:[%s4 + $0x10] sm:$0xf]
    %v106 = vld [vmem:[%s4 + $0x14] sm:$0xf]
    %v107 = vld [vmem:[%s4 + $0x18] sm:$0xf]
    %v108 = vld [vmem:[%s4 + $0x1c] sm:$0xf]
    %v109 = vld [vmem:[%s4 + $0x20] sm:$0xf]
    %v110 = vld [vmem:[%s4 + $0x24] sm:$0xf]
    %v111 = vld [vmem:[%s4 + $0x28] sm:$0xf]
    %v112 = vld [vmem:[%s4 + $0x2c] sm:$0xf]
    %v113 = vld [vmem:[%s4 + $0x30] sm:$0xf]
    %v114 = vld [vmem:[%s4 + $0x34] sm:$0xf]
    %v115 = vld [vmem:[%s4 + $0x38] sm:$0xf]
    %v116 = vld [vmem:[%s4 + $0x3c] sm:$0xf]
    %v117 = vld [vmem:[%s5] sm:$0x1]
    %v119 = vperm.slane %v117, 0
    %v137 = vunpack.c.l.b16 %v101
    %v138 = vunpack.c.l.b16 %v102
    %v139 = vunpack.c.l.b16 %v103
    %v140 = vunpack.c.l.b16 %v104
    %v141 = vunpack.c.l.b16 %v105
    %v142 = vunpack.c.l.b16 %v106
    %v143 = vunpack.c.l.b16 %v107
    %v144 = vunpack.c.l.b16 %v108
    %v145 = vunpack.c.l.b16 %v109
    %v146 = vunpack.c.l.b16 %v110
    %v147 = vunpack.c.l.b16 %v111
    %v148 = vunpack.c.l.b16 %v112
    %v149 = vunpack.c.l.b16 %v113
    %v150 = vunpack.c.l.b16 %v114
    %v151 = vunpack.c.l.b16 %v115
    %v152 = vunpack.c.l.b16 %v116
    %v153 = vpack.c.b16 %v138, %v137
    %v154 = vpack.c.b16 %v140, %v139
    %v155 = vpack.c.b16 %v142, %v141
    %v156 = vpack.c.b16 %v144, %v143
    %v157 = vpack.c.b16 %v146, %v145
    %v158 = vpack.c.b16 %v148, %v147
    %v159 = vpack.c.b16 %v150, %v149
    %v160 = vpack.c.b16 %v152, %v151
    %169 = vmatpush.bf16.msra.mxu0 %v160
    %170 = vmatpush.bf16.msra.mxu0 %v159
    %171 = vmatpush.bf16.msra.mxu0 %v158
    %172 = vmatpush.bf16.msra.mxu0 %v157
    %173 = vmatpush.bf16.msra.mxu0 %v156
    %174 = vmatpush.bf16.msra.mxu0 %v155
    %175 = vmatpush.bf16.msra.mxu0 %v154
    %176 = vmatpush.bf16.msra.mxu0 %v153
    %177 = vmatmul.bf16.gmra.mxu0 %v100
    %v178 = vpop.f32.mrf.mxu0
    %v179 = vadd.f32 %v119, %v178
    %v180 = vpop.f32.mrf.mxu0
    %181 = vdwg.mxu0
    %182 = vst [vmem:[%s8] sm:$0xff] %v179
    %v183 = vpack.c.bf16 %v62, %v61
    %v184 = vpack.c.bf16 %v64, %v63
    %v185 = vpack.c.bf16 %v66, %v65
    %v186 = vpack.c.bf16 %v68, %v67
    %v187 = vpack.c.bf16 %v70, %v69
    %v188 = vpack.c.bf16 %v72, %v71
    %v189 = vpack.c.bf16 %v74, %v73
    %v190 = vpack.c.bf16 %v76, %v75
    %v191 = vld [vmem:[#allocation5] sm:$0xff]
    %v192 = vld [vmem:[#allocation5 + $0x8] sm:$0xff]
    %v193 = vld [vmem:[#allocation5 + $0x10] sm:$0xff]
    %v194 = vld [vmem:[#allocation5 + $0x18] sm:$0xff]
    %v195 = vld [vmem:[#allocation5 + $0x20] sm:$0xff]
    %v196 = vld [vmem:[#allocation5 + $0x28] sm:$0xff]
    %v197 = vld [vmem:[#allocation5 + $0x30] sm:$0xff]
    %v198 = vld [vmem:[#allocation5 + $0x38] sm:$0xff]
    %v199 = vld [vmem:[#allocation5 + $0x40] sm:$0xff]
    %v200 = vld [vmem:[#allocation5 + $0x48] sm:$0xff]
    %v201 = vld [vmem:[#allocation5 + $0x50] sm:$0xff]
    %v202 = vld [vmem:[#allocation5 + $0x58] sm:$0xff]
    %v203 = vld [vmem:[#allocation5 + $0x60] sm:$0xff]
    %v204 = vld [vmem:[#allocation5 + $0x68] sm:$0xff]
    %v205 = vld [vmem:[#allocation5 + $0x70] sm:$0xff]
    %v206 = vld [vmem:[#allocation5 + $0x78] sm:$0xff]
    %v207 = vld [vmem:[#allocation5 + $0x80] sm:$0xff]
    %v208 = vld [vmem:[#allocation5 + $0x88] sm:$0xff]
    %v209 = vld [vmem:[#allocation5 + $0x90] sm:$0xff]
    %v210 = vld [vmem:[#allocation5 + $0x98] sm:$0xff]
    %v211 = vld [vmem:[#allocation5 + $0xa0] sm:$0xff]
    %v212 = vld [vmem:[#allocation5 + $0xa8] sm:$0xff]
    %v213 = vld [vmem:[#allocation5 + $0xb0] sm:$0xff]
    %v214 = vld [vmem:[#allocation5 + $0xb8] sm:$0xff]
    %v215 = vld [vmem:[#allocation5 + $0xc0] sm:$0xff]
    %v216 = vld [vmem:[#allocation5 + $0xc8] sm:$0xff]
    %v217 = vld [vmem:[#allocation5 + $0xd0] sm:$0xff]
    %v218 = vld [vmem:[#allocation5 + $0xd8] sm:$0xff]
    %v219 = vld [vmem:[#allocation5 + $0xe0] sm:$0xff]
    %v220 = vld [vmem:[#allocation5 + $0xe8] sm:$0xff]
    %v221 = vld [vmem:[#allocation5 + $0xf0] sm:$0xff]
    %v222 = vld [vmem:[#allocation5 + $0xf8] sm:$0xff]
    %v223 = vld [vmem:[#allocation5 + $0x100] sm:$0xff]
    %v224 = vld [vmem:[#allocation5 + $0x108] sm:$0xff]
    %v225 = vld [vmem:[#allocation5 + $0x110] sm:$0xff]
    %v226 = vld [vmem:[#allocation5 + $0x118] sm:$0xff]
    %v227 = vld [vmem:[#allocation5 + $0x120] sm:$0xff]
    %v228 = vld [vmem:[#allocation5 + $0x128] sm:$0xff]
    %v229 = vld [vmem:[#allocation5 + $0x130] sm:$0xff]
    %v230 = vld [vmem:[#allocation5 + $0x138] sm:$0xff]
    %v231 = vld [vmem:[#allocation5 + $0x140] sm:$0xff]
    %v232 = vld [vmem:[#allocation5 + $0x148] sm:$0xff]
    %v233 = vld [vmem:[#allocation5 + $0x150] sm:$0xff]
    %v234 = vld [vmem:[#allocation5 + $0x158] sm:$0xff]
    %v235 = vld [vmem:[#allocation5 + $0x160] sm:$0xff]
    %v236 = vld [vmem:[#allocation5 + $0x168] sm:$0xff]
    %v237 = vld [vmem:[#allocation5 + $0x170] sm:$0xff]
    %v238 = vld [vmem:[#allocation5 + $0x178] sm:$0xff]
    %v239 = vld [vmem:[#allocation5 + $0x180] sm:$0xff]
    %v240 = vld [vmem:[#allocation5 + $0x188] sm:$0xff]
    %v241 = vld [vmem:[#allocation5 + $0x190] sm:$0xff]
    %v242 = vld [vmem:[#allocation5 + $0x198] sm:$0xff]
    %v243 = vld [vmem:[#allocation5 + $0x1a0] sm:$0xff]
    %v244 = vld [vmem:[#allocation5 + $0x1a8] sm:$0xff]
    %v245 = vld [vmem:[#allocation5 + $0x1b0] sm:$0xff]
    %v246 = vld [vmem:[#allocation5 + $0x1b8] sm:$0xff]
    %v247 = vld [vmem:[#allocation5 + $0x1c0] sm:$0xff]
    %v248 = vld [vmem:[#allocation5 + $0x1c8] sm:$0xff]
    %v249 = vld [vmem:[#allocation5 + $0x1d0] sm:$0xff]
    %v250 = vld [vmem:[#allocation5 + $0x1d8] sm:$0xff]
    %v251 = vld [vmem:[#allocation5 + $0x1e0] sm:$0xff]
    %v252 = vld [vmem:[#allocation5 + $0x1e8] sm:$0xff]
    %v253 = vld [vmem:[#allocation5 + $0x1f0] sm:$0xff]
    %v254 = vld [vmem:[#allocation5 + $0x1f8] sm:$0xff]
    %v255 = vld [vmem:[#allocation5 + $0x200] sm:$0xff]
    %v256 = vld [vmem:[#allocation5 + $0x208] sm:$0xff]
    %v257 = vld [vmem:[#allocation5 + $0x210] sm:$0xff]
    %v258 = vld [vmem:[#allocation5 + $0x218] sm:$0xff]
    %v259 = vld [vmem:[#allocation5 + $0x220] sm:$0xff]
    %v260 = vld [vmem:[#allocation5 + $0x228] sm:$0xff]
    %v261 = vld [vmem:[#allocation5 + $0x230] sm:$0xff]
    %v262 = vld [vmem:[#allocation5 + $0x238] sm:$0xff]
    %v263 = vld [vmem:[#allocation5 + $0x240] sm:$0xff]
    %v264 = vld [vmem:[#allocation5 + $0x248] sm:$0xff]
    %v265 = vld [vmem:[#allocation5 + $0x250] sm:$0xff]
    %v266 = vld [vmem:[#allocation5 + $0x258] sm:$0xff]
    %v267 = vld [vmem:[#allocation5 + $0x260] sm:$0xff]
    %v268 = vld [vmem:[#allocation5 + $0x268] sm:$0xff]
    %v269 = vld [vmem:[#allocation5 + $0x270] sm:$0xff]
    %v270 = vld [vmem:[#allocation5 + $0x278] sm:$0xff]
    %v271 = vld [vmem:[#allocation5 + $0x280] sm:$0xff]
    %v272 = vld [vmem:[#allocation5 + $0x288] sm:$0xff]
    %v273 = vld [vmem:[#allocation5 + $0x290] sm:$0xff]
    %v274 = vld [vmem:[#allocation5 + $0x298] sm:$0xff]
    %v275 = vld [vmem:[#allocation5 + $0x2a0] sm:$0xff]
    %v276 = vld [vmem:[#allocation5 + $0x2a8] sm:$0xff]
    %v277 = vld [vmem:[#allocation5 + $0x2b0] sm:$0xff]
    %v278 = vld [vmem:[#allocation5 + $0x2b8] sm:$0xff]
    %v279 = vld [vmem:[#allocation5 + $0x2c0] sm:$0xff]
    %v280 = vld [vmem:[#allocation5 + $0x2c8] sm:$0xff]
    %v281 = vld [vmem:[#allocation5 + $0x2d0] sm:$0xff]
    %v282 = vld [vmem:[#allocation5 + $0x2d8] sm:$0xff]
    %v283 = vld [vmem:[#allocation5 + $0x2e0] sm:$0xff]
    %v284 = vld [vmem:[#allocation5 + $0x2e8] sm:$0xff]
    %v285 = vld [vmem:[#allocation5 + $0x2f0] sm:$0xff]
    %v286 = vld [vmem:[#allocation5 + $0x2f8] sm:$0xff]
    %v287 = vld [vmem:[#allocation5 + $0x300] sm:$0xff]
    %v288 = vld [vmem:[#allocation5 + $0x308] sm:$0xff]
    %v289 = vld [vmem:[#allocation5 + $0x310] sm:$0xff]
    %v290 = vld [vmem:[#allocation5 + $0x318] sm:$0xff]
    %v291 = vld [vmem:[#allocation5 + $0x320] sm:$0xff]
    %v292 = vld [vmem:[#allocation5 + $0x328] sm:$0xff]
    %v293 = vld [vmem:[#allocation5 + $0x330] sm:$0xff]
    %v294 = vld [vmem:[#allocation5 + $0x338] sm:$0xff]
    %v295 = vld [vmem:[#allocation5 + $0x340] sm:$0xff]
    %v296 = vld [vmem:[#allocation5 + $0x348] sm:$0xff]
    %v297 = vld [vmem:[#allocation5 + $0x350] sm:$0xff]
    %v298 = vld [vmem:[#allocation5 + $0x358] sm:$0xff]
    %v299 = vld [vmem:[#allocation5 + $0x360] sm:$0xff]
    %v300 = vld [vmem:[#allocation5 + $0x368] sm:$0xff]
    %v301 = vld [vmem:[#allocation5 + $0x370] sm:$0xff]
    %v302 = vld [vmem:[#allocation5 + $0x378] sm:$0xff]
    %v303 = vld [vmem:[#allocation5 + $0x380] sm:$0xff]
    %v304 = vld [vmem:[#allocation5 + $0x388] sm:$0xff]
    %v305 = vld [vmem:[#allocation5 + $0x390] sm:$0xff]
    %v306 = vld [vmem:[#allocation5 + $0x398] sm:$0xff]
    %v307 = vld [vmem:[#allocation5 + $0x3a0] sm:$0xff]
    %v308 = vld [vmem:[#allocation5 + $0x3a8] sm:$0xff]
    %v309 = vld [vmem:[#allocation5 + $0x3b0] sm:$0xff]
    %v310 = vld [vmem:[#allocation5 + $0x3b8] sm:$0xff]
    %v311 = vld [vmem:[#allocation5 + $0x3c0] sm:$0xff]
    %v312 = vld [vmem:[#allocation5 + $0x3c8] sm:$0xff]
    %v313 = vld [vmem:[#allocation5 + $0x3d0] sm:$0xff]
    %v314 = vld [vmem:[#allocation5 + $0x3d8] sm:$0xff]
    %v315 = vld [vmem:[#allocation5 + $0x3e0] sm:$0xff]
    %v316 = vld [vmem:[#allocation5 + $0x3e8] sm:$0xff]
    %v317 = vld [vmem:[#allocation5 + $0x3f0] sm:$0xff]
    %v318 = vld [vmem:[#allocation5 + $0x3f8] sm:$0xff]
    %v319 = vld [vmem:[#allocation7] sm:$0xff]
    %v320 = vld [vmem:[#allocation7 + $0x8] sm:$0xff]
    %v323 = vperm.slane %v319, 0
    %v324 = vperm.slane %v319, 1
    %v325 = vperm.slane %v319, 2
    %v326 = vperm.slane %v319, 3
    %v327 = vperm.slane %v319, 4
    %v328 = vperm.slane %v319, 5
    %v329 = vperm.slane %v319, 6
    %v330 = vperm.slane %v319, 7
    %v331 = vperm.slane %v320, 0
    %v332 = vperm.slane %v320, 1
    %v333 = vperm.slane %v320, 2
    %v334 = vperm.slane %v320, 3
    %v335 = vperm.slane %v320, 4
    %v336 = vperm.slane %v320, 5
    %v337 = vperm.slane %v320, 6
    %v338 = vperm.slane %v320, 7
    %v483 = vunpack.c.l.b16 %v191
    %v484 = vunpack.c.h.b16 %v191
    %v485 = vunpack.c.l.b16 %v192
    %v486 = vunpack.c.h.b16 %v192
    %v487 = vunpack.c.l.b16 %v193
    %v488 = vunpack.c.h.b16 %v193
    %v489 = vunpack.c.l.b16 %v194
    %v490 = vunpack.c.h.b16 %v194
    %v491 = vunpack.c.l.b16 %v195
    %v492 = vunpack.c.h.b16 %v195
    %v493 = vunpack.c.l.b16 %v196
    %v494 = vunpack.c.h.b16 %v196
    %v495 = vunpack.c.l.b16 %v197
    %v496 = vunpack.c.h.b16 %v197
    %v497 = vunpack.c.l.b16 %v198
    %v498 = vunpack.c.h.b16 %v198
    %v499 = vunpack.c.l.b16 %v199
    %v500 = vunpack.c.h.b16 %v199
    %v501 = vunpack.c.l.b16 %v200
    %v502 = vunpack.c.h.b16 %v200
    %v503 = vunpack.c.l.b16 %v201
    %v504 = vunpack.c.h.b16 %v201
    %v505 = vunpack.c.l.b16 %v202
    %v506 = vunpack.c.h.b16 %v202
    %v507 = vunpack.c.l.b16 %v203
    %v508 = vunpack.c.h.b16 %v203
    %v509 = vunpack.c.l.b16 %v204
    %v510 = vunpack.c.h.b16 %v204
    %v511 = vunpack.c.l.b16 %v205
    %v512 = vunpack.c.h.b16 %v205
    %v513 = vunpack.c.l.b16 %v206
    %v514 = vunpack.c.h.b16 %v206
    %v515 = vunpack.c.l.b16 %v207
    %v516 = vunpack.c.h.b16 %v207
    %v517 = vunpack.c.l.b16 %v208
    %v518 = vunpack.c.h.b16 %v208
    %v519 = vunpack.c.l.b16 %v209
    %v520 = vunpack.c.h.b16 %v209
    %v521 = vunpack.c.l.b16 %v210
    %v522 = vunpack.c.h.b16 %v210
    %v523 = vunpack.c.l.b16 %v211
    %v524 = vunpack.c.h.b16 %v211
    %v525 = vunpack.c.l.b16 %v212
    %v526 = vunpack.c.h.b16 %v212
    %v527 = vunpack.c.l.b16 %v213
    %v528 = vunpack.c.h.b16 %v213
    %v529 = vunpack.c.l.b16 %v214
    %v530 = vunpack.c.h.b16 %v214
    %v531 = vunpack.c.l.b16 %v215
    %v532 = vunpack.c.h.b16 %v215
    %v533 = vunpack.c.l.b16 %v216
    %v534 = vunpack.c.h.b16 %v216
    %v535 = vunpack.c.l.b16 %v217
    %v536 = vunpack.c.h.b16 %v217
    %v537 = vunpack.c.l.b16 %v218
    %v538 = vunpack.c.h.b16 %v218
    %v539 = vunpack.c.l.b16 %v219
    %v540 = vunpack.c.h.b16 %v219
    %v541 = vunpack.c.l.b16 %v220
    %v542 = vunpack.c.h.b16 %v220
    %v543 = vunpack.c.l.b16 %v221
    %v544 = vunpack.c.h.b16 %v221
    %v545 = vunpack.c.l.b16 %v222
    %v546 = vunpack.c.h.b16 %v222
    %v547 = vunpack.c.l.b16 %v223
    %v548 = vunpack.c.h.b16 %v223
    %v549 = vunpack.c.l.b16 %v224
    %v550 = vunpack.c.h.b16 %v224
    %v551 = vunpack.c.l.b16 %v225
    %v552 = vunpack.c.h.b16 %v225
    %v553 = vunpack.c.l.b16 %v226
    %v554 = vunpack.c.h.b16 %v226
    %v555 = vunpack.c.l.b16 %v227
    %v556 = vunpack.c.h.b16 %v227
    %v557 = vunpack.c.l.b16 %v228
    %v558 = vunpack.c.h.b16 %v228
    %v559 = vunpack.c.l.b16 %v229
    %v560 = vunpack.c.h.b16 %v229
    %v561 = vunpack.c.l.b16 %v230
    %v562 = vunpack.c.h.b16 %v230
    %v563 = vunpack.c.l.b16 %v231
    %v564 = vunpack.c.h.b16 %v231
    %v565 = vunpack.c.l.b16 %v232
    %v566 = vunpack.c.h.b16 %v232
    %v567 = vunpack.c.l.b16 %v233
    %v568 = vunpack.c.h.b16 %v233
    %v569 = vunpack.c.l.b16 %v234
    %v570 = vunpack.c.h.b16 %v234
    %v571 = vunpack.c.l.b16 %v235
    %v572 = vunpack.c.h.b16 %v235
    %v573 = vunpack.c.l.b16 %v236
    %v574 = vunpack.c.h.b16 %v236
    %v575 = vunpack.c.l.b16 %v237
    %v576 = vunpack.c.h.b16 %v237
    %v577 = vunpack.c.l.b16 %v238
    %v578 = vunpack.c.h.b16 %v238
    %v579 = vunpack.c.l.b16 %v239
    %v580 = vunpack.c.h.b16 %v239
    %v581 = vunpack.c.l.b16 %v240
    %v582 = vunpack.c.h.b16 %v240
    %v583 = vunpack.c.l.b16 %v241
    %v584 = vunpack.c.h.b16 %v241
    %v585 = vunpack.c.l.b16 %v242
    %v586 = vunpack.c.h.b16 %v242
    %v587 = vunpack.c.l.b16 %v243
    %v588 = vunpack.c.h.b16 %v243
    %v589 = vunpack.c.l.b16 %v244
    %v590 = vunpack.c.h.b16 %v244
    %v591 = vunpack.c.l.b16 %v245
    %v592 = vunpack.c.h.b16 %v245
    %v593 = vunpack.c.l.b16 %v246
    %v594 = vunpack.c.h.b16 %v246
    %v595 = vunpack.c.l.b16 %v247
    %v596 = vunpack.c.h.b16 %v247
    %v597 = vunpack.c.l.b16 %v248
    %v598 = vunpack.c.h.b16 %v248
    %v599 = vunpack.c.l.b16 %v249
    %v600 = vunpack.c.h.b16 %v249
    %v601 = vunpack.c.l.b16 %v250
    %v602 = vunpack.c.h.b16 %v250
    %v603 = vunpack.c.l.b16 %v251
    %v604 = vunpack.c.h.b16 %v251
    %v605 = vunpack.c.l.b16 %v252
    %v606 = vunpack.c.h.b16 %v252
    %v607 = vunpack.c.l.b16 %v253
    %v608 = vunpack.c.h.b16 %v253
    %v609 = vunpack.c.l.b16 %v254
    %v610 = vunpack.c.h.b16 %v254
    %v611 = vunpack.c.l.b16 %v255
    %v612 = vunpack.c.h.b16 %v255
    %v613 = vunpack.c.l.b16 %v256
    %v614 = vunpack.c.h.b16 %v256
    %v615 = vunpack.c.l.b16 %v257
    %v616 = vunpack.c.h.b16 %v257
    %v617 = vunpack.c.l.b16 %v258
    %v618 = vunpack.c.h.b16 %v258
    %v619 = vunpack.c.l.b16 %v259
    %v620 = vunpack.c.h.b16 %v259
    %v621 = vunpack.c.l.b16 %v260
    %v622 = vunpack.c.h.b16 %v260
    %v623 = vunpack.c.l.b16 %v261
    %v624 = vunpack.c.h.b16 %v261
    %v625 = vunpack.c.l.b16 %v262
    %v626 = vunpack.c.h.b16 %v262
    %v627 = vunpack.c.l.b16 %v263
    %v628 = vunpack.c.h.b16 %v263
    %v629 = vunpack.c.l.b16 %v264
    %v630 = vunpack.c.h.b16 %v264
    %v631 = vunpack.c.l.b16 %v265
    %v632 = vunpack.c.h.b16 %v265
    %v633 = vunpack.c.l.b16 %v266
    %v634 = vunpack.c.h.b16 %v266
    %v635 = vunpack.c.l.b16 %v267
    %v636 = vunpack.c.h.b16 %v267
    %v637 = vunpack.c.l.b16 %v268
    %v638 = vunpack.c.h.b16 %v268
    %v639 = vunpack.c.l.b16 %v269
    %v640 = vunpack.c.h.b16 %v269
    %v641 = vunpack.c.l.b16 %v270
    %v642 = vunpack.c.h.b16 %v270
    %v643 = vunpack.c.l.b16 %v271
    %v644 = vunpack.c.h.b16 %v271
    %v645 = vunpack.c.l.b16 %v272
    %v646 = vunpack.c.h.b16 %v272
    %v647 = vunpack.c.l.b16 %v273
    %v648 = vunpack.c.h.b16 %v273
    %v649 = vunpack.c.l.b16 %v274
    %v650 = vunpack.c.h.b16 %v274
    %v651 = vunpack.c.l.b16 %v275
    %v652 = vunpack.c.h.b16 %v275
    %v653 = vunpack.c.l.b16 %v276
    %v654 = vunpack.c.h.b16 %v276
    %v655 = vunpack.c.l.b16 %v277
    %v656 = vunpack.c.h.b16 %v277
    %v657 = vunpack.c.l.b16 %v278
    %v658 = vunpack.c.h.b16 %v278
    %v659 = vunpack.c.l.b16 %v279
    %v660 = vunpack.c.h.b16 %v279
    %v661 = vunpack.c.l.b16 %v280
    %v662 = vunpack.c.h.b16 %v280
    %v663 = vunpack.c.l.b16 %v281
    %v664 = vunpack.c.h.b16 %v281
    %v665 = vunpack.c.l.b16 %v282
    %v666 = vunpack.c.h.b16 %v282
    %v667 = vunpack.c.l.b16 %v283
    %v668 = vunpack.c.h.b16 %v283
    %v669 = vunpack.c.l.b16 %v284
    %v670 = vunpack.c.h.b16 %v284
    %v671 = vunpack.c.l.b16 %v285
    %v672 = vunpack.c.h.b16 %v285
    %v673 = vunpack.c.l.b16 %v286
    %v674 = vunpack.c.h.b16 %v286
    %v675 = vunpack.c.l.b16 %v287
    %v676 = vunpack.c.h.b16 %v287
    %v677 = vunpack.c.l.b16 %v288
    %v678 = vunpack.c.h.b16 %v288
    %v679 = vunpack.c.l.b16 %v289
    %v680 = vunpack.c.h.b16 %v289
    %v681 = vunpack.c.l.b16 %v290
    %v682 = vunpack.c.h.b16 %v290
    %v683 = vunpack.c.l.b16 %v291
    %v684 = vunpack.c.h.b16 %v291
    %v685 = vunpack.c.l.b16 %v292
    %v686 = vunpack.c.h.b16 %v292
    %v687 = vunpack.c.l.b16 %v293
    %v688 = vunpack.c.h.b16 %v293
    %v689 = vunpack.c.l.b16 %v294
    %v690 = vunpack.c.h.b16 %v294
    %v691 = vunpack.c.l.b16 %v295
    %v692 = vunpack.c.h.b16 %v295
    %v693 = vunpack.c.l.b16 %v296
    %v694 = vunpack.c.h.b16 %v296
    %v695 = vunpack.c.l.b16 %v297
    %v696 = vunpack.c.h.b16 %v297
    %v697 = vunpack.c.l.b16 %v298
    %v698 = vunpack.c.h.b16 %v298
    %v699 = vunpack.c.l.b16 %v299
    %v700 = vunpack.c.h.b16 %v299
    %v701 = vunpack.c.l.b16 %v300
    %v702 = vunpack.c.h.b16 %v300
    %v703 = vunpack.c.l.b16 %v301
    %v704 = vunpack.c.h.b16 %v301
    %v705 = vunpack.c.l.b16 %v302
    %v706 = vunpack.c.h.b16 %v302
    %v707 = vunpack.c.l.b16 %v303
    %v708 = vunpack.c.h.b16 %v303
    %v709 = vunpack.c.l.b16 %v304
    %v710 = vunpack.c.h.b16 %v304
    %v711 = vunpack.c.l.b16 %v305
    %v712 = vunpack.c.h.b16 %v305
    %v713 = vunpack.c.l.b16 %v306
    %v714 = vunpack.c.h.b16 %v306
    %v715 = vunpack.c.l.b16 %v307
    %v716 = vunpack.c.h.b16 %v307
    %v717 = vunpack.c.l.b16 %v308
    %v718 = vunpack.c.h.b16 %v308
    %v719 = vunpack.c.l.b16 %v309
    %v720 = vunpack.c.h.b16 %v309
    %v721 = vunpack.c.l.b16 %v310
    %v722 = vunpack.c.h.b16 %v310
    %v723 = vunpack.c.l.b16 %v311
    %v724 = vunpack.c.h.b16 %v311
    %v725 = vunpack.c.l.b16 %v312
    %v726 = vunpack.c.h.b16 %v312
    %v727 = vunpack.c.l.b16 %v313
    %v728 = vunpack.c.h.b16 %v313
    %v729 = vunpack.c.l.b16 %v314
    %v730 = vunpack.c.h.b16 %v314
    %v731 = vunpack.c.l.b16 %v315
    %v732 = vunpack.c.h.b16 %v315
    %v733 = vunpack.c.l.b16 %v316
    %v734 = vunpack.c.h.b16 %v316
    %v735 = vunpack.c.l.b16 %v317
    %v736 = vunpack.c.h.b16 %v317
    %v737 = vunpack.c.l.b16 %v318
    %v738 = vunpack.c.h.b16 %v318
    %v739 = vpack.c.b16 %v499, %v483
    %v740 = vpack.c.b16 %v500, %v484
    %v741 = vpack.c.b16 %v501, %v485
    %v742 = vpack.c.b16 %v502, %v486
    %v743 = vpack.c.b16 %v503, %v487
    %v744 = vpack.c.b16 %v504, %v488
    %v745 = vpack.c.b16 %v505, %v489
    %v746 = vpack.c.b16 %v506, %v490
    %v747 = vpack.c.b16 %v507, %v491
    %v748 = vpack.c.b16 %v508, %v492
    %v749 = vpack.c.b16 %v509, %v493
    %v750 = vpack.c.b16 %v510, %v494
    %v751 = vpack.c.b16 %v511, %v495
    %v752 = vpack.c.b16 %v512, %v496
    %v753 = vpack.c.b16 %v513, %v497
    %v754 = vpack.c.b16 %v514, %v498
    %v755 = vpack.c.b16 %v531, %v515
    %v756 = vpack.c.b16 %v532, %v516
    %v757 = vpack.c.b16 %v533, %v517
    %v758 = vpack.c.b16 %v534, %v518
    %v759 = vpack.c.b16 %v535, %v519
    %v760 = vpack.c.b16 %v536, %v520
    %v761 = vpack.c.b16 %v537, %v521
    %v762 = vpack.c.b16 %v538, %v522
    %v763 = vpack.c.b16 %v539, %v523
    %v764 = vpack.c.b16 %v540, %v524
    %v765 = vpack.c.b16 %v541, %v525
    %v766 = vpack.c.b16 %v542, %v526
    %v767 = vpack.c.b16 %v543, %v527
    %v768 = vpack.c.b16 %v544, %v528
    %v769 = vpack.c.b16 %v545, %v529
    %v770 = vpack.c.b16 %v546, %v530
    %v771 = vpack.c.b16 %v563, %v547
    %v772 = vpack.c.b16 %v564, %v548
    %v773 = vpack.c.b16 %v565, %v549
    %v774 = vpack.c.b16 %v566, %v550
    %v775 = vpack.c.b16 %v567, %v551
    %v776 = vpack.c.b16 %v568, %v552
    %v777 = vpack.c.b16 %v569, %v553
    %v778 = vpack.c.b16 %v570, %v554
    %v779 = vpack.c.b16 %v571, %v555
    %v780 = vpack.c.b16 %v572, %v556
    %v781 = vpack.c.b16 %v573, %v557
    %v782 = vpack.c.b16 %v574, %v558
    %v783 = vpack.c.b16 %v575, %v559
    %v784 = vpack.c.b16 %v576, %v560
    %v785 = vpack.c.b16 %v577, %v561
    %v786 = vpack.c.b16 %v578, %v562
    %v787 = vpack.c.b16 %v595, %v579
    %v788 = vpack.c.b16 %v596, %v580
    %v789 = vpack.c.b16 %v597, %v581
    %v790 = vpack.c.b16 %v598, %v582
    %v791 = vpack.c.b16 %v599, %v583
    %v792 = vpack.c.b16 %v600, %v584
    %v793 = vpack.c.b16 %v601, %v585
    %v794 = vpack.c.b16 %v602, %v586
    %v795 = vpack.c.b16 %v603, %v587
    %v796 = vpack.c.b16 %v604, %v588
    %v797 = vpack.c.b16 %v605, %v589
    %v798 = vpack.c.b16 %v606, %v590
    %v799 = vpack.c.b16 %v607, %v591
    %v800 = vpack.c.b16 %v608, %v592
    %v801 = vpack.c.b16 %v609, %v593
    %v802 = vpack.c.b16 %v610, %v594
    %v803 = vpack.c.b16 %v627, %v611
    %v804 = vpack.c.b16 %v628, %v612
    %v805 = vpack.c.b16 %v629, %v613
    %v806 = vpack.c.b16 %v630, %v614
    %v807 = vpack.c.b16 %v631, %v615
    %v808 = vpack.c.b16 %v632, %v616
    %v809 = vpack.c.b16 %v633, %v617
    %v810 = vpack.c.b16 %v634, %v618
    %v811 = vpack.c.b16 %v635, %v619
    %v812 = vpack.c.b16 %v636, %v620
    %v813 = vpack.c.b16 %v637, %v621
    %v814 = vpack.c.b16 %v638, %v622
    %v815 = vpack.c.b16 %v639, %v623
    %v816 = vpack.c.b16 %v640, %v624
    %v817 = vpack.c.b16 %v641, %v625
    %v818 = vpack.c.b16 %v642, %v626
    %v819 = vpack.c.b16 %v659, %v643
    %v820 = vpack.c.b16 %v660, %v644
    %v821 = vpack.c.b16 %v661, %v645
    %v822 = vpack.c.b16 %v662, %v646
    %v823 = vpack.c.b16 %v663, %v647
    %v824 = vpack.c.b16 %v664, %v648
    %v825 = vpack.c.b16 %v665, %v649
    %v826 = vpack.c.b16 %v666, %v650
    %v827 = vpack.c.b16 %v667, %v651
    %v828 = vpack.c.b16 %v668, %v652
    %v829 = vpack.c.b16 %v669, %v653
    %v830 = vpack.c.b16 %v670, %v654
    %v831 = vpack.c.b16 %v671, %v655
    %v832 = vpack.c.b16 %v672, %v656
    %v833 = vpack.c.b16 %v673, %v657
    %v834 = vpack.c.b16 %v674, %v658
    %v835 = vpack.c.b16 %v691, %v675
    %v836 = vpack.c.b16 %v692, %v676
    %v837 = vpack.c.b16 %v693, %v677
    %v838 = vpack.c.b16 %v694, %v678
    %v839 = vpack.c.b16 %v695, %v679
    %v840 = vpack.c.b16 %v696, %v680
    %v841 = vpack.c.b16 %v697, %v681
    %v842 = vpack.c.b16 %v698, %v682
    %v843 = vpack.c.b16 %v699, %v683
    %v844 = vpack.c.b16 %v700, %v684
    %v845 = vpack.c.b16 %v701, %v685
    %v846 = vpack.c.b16 %v702, %v686
    %v847 = vpack.c.b16 %v703, %v687
    %v848 = vpack.c.b16 %v704, %v688
    %v849 = vpack.c.b16 %v705, %v689
    %v850 = vpack.c.b16 %v706, %v690
    %v851 = vpack.c.b16 %v723, %v707
    %v852 = vpack.c.b16 %v724, %v708
    %v853 = vpack.c.b16 %v725, %v709
    %v854 = vpack.c.b16 %v726, %v710
    %v855 = vpack.c.b16 %v727, %v711
    %v856 = vpack.c.b16 %v728, %v712
    %v857 = vpack.c.b16 %v729, %v713
    %v858 = vpack.c.b16 %v730, %v714
    %v859 = vpack.c.b16 %v731, %v715
    %v860 = vpack.c.b16 %v732, %v716
    %v861 = vpack.c.b16 %v733, %v717
    %v862 = vpack.c.b16 %v734, %v718
    %v863 = vpack.c.b16 %v735, %v719
    %v864 = vpack.c.b16 %v736, %v720
    %v865 = vpack.c.b16 %v737, %v721
    %v866 = vpack.c.b16 %v738, %v722
    %995 = vmatpush.bf16.msra.mxu0 %v851
    %996 = vmatpush.bf16.msra.mxu0 %v835
    %997 = vmatpush.bf16.msra.mxu0 %v819
    %998 = vmatpush.bf16.msra.mxu0 %v803
    %999 = vmatpush.bf16.msra.mxu0 %v787
    %1000 = vmatpush.bf16.msra.mxu0 %v771
    %1001 = vmatpush.bf16.msra.mxu0 %v755
    %1002 = vmatpush.bf16.msra.mxu0 %v739
    %1003 = vmatmul.bf16.gmra.mxu0 %v183
    %v1004 = vpop.f32.mrf.mxu0
    %v1005 = vadd.f32 %v323, %v1004
    %v1006 = vpop.f32.mrf.mxu0
    %v1007 = vadd.f32 %v323, %v1006
    %1008 = vmatmul.bf16.gmra.mxu0 %v184
    %v1009 = vpop.f32.mrf.mxu0
    %v1010 = vadd.f32 %v323, %v1009
    %v1011 = vpop.f32.mrf.mxu0
    %v1012 = vadd.f32 %v323, %v1011
    %1013 = vmatmul.bf16.gmra.mxu0 %v185
    %v1014 = vpop.f32.mrf.mxu0
    %v1015 = vadd.f32 %v323, %v1014
    %v1016 = vpop.f32.mrf.mxu0
    %v1017 = vadd.f32 %v323, %v1016
    %1018 = vmatmul.bf16.gmra.mxu0 %v186
    %v1019 = vpop.f32.mrf.mxu0
    %v1020 = vadd.f32 %v323, %v1019
    %v1021 = vpop.f32.mrf.mxu0
    %v1022 = vadd.f32 %v323, %v1021
    %1023 = vmatmul.bf16.gmra.mxu0 %v187
    %v1024 = vpop.f32.mrf.mxu0
    %v1025 = vadd.f32 %v323, %v1024
    %v1026 = vpop.f32.mrf.mxu0
    %v1027 = vadd.f32 %v323, %v1026
    %1028 = vmatmul.bf16.gmra.mxu0 %v188
    %v1029 = vpop.f32.mrf.mxu0
    %v1030 = vadd.f32 %v323, %v1029
    %v1031 = vpop.f32.mrf.mxu0
    %v1032 = vadd.f32 %v323, %v1031
    %1033 = vmatmul.bf16.gmra.mxu0 %v189
    %v1034 = vpop.f32.mrf.mxu0
    %v1035 = vadd.f32 %v323, %v1034
    %v1036 = vpop.f32.mrf.mxu0
    %v1037 = vadd.f32 %v323, %v1036
    %1038 = vmatmul.bf16.gmra.mxu0 %v190
    %v1039 = vpop.f32.mrf.mxu0
    %v1040 = vadd.f32 %v323, %v1039
    %v1041 = vpop.f32.mrf.mxu0
    %v1042 = vadd.f32 %v323, %v1041
    %1043 = vdwg.mxu0
    %1044 = vmatpush.bf16.msra.mxu0 %v852
    %1045 = vmatpush.bf16.msra.mxu0 %v836
    %1046 = vmatpush.bf16.msra.mxu0 %v820
    %1047 = vmatpush.bf16.msra.mxu0 %v804
    %1048 = vmatpush.bf16.msra.mxu0 %v788
    %1049 = vmatpush.bf16.msra.mxu0 %v772
    %1050 = vmatpush.bf16.msra.mxu0 %v756
    %1051 = vmatpush.bf16.msra.mxu0 %v740
    %1052 = vmatmul.bf16.gmra.mxu0 %v183
    %v1053 = vpop.f32.mrf.mxu0
    %v1054 = vadd.f32 %v324, %v1053
    %v1055 = vpop.f32.mrf.mxu0
    %v1056 = vadd.f32 %v324, %v1055
    %1057 = vmatmul.bf16.gmra.mxu0 %v184
    %v1058 = vpop.f32.mrf.mxu0
    %v1059 = vadd.f32 %v324, %v1058
    %v1060 = vpop.f32.mrf.mxu0
    %v1061 = vadd.f32 %v324, %v1060
    %1062 = vmatmul.bf16.gmra.mxu0 %v185
    %v1063 = vpop.f32.mrf.mxu0
    %v1064 = vadd.f32 %v324, %v1063
    %v1065 = vpop.f32.mrf.mxu0
    %v1066 = vadd.f32 %v324, %v1065
    %1067 = vmatmul.bf16.gmra.mxu0 %v186
    %v1068 = vpop.f32.mrf.mxu0
    %v1069 = vadd.f32 %v324, %v1068
    %v1070 = vpop.f32.mrf.mxu0
    %v1071 = vadd.f32 %v324, %v1070
    %1072 = vmatmul.bf16.gmra.mxu0 %v187
    %v1073 = vpop.f32.mrf.mxu0
    %v1074 = vadd.f32 %v324, %v1073
    %v1075 = vpop.f32.mrf.mxu0
    %v1076 = vadd.f32 %v324, %v1075
    %1077 = vmatmul.bf16.gmra.mxu0 %v188
    %v1078 = vpop.f32.mrf.mxu0
    %v1079 = vadd.f32 %v324, %v1078
    %v1080 = vpop.f32.mrf.mxu0
    %v1081 = vadd.f32 %v324, %v1080
    %1082 = vmatmul.bf16.gmra.mxu0 %v189
    %v1083 = vpop.f32.mrf.mxu0
    %v1084 = vadd.f32 %v324, %v1083
    %v1085 = vpop.f32.mrf.mxu0
    %v1086 = vadd.f32 %v324, %v1085
    %1087 = vmatmul.bf16.gmra.mxu0 %v190
    %v1088 = vpop.f32.mrf.mxu0
    %v1089 = vadd.f32 %v324, %v1088
    %v1090 = vpop.f32.mrf.mxu0
    %v1091 = vadd.f32 %v324, %v1090
    %1092 = vdwg.mxu0
    %1093 = vmatpush.bf16.msra.mxu0 %v853
    %1094 = vmatpush.bf16.msra.mxu0 %v837
    %1095 = vmatpush.bf16.msra.mxu0 %v821
    %1096 = vmatpush.bf16.msra.mxu0 %v805
    %1097 = vmatpush.bf16.msra.mxu0 %v789
    %1098 = vmatpush.bf16.msra.mxu0 %v773
    %1099 = vmatpush.bf16.msra.mxu0 %v757
    %1100 = vmatpush.bf16.msra.mxu0 %v741
    %1101 = vmatmul.bf16.gmra.mxu0 %v183
    %v1102 = vpop.f32.mrf.mxu0
    %v1103 = vadd.f32 %v325, %v1102
    %v1104 = vpop.f32.mrf.mxu0
    %v1105 = vadd.f32 %v325, %v1104
    %1106 = vmatmul.bf16.gmra.mxu0 %v184
    %v1107 = vpop.f32.mrf.mxu0
    %v1108 = vadd.f32 %v325, %v1107
    %v1109 = vpop.f32.mrf.mxu0
    %v1110 = vadd.f32 %v325, %v1109
    %1111 = vmatmul.bf16.gmra.mxu0 %v185
    %v1112 = vpop.f32.mrf.mxu0
    %v1113 = vadd.f32 %v325, %v1112
    %v1114 = vpop.f32.mrf.mxu0
    %v1115 = vadd.f32 %v325, %v1114
    %1116 = vmatmul.bf16.gmra.mxu0 %v186
    %v1117 = vpop.f32.mrf.mxu0
    %v1118 = vadd.f32 %v325, %v1117
    %v1119 = vpop.f32.mrf.mxu0
    %v1120 = vadd.f32 %v325, %v1119
    %1121 = vmatmul.bf16.gmra.mxu0 %v187
    %v1122 = vpop.f32.mrf.mxu0
    %v1123 = vadd.f32 %v325, %v1122
    %v1124 = vpop.f32.mrf.mxu0
    %v1125 = vadd.f32 %v325, %v1124
    %1126 = vmatmul.bf16.gmra.mxu0 %v188
    %v1127 = vpop.f32.mrf.mxu0
    %v1128 = vadd.f32 %v325, %v1127
    %v1129 = vpop.f32.mrf.mxu0
    %v1130 = vadd.f32 %v325, %v1129
    %1131 = vmatmul.bf16.gmra.mxu0 %v189
    %v1132 = vpop.f32.mrf.mxu0
    %v1133 = vadd.f32 %v325, %v1132
    %v1134 = vpop.f32.mrf.mxu0
    %v1135 = vadd.f32 %v325, %v1134
    %1136 = vmatmul.bf16.gmra.mxu0 %v190
    %v1137 = vpop.f32.mrf.mxu0
    %v1138 = vadd.f32 %v325, %v1137
    %v1139 = vpop.f32.mrf.mxu0
    %v1140 = vadd.f32 %v325, %v1139
    %1141 = vdwg.mxu0
    %1142 = vmatpush.bf16.msra.mxu0 %v854
    %1143 = vmatpush.bf16.msra.mxu0 %v838
    %1144 = vmatpush.bf16.msra.mxu0 %v822
    %1145 = vmatpush.bf16.msra.mxu0 %v806
    %1146 = vmatpush.bf16.msra.mxu0 %v790
    %1147 = vmatpush.bf16.msra.mxu0 %v774
    %1148 = vmatpush.bf16.msra.mxu0 %v758
    %1149 = vmatpush.bf16.msra.mxu0 %v742
    %1150 = vmatmul.bf16.gmra.mxu0 %v183
    %v1151 = vpop.f32.mrf.mxu0
    %v1152 = vadd.f32 %v326, %v1151
    %v1153 = vpop.f32.mrf.mxu0
    %v1154 = vadd.f32 %v326, %v1153
    %1155 = vmatmul.bf16.gmra.mxu0 %v184
    %v1156 = vpop.f32.mrf.mxu0
    %v1157 = vadd.f32 %v326, %v1156
    %v1158 = vpop.f32.mrf.mxu0
    %v1159 = vadd.f32 %v326, %v1158
    %1160 = vmatmul.bf16.gmra.mxu0 %v185
    %v1161 = vpop.f32.mrf.mxu0
    %v1162 = vadd.f32 %v326, %v1161
    %v1163 = vpop.f32.mrf.mxu0
    %v1164 = vadd.f32 %v326, %v1163
    %1165 = vmatmul.bf16.gmra.mxu0 %v186
    %v1166 = vpop.f32.mrf.mxu0
    %v1167 = vadd.f32 %v326, %v1166
    %v1168 = vpop.f32.mrf.mxu0
    %v1169 = vadd.f32 %v326, %v1168
    %1170 = vmatmul.bf16.gmra.mxu0 %v187
    %v1171 = vpop.f32.mrf.mxu0
    %v1172 = vadd.f32 %v326, %v1171
    %v1173 = vpop.f32.mrf.mxu0
    %v1174 = vadd.f32 %v326, %v1173
    %1175 = vmatmul.bf16.gmra.mxu0 %v188
    %v1176 = vpop.f32.mrf.mxu0
    %v1177 = vadd.f32 %v326, %v1176
    %v1178 = vpop.f32.mrf.mxu0
    %v1179 = vadd.f32 %v326, %v1178
    %1180 = vmatmul.bf16.gmra.mxu0 %v189
    %v1181 = vpop.f32.mrf.mxu0
    %v1182 = vadd.f32 %v326, %v1181
    %v1183 = vpop.f32.mrf.mxu0
    %v1184 = vadd.f32 %v326, %v1183
    %1185 = vmatmul.bf16.gmra.mxu0 %v190
    %v1186 = vpop.f32.mrf.mxu0
    %v1187 = vadd.f32 %v326, %v1186
    %v1188 = vpop.f32.mrf.mxu0
    %v1189 = vadd.f32 %v326, %v1188
    %1190 = vdwg.mxu0
    %1191 = vmatpush.bf16.msra.mxu0 %v855
    %1192 = vmatpush.bf16.msra.mxu0 %v839
    %1193 = vmatpush.bf16.msra.mxu0 %v823
    %1194 = vmatpush.bf16.msra.mxu0 %v807
    %1195 = vmatpush.bf16.msra.mxu0 %v791
    %1196 = vmatpush.bf16.msra.mxu0 %v775
    %1197 = vmatpush.bf16.msra.mxu0 %v759
    %1198 = vmatpush.bf16.msra.mxu0 %v743
    %1199 = vmatmul.bf16.gmra.mxu0 %v183
    %v1200 = vpop.f32.mrf.mxu0
    %v1201 = vadd.f32 %v327, %v1200
    %v1202 = vpop.f32.mrf.mxu0
    %v1203 = vadd.f32 %v327, %v1202
    %1204 = vmatmul.bf16.gmra.mxu0 %v184
    %v1205 = vpop.f32.mrf.mxu0
    %v1206 = vadd.f32 %v327, %v1205
    %v1207 = vpop.f32.mrf.mxu0
    %v1208 = vadd.f32 %v327, %v1207
    %1209 = vmatmul.bf16.gmra.mxu0 %v185
    %v1210 = vpop.f32.mrf.mxu0
    %v1211 = vadd.f32 %v327, %v1210
    %v1212 = vpop.f32.mrf.mxu0
    %v1213 = vadd.f32 %v327, %v1212
    %1214 = vmatmul.bf16.gmra.mxu0 %v186
    %v1215 = vpop.f32.mrf.mxu0
    %v1216 = vadd.f32 %v327, %v1215
    %v1217 = vpop.f32.mrf.mxu0
    %v1218 = vadd.f32 %v327, %v1217
    %1219 = vmatmul.bf16.gmra.mxu0 %v187
    %v1220 = vpop.f32.mrf.mxu0
    %v1221 = vadd.f32 %v327, %v1220
    %v1222 = vpop.f32.mrf.mxu0
    %v1223 = vadd.f32 %v327, %v1222
    %1224 = vmatmul.bf16.gmra.mxu0 %v188
    %v1225 = vpop.f32.mrf.mxu0
    %v1226 = vadd.f32 %v327, %v1225
    %v1227 = vpop.f32.mrf.mxu0
    %v1228 = vadd.f32 %v327, %v1227
    %1229 = vmatmul.bf16.gmra.mxu0 %v189
    %v1230 = vpop.f32.mrf.mxu0
    %v1231 = vadd.f32 %v327, %v1230
    %v1232 = vpop.f32.mrf.mxu0
    %v1233 = vadd.f32 %v327, %v1232
    %1234 = vmatmul.bf16.gmra.mxu0 %v190
    %v1235 = vpop.f32.mrf.mxu0
    %v1236 = vadd.f32 %v327, %v1235
    %v1237 = vpop.f32.mrf.mxu0
    %v1238 = vadd.f32 %v327, %v1237
    %1239 = vdwg.mxu0
    %1240 = vmatpush.bf16.msra.mxu0 %v856
    %1241 = vmatpush.bf16.msra.mxu0 %v840
    %1242 = vmatpush.bf16.msra.mxu0 %v824
    %1243 = vmatpush.bf16.msra.mxu0 %v808
    %1244 = vmatpush.bf16.msra.mxu0 %v792
    %1245 = vmatpush.bf16.msra.mxu0 %v776
    %1246 = vmatpush.bf16.msra.mxu0 %v760
    %1247 = vmatpush.bf16.msra.mxu0 %v744
    %1248 = vmatmul.bf16.gmra.mxu0 %v183
    %v1249 = vpop.f32.mrf.mxu0
    %v1250 = vadd.f32 %v328, %v1249
    %v1251 = vpop.f32.mrf.mxu0
    %v1252 = vadd.f32 %v328, %v1251
    %1253 = vmatmul.bf16.gmra.mxu0 %v184
    %v1254 = vpop.f32.mrf.mxu0
    %v1255 = vadd.f32 %v328, %v1254
    %v1256 = vpop.f32.mrf.mxu0
    %v1257 = vadd.f32 %v328, %v1256
    %1258 = vmatmul.bf16.gmra.mxu0 %v185
    %v1259 = vpop.f32.mrf.mxu0
    %v1260 = vadd.f32 %v328, %v1259
    %v1261 = vpop.f32.mrf.mxu0
    %v1262 = vadd.f32 %v328, %v1261
    %1263 = vmatmul.bf16.gmra.mxu0 %v186
    %v1264 = vpop.f32.mrf.mxu0
    %v1265 = vadd.f32 %v328, %v1264
    %v1266 = vpop.f32.mrf.mxu0
    %v1267 = vadd.f32 %v328, %v1266
    %1268 = vmatmul.bf16.gmra.mxu0 %v187
    %v1269 = vpop.f32.mrf.mxu0
    %v1270 = vadd.f32 %v328, %v1269
    %v1271 = vpop.f32.mrf.mxu0
    %v1272 = vadd.f32 %v328, %v1271
    %1273 = vmatmul.bf16.gmra.mxu0 %v188
    %v1274 = vpop.f32.mrf.mxu0
    %v1275 = vadd.f32 %v328, %v1274
    %v1276 = vpop.f32.mrf.mxu0
    %v1277 = vadd.f32 %v328, %v1276
    %1278 = vmatmul.bf16.gmra.mxu0 %v189
    %v1279 = vpop.f32.mrf.mxu0
    %v1280 = vadd.f32 %v328, %v1279
    %v1281 = vpop.f32.mrf.mxu0
    %v1282 = vadd.f32 %v328, %v1281
    %1283 = vmatmul.bf16.gmra.mxu0 %v190
    %v1284 = vpop.f32.mrf.mxu0
    %v1285 = vadd.f32 %v328, %v1284
    %v1286 = vpop.f32.mrf.mxu0
    %v1287 = vadd.f32 %v328, %v1286
    %1288 = vdwg.mxu0
    %1289 = vmatpush.bf16.msra.mxu0 %v857
    %1290 = vmatpush.bf16.msra.mxu0 %v841
    %1291 = vmatpush.bf16.msra.mxu0 %v825
    %1292 = vmatpush.bf16.msra.mxu0 %v809
    %1293 = vmatpush.bf16.msra.mxu0 %v793
    %1294 = vmatpush.bf16.msra.mxu0 %v777
    %1295 = vmatpush.bf16.msra.mxu0 %v761
    %1296 = vmatpush.bf16.msra.mxu0 %v745
    %1297 = vmatmul.bf16.gmra.mxu0 %v183
    %v1298 = vpop.f32.mrf.mxu0
    %v1299 = vadd.f32 %v329, %v1298
    %v1300 = vpop.f32.mrf.mxu0
    %v1301 = vadd.f32 %v329, %v1300
    %1302 = vmatmul.bf16.gmra.mxu0 %v184
    %v1303 = vpop.f32.mrf.mxu0
    %v1304 = vadd.f32 %v329, %v1303
    %v1305 = vpop.f32.mrf.mxu0
    %v1306 = vadd.f32 %v329, %v1305
    %1307 = vmatmul.bf16.gmra.mxu0 %v185
    %v1308 = vpop.f32.mrf.mxu0
    %v1309 = vadd.f32 %v329, %v1308
    %v1310 = vpop.f32.mrf.mxu0
    %v1311 = vadd.f32 %v329, %v1310
    %1312 = vmatmul.bf16.gmra.mxu0 %v186
    %v1313 = vpop.f32.mrf.mxu0
    %v1314 = vadd.f32 %v329, %v1313
    %v1315 = vpop.f32.mrf.mxu0
    %v1316 = vadd.f32 %v329, %v1315
    %1317 = vmatmul.bf16.gmra.mxu0 %v187
    %v1318 = vpop.f32.mrf.mxu0
    %v1319 = vadd.f32 %v329, %v1318
    %v1320 = vpop.f32.mrf.mxu0
    %v1321 = vadd.f32 %v329, %v1320
    %1322 = vmatmul.bf16.gmra.mxu0 %v188
    %v1323 = vpop.f32.mrf.mxu0
    %v1324 = vadd.f32 %v329, %v1323
    %v1325 = vpop.f32.mrf.mxu0
    %v1326 = vadd.f32 %v329, %v1325
    %1327 = vmatmul.bf16.gmra.mxu0 %v189
    %v1328 = vpop.f32.mrf.mxu0
    %v1329 = vadd.f32 %v329, %v1328
    %v1330 = vpop.f32.mrf.mxu0
    %v1331 = vadd.f32 %v329, %v1330
    %1332 = vmatmul.bf16.gmra.mxu0 %v190
    %v1333 = vpop.f32.mrf.mxu0
    %v1334 = vadd.f32 %v329, %v1333
    %v1335 = vpop.f32.mrf.mxu0
    %v1336 = vadd.f32 %v329, %v1335
    %1337 = vdwg.mxu0
    %1338 = vmatpush.bf16.msra.mxu0 %v858
    %1339 = vmatpush.bf16.msra.mxu0 %v842
    %1340 = vmatpush.bf16.msra.mxu0 %v826
    %1341 = vmatpush.bf16.msra.mxu0 %v810
    %1342 = vmatpush.bf16.msra.mxu0 %v794
    %1343 = vmatpush.bf16.msra.mxu0 %v778
    %1344 = vmatpush.bf16.msra.mxu0 %v762
    %1345 = vmatpush.bf16.msra.mxu0 %v746
    %1346 = vmatmul.bf16.gmra.mxu0 %v183
    %v1347 = vpop.f32.mrf.mxu0
    %v1348 = vadd.f32 %v330, %v1347
    %v1349 = vpop.f32.mrf.mxu0
    %v1350 = vadd.f32 %v330, %v1349
    %1351 = vmatmul.bf16.gmra.mxu0 %v184
    %v1352 = vpop.f32.mrf.mxu0
    %v1353 = vadd.f32 %v330, %v1352
    %v1354 = vpop.f32.mrf.mxu0
    %v1355 = vadd.f32 %v330, %v1354
    %1356 = vmatmul.bf16.gmra.mxu0 %v185
    %v1357 = vpop.f32.mrf.mxu0
    %v1358 = vadd.f32 %v330, %v1357
    %v1359 = vpop.f32.mrf.mxu0
    %v1360 = vadd.f32 %v330, %v1359
    %1361 = vmatmul.bf16.gmra.mxu0 %v186
    %v1362 = vpop.f32.mrf.mxu0
    %v1363 = vadd.f32 %v330, %v1362
    %v1364 = vpop.f32.mrf.mxu0
    %v1365 = vadd.f32 %v330, %v1364
    %1366 = vmatmul.bf16.gmra.mxu0 %v187
    %v1367 = vpop.f32.mrf.mxu0
    %v1368 = vadd.f32 %v330, %v1367
    %v1369 = vpop.f32.mrf.mxu0
    %v1370 = vadd.f32 %v330, %v1369
    %1371 = vmatmul.bf16.gmra.mxu0 %v188
    %v1372 = vpop.f32.mrf.mxu0
    %v1373 = vadd.f32 %v330, %v1372
    %v1374 = vpop.f32.mrf.mxu0
    %v1375 = vadd.f32 %v330, %v1374
    %1376 = vmatmul.bf16.gmra.mxu0 %v189
    %v1377 = vpop.f32.mrf.mxu0
    %v1378 = vadd.f32 %v330, %v1377
    %v1379 = vpop.f32.mrf.mxu0
    %v1380 = vadd.f32 %v330, %v1379
    %1381 = vmatmul.bf16.gmra.mxu0 %v190
    %v1382 = vpop.f32.mrf.mxu0
    %v1383 = vadd.f32 %v330, %v1382
    %v1384 = vpop.f32.mrf.mxu0
    %v1385 = vadd.f32 %v330, %v1384
    %1386 = vdwg.mxu0
    %1387 = vmatpush.bf16.msra.mxu0 %v859
    %1388 = vmatpush.bf16.msra.mxu0 %v843
    %1389 = vmatpush.bf16.msra.mxu0 %v827
    %1390 = vmatpush.bf16.msra.mxu0 %v811
    %1391 = vmatpush.bf16.msra.mxu0 %v795
    %1392 = vmatpush.bf16.msra.mxu0 %v779
    %1393 = vmatpush.bf16.msra.mxu0 %v763
    %1394 = vmatpush.bf16.msra.mxu0 %v747
    %1395 = vmatmul.bf16.gmra.mxu0 %v183
    %v1396 = vpop.f32.mrf.mxu0
    %v1397 = vadd.f32 %v331, %v1396
    %v1398 = vpop.f32.mrf.mxu0
    %v1399 = vadd.f32 %v331, %v1398
    %1400 = vmatmul.bf16.gmra.mxu0 %v184
    %v1401 = vpop.f32.mrf.mxu0
    %v1402 = vadd.f32 %v331, %v1401
    %v1403 = vpop.f32.mrf.mxu0
    %v1404 = vadd.f32 %v331, %v1403
    %1405 = vmatmul.bf16.gmra.mxu0 %v185
    %v1406 = vpop.f32.mrf.mxu0
    %v1407 = vadd.f32 %v331, %v1406
    %v1408 = vpop.f32.mrf.mxu0
    %v1409 = vadd.f32 %v331, %v1408
    %1410 = vmatmul.bf16.gmra.mxu0 %v186
    %v1411 = vpop.f32.mrf.mxu0
    %v1412 = vadd.f32 %v331, %v1411
    %v1413 = vpop.f32.mrf.mxu0
    %v1414 = vadd.f32 %v331, %v1413
    %1415 = vmatmul.bf16.gmra.mxu0 %v187
    %v1416 = vpop.f32.mrf.mxu0
    %v1417 = vadd.f32 %v331, %v1416
    %v1418 = vpop.f32.mrf.mxu0
    %v1419 = vadd.f32 %v331, %v1418
    %1420 = vmatmul.bf16.gmra.mxu0 %v188
    %v1421 = vpop.f32.mrf.mxu0
    %v1422 = vadd.f32 %v331, %v1421
    %v1423 = vpop.f32.mrf.mxu0
    %v1424 = vadd.f32 %v331, %v1423
    %1425 = vmatmul.bf16.gmra.mxu0 %v189
    %v1426 = vpop.f32.mrf.mxu0
    %v1427 = vadd.f32 %v331, %v1426
    %v1428 = vpop.f32.mrf.mxu0
    %v1429 = vadd.f32 %v331, %v1428
    %1430 = vmatmul.bf16.gmra.mxu0 %v190
    %v1431 = vpop.f32.mrf.mxu0
    %v1432 = vadd.f32 %v331, %v1431
    %v1433 = vpop.f32.mrf.mxu0
    %v1434 = vadd.f32 %v331, %v1433
    %1435 = vdwg.mxu0
    %1436 = vmatpush.bf16.msra.mxu0 %v860
    %1437 = vmatpush.bf16.msra.mxu0 %v844
    %1438 = vmatpush.bf16.msra.mxu0 %v828
    %1439 = vmatpush.bf16.msra.mxu0 %v812
    %1440 = vmatpush.bf16.msra.mxu0 %v796
    %1441 = vmatpush.bf16.msra.mxu0 %v780
    %1442 = vmatpush.bf16.msra.mxu0 %v764
    %1443 = vmatpush.bf16.msra.mxu0 %v748
    %1444 = vmatmul.bf16.gmra.mxu0 %v183
    %v1445 = vpop.f32.mrf.mxu0
    %v1446 = vadd.f32 %v332, %v1445
    %v1447 = vpop.f32.mrf.mxu0
    %v1448 = vadd.f32 %v332, %v1447
    %1449 = vmatmul.bf16.gmra.mxu0 %v184
    %v1450 = vpop.f32.mrf.mxu0
    %v1451 = vadd.f32 %v332, %v1450
    %v1452 = vpop.f32.mrf.mxu0
    %v1453 = vadd.f32 %v332, %v1452
    %1454 = vmatmul.bf16.gmra.mxu0 %v185
    %v1455 = vpop.f32.mrf.mxu0
    %v1456 = vadd.f32 %v332, %v1455
    %v1457 = vpop.f32.mrf.mxu0
    %v1458 = vadd.f32 %v332, %v1457
    %1459 = vmatmul.bf16.gmra.mxu0 %v186
    %v1460 = vpop.f32.mrf.mxu0
    %v1461 = vadd.f32 %v332, %v1460
    %v1462 = vpop.f32.mrf.mxu0
    %v1463 = vadd.f32 %v332, %v1462
    %1464 = vmatmul.bf16.gmra.mxu0 %v187
    %v1465 = vpop.f32.mrf.mxu0
    %v1466 = vadd.f32 %v332, %v1465
    %v1467 = vpop.f32.mrf.mxu0
    %v1468 = vadd.f32 %v332, %v1467
    %1469 = vmatmul.bf16.gmra.mxu0 %v188
    %v1470 = vpop.f32.mrf.mxu0
    %v1471 = vadd.f32 %v332, %v1470
    %v1472 = vpop.f32.mrf.mxu0
    %v1473 = vadd.f32 %v332, %v1472
    %1474 = vmatmul.bf16.gmra.mxu0 %v189
    %v1475 = vpop.f32.mrf.mxu0
    %v1476 = vadd.f32 %v332, %v1475
    %v1477 = vpop.f32.mrf.mxu0
    %v1478 = vadd.f32 %v332, %v1477
    %1479 = vmatmul.bf16.gmra.mxu0 %v190
    %v1480 = vpop.f32.mrf.mxu0
    %v1481 = vadd.f32 %v332, %v1480
    %v1482 = vpop.f32.mrf.mxu0
    %v1483 = vadd.f32 %v332, %v1482
    %1484 = vdwg.mxu0
    %1485 = vmatpush.bf16.msra.mxu0 %v861
    %1486 = vmatpush.bf16.msra.mxu0 %v845
    %1487 = vmatpush.bf16.msra.mxu0 %v829
    %1488 = vmatpush.bf16.msra.mxu0 %v813
    %1489 = vmatpush.bf16.msra.mxu0 %v797
    %1490 = vmatpush.bf16.msra.mxu0 %v781
    %1491 = vmatpush.bf16.msra.mxu0 %v765
    %1492 = vmatpush.bf16.msra.mxu0 %v749
    %1493 = vmatmul.bf16.gmra.mxu0 %v183
    %v1494 = vpop.f32.mrf.mxu0
    %v1495 = vadd.f32 %v333, %v1494
    %v1496 = vpop.f32.mrf.mxu0
    %v1497 = vadd.f32 %v333, %v1496
    %1498 = vmatmul.bf16.gmra.mxu0 %v184
    %v1499 = vpop.f32.mrf.mxu0
    %v1500 = vadd.f32 %v333, %v1499
    %v1501 = vpop.f32.mrf.mxu0
    %v1502 = vadd.f32 %v333, %v1501
    %1503 = vmatmul.bf16.gmra.mxu0 %v185
    %v1504 = vpop.f32.mrf.mxu0
    %v1505 = vadd.f32 %v333, %v1504
    %v1506 = vpop.f32.mrf.mxu0
    %v1507 = vadd.f32 %v333, %v1506
    %1508 = vmatmul.bf16.gmra.mxu0 %v186
    %v1509 = vpop.f32.mrf.mxu0
    %v1510 = vadd.f32 %v333, %v1509
    %v1511 = vpop.f32.mrf.mxu0
    %v1512 = vadd.f32 %v333, %v1511
    %1513 = vmatmul.bf16.gmra.mxu0 %v187
    %v1514 = vpop.f32.mrf.mxu0
    %v1515 = vadd.f32 %v333, %v1514
    %v1516 = vpop.f32.mrf.mxu0
    %v1517 = vadd.f32 %v333, %v1516
    %1518 = vmatmul.bf16.gmra.mxu0 %v188
    %v1519 = vpop.f32.mrf.mxu0
    %v1520 = vadd.f32 %v333, %v1519
    %v1521 = vpop.f32.mrf.mxu0
    %v1522 = vadd.f32 %v333, %v1521
    %1523 = vmatmul.bf16.gmra.mxu0 %v189
    %v1524 = vpop.f32.mrf.mxu0
    %v1525 = vadd.f32 %v333, %v1524
    %v1526 = vpop.f32.mrf.mxu0
    %v1527 = vadd.f32 %v333, %v1526
    %1528 = vmatmul.bf16.gmra.mxu0 %v190
    %v1529 = vpop.f32.mrf.mxu0
    %v1530 = vadd.f32 %v333, %v1529
    %v1531 = vpop.f32.mrf.mxu0
    %v1532 = vadd.f32 %v333, %v1531
    %1533 = vdwg.mxu0
    %1534 = vmatpush.bf16.msra.mxu0 %v862
    %1535 = vmatpush.bf16.msra.mxu0 %v846
    %1536 = vmatpush.bf16.msra.mxu0 %v830
    %1537 = vmatpush.bf16.msra.mxu0 %v814
    %1538 = vmatpush.bf16.msra.mxu0 %v798
    %1539 = vmatpush.bf16.msra.mxu0 %v782
    %1540 = vmatpush.bf16.msra.mxu0 %v766
    %1541 = vmatpush.bf16.msra.mxu0 %v750
    %1542 = vmatmul.bf16.gmra.mxu0 %v183
    %v1543 = vpop.f32.mrf.mxu0
    %v1544 = vadd.f32 %v334, %v1543
    %v1545 = vpop.f32.mrf.mxu0
    %v1546 = vadd.f32 %v334, %v1545
    %1547 = vmatmul.bf16.gmra.mxu0 %v184
    %v1548 = vpop.f32.mrf.mxu0
    %v1549 = vadd.f32 %v334, %v1548
    %v1550 = vpop.f32.mrf.mxu0
    %v1551 = vadd.f32 %v334, %v1550
    %1552 = vmatmul.bf16.gmra.mxu0 %v185
    %v1553 = vpop.f32.mrf.mxu0
    %v1554 = vadd.f32 %v334, %v1553
    %v1555 = vpop.f32.mrf.mxu0
    %v1556 = vadd.f32 %v334, %v1555
    %1557 = vmatmul.bf16.gmra.mxu0 %v186
    %v1558 = vpop.f32.mrf.mxu0
    %v1559 = vadd.f32 %v334, %v1558
    %v1560 = vpop.f32.mrf.mxu0
    %v1561 = vadd.f32 %v334, %v1560
    %1562 = vmatmul.bf16.gmra.mxu0 %v187
    %v1563 = vpop.f32.mrf.mxu0
    %v1564 = vadd.f32 %v334, %v1563
    %v1565 = vpop.f32.mrf.mxu0
    %v1566 = vadd.f32 %v334, %v1565
    %1567 = vmatmul.bf16.gmra.mxu0 %v188
    %v1568 = vpop.f32.mrf.mxu0
    %v1569 = vadd.f32 %v334, %v1568
    %v1570 = vpop.f32.mrf.mxu0
    %v1571 = vadd.f32 %v334, %v1570
    %1572 = vmatmul.bf16.gmra.mxu0 %v189
    %v1573 = vpop.f32.mrf.mxu0
    %v1574 = vadd.f32 %v334, %v1573
    %v1575 = vpop.f32.mrf.mxu0
    %v1576 = vadd.f32 %v334, %v1575
    %1577 = vmatmul.bf16.gmra.mxu0 %v190
    %v1578 = vpop.f32.mrf.mxu0
    %v1579 = vadd.f32 %v334, %v1578
    %v1580 = vpop.f32.mrf.mxu0
    %v1581 = vadd.f32 %v334, %v1580
    %1582 = vdwg.mxu0
    %1583 = vmatpush.bf16.msra.mxu0 %v863
    %1584 = vmatpush.bf16.msra.mxu0 %v847
    %1585 = vmatpush.bf16.msra.mxu0 %v831
    %1586 = vmatpush.bf16.msra.mxu0 %v815
    %1587 = vmatpush.bf16.msra.mxu0 %v799
    %1588 = vmatpush.bf16.msra.mxu0 %v783
    %1589 = vmatpush.bf16.msra.mxu0 %v767
    %1590 = vmatpush.bf16.msra.mxu0 %v751
    %1591 = vmatmul.bf16.gmra.mxu0 %v183
    %v1592 = vpop.f32.mrf.mxu0
    %v1593 = vadd.f32 %v335, %v1592
    %v1594 = vpop.f32.mrf.mxu0
    %v1595 = vadd.f32 %v335, %v1594
    %1596 = vmatmul.bf16.gmra.mxu0 %v184
    %v1597 = vpop.f32.mrf.mxu0
    %v1598 = vadd.f32 %v335, %v1597
    %v1599 = vpop.f32.mrf.mxu0
    %v1600 = vadd.f32 %v335, %v1599
    %1601 = vmatmul.bf16.gmra.mxu0 %v185
    %v1602 = vpop.f32.mrf.mxu0
    %v1603 = vadd.f32 %v335, %v1602
    %v1604 = vpop.f32.mrf.mxu0
    %v1605 = vadd.f32 %v335, %v1604
    %1606 = vmatmul.bf16.gmra.mxu0 %v186
    %v1607 = vpop.f32.mrf.mxu0
    %v1608 = vadd.f32 %v335, %v1607
    %v1609 = vpop.f32.mrf.mxu0
    %v1610 = vadd.f32 %v335, %v1609
    %1611 = vmatmul.bf16.gmra.mxu0 %v187
    %v1612 = vpop.f32.mrf.mxu0
    %v1613 = vadd.f32 %v335, %v1612
    %v1614 = vpop.f32.mrf.mxu0
    %v1615 = vadd.f32 %v335, %v1614
    %1616 = vmatmul.bf16.gmra.mxu0 %v188
    %v1617 = vpop.f32.mrf.mxu0
    %v1618 = vadd.f32 %v335, %v1617
    %v1619 = vpop.f32.mrf.mxu0
    %v1620 = vadd.f32 %v335, %v1619
    %1621 = vmatmul.bf16.gmra.mxu0 %v189
    %v1622 = vpop.f32.mrf.mxu0
    %v1623 = vadd.f32 %v335, %v1622
    %v1624 = vpop.f32.mrf.mxu0
    %v1625 = vadd.f32 %v335, %v1624
    %1626 = vmatmul.bf16.gmra.mxu0 %v190
    %v1627 = vpop.f32.mrf.mxu0
    %v1628 = vadd.f32 %v335, %v1627
    %v1629 = vpop.f32.mrf.mxu0
    %v1630 = vadd.f32 %v335, %v1629
    %1631 = vdwg.mxu0
    %1632 = vmatpush.bf16.msra.mxu0 %v864
    %1633 = vmatpush.bf16.msra.mxu0 %v848
    %1634 = vmatpush.bf16.msra.mxu0 %v832
    %1635 = vmatpush.bf16.msra.mxu0 %v816
    %1636 = vmatpush.bf16.msra.mxu0 %v800
    %1637 = vmatpush.bf16.msra.mxu0 %v784
    %1638 = vmatpush.bf16.msra.mxu0 %v768
    %1639 = vmatpush.bf16.msra.mxu0 %v752
    %1640 = vmatmul.bf16.gmra.mxu0 %v183
    %v1641 = vpop.f32.mrf.mxu0
    %v1642 = vadd.f32 %v336, %v1641
    %v1643 = vpop.f32.mrf.mxu0
    %v1644 = vadd.f32 %v336, %v1643
    %1645 = vmatmul.bf16.gmra.mxu0 %v184
    %v1646 = vpop.f32.mrf.mxu0
    %v1647 = vadd.f32 %v336, %v1646
    %v1648 = vpop.f32.mrf.mxu0
    %v1649 = vadd.f32 %v336, %v1648
    %1650 = vmatmul.bf16.gmra.mxu0 %v185
    %v1651 = vpop.f32.mrf.mxu0
    %v1652 = vadd.f32 %v336, %v1651
    %v1653 = vpop.f32.mrf.mxu0
    %v1654 = vadd.f32 %v336, %v1653
    %1655 = vmatmul.bf16.gmra.mxu0 %v186
    %v1656 = vpop.f32.mrf.mxu0
    %v1657 = vadd.f32 %v336, %v1656
    %v1658 = vpop.f32.mrf.mxu0
    %v1659 = vadd.f32 %v336, %v1658
    %1660 = vmatmul.bf16.gmra.mxu0 %v187
    %v1661 = vpop.f32.mrf.mxu0
    %v1662 = vadd.f32 %v336, %v1661
    %v1663 = vpop.f32.mrf.mxu0
    %v1664 = vadd.f32 %v336, %v1663
    %1665 = vmatmul.bf16.gmra.mxu0 %v188
    %v1666 = vpop.f32.mrf.mxu0
    %v1667 = vadd.f32 %v336, %v1666
    %v1668 = vpop.f32.mrf.mxu0
    %v1669 = vadd.f32 %v336, %v1668
    %1670 = vmatmul.bf16.gmra.mxu0 %v189
    %v1671 = vpop.f32.mrf.mxu0
    %v1672 = vadd.f32 %v336, %v1671
    %v1673 = vpop.f32.mrf.mxu0
    %v1674 = vadd.f32 %v336, %v1673
    %1675 = vmatmul.bf16.gmra.mxu0 %v190
    %v1676 = vpop.f32.mrf.mxu0
    %v1677 = vadd.f32 %v336, %v1676
    %v1678 = vpop.f32.mrf.mxu0
    %v1679 = vadd.f32 %v336, %v1678
    %1680 = vdwg.mxu0
    %1681 = vmatpush.bf16.msra.mxu0 %v865
    %1682 = vmatpush.bf16.msra.mxu0 %v849
    %1683 = vmatpush.bf16.msra.mxu0 %v833
    %1684 = vmatpush.bf16.msra.mxu0 %v817
    %1685 = vmatpush.bf16.msra.mxu0 %v801
    %1686 = vmatpush.bf16.msra.mxu0 %v785
    %1687 = vmatpush.bf16.msra.mxu0 %v769
    %1688 = vmatpush.bf16.msra.mxu0 %v753
    %1689 = vmatmul.bf16.gmra.mxu0 %v183
    %v1690 = vpop.f32.mrf.mxu0
    %v1691 = vadd.f32 %v337, %v1690
    %v1692 = vpop.f32.mrf.mxu0
    %v1693 = vadd.f32 %v337, %v1692
    %1694 = vmatmul.bf16.gmra.mxu0 %v184
    %v1695 = vpop.f32.mrf.mxu0
    %v1696 = vadd.f32 %v337, %v1695
    %v1697 = vpop.f32.mrf.mxu0
    %v1698 = vadd.f32 %v337, %v1697
    %1699 = vmatmul.bf16.gmra.mxu0 %v185
    %v1700 = vpop.f32.mrf.mxu0
    %v1701 = vadd.f32 %v337, %v1700
    %v1702 = vpop.f32.mrf.mxu0
    %v1703 = vadd.f32 %v337, %v1702
    %1704 = vmatmul.bf16.gmra.mxu0 %v186
    %v1705 = vpop.f32.mrf.mxu0
    %v1706 = vadd.f32 %v337, %v1705
    %v1707 = vpop.f32.mrf.mxu0
    %v1708 = vadd.f32 %v337, %v1707
    %1709 = vmatmul.bf16.gmra.mxu0 %v187
    %v1710 = vpop.f32.mrf.mxu0
    %v1711 = vadd.f32 %v337, %v1710
    %v1712 = vpop.f32.mrf.mxu0
    %v1713 = vadd.f32 %v337, %v1712
    %1714 = vmatmul.bf16.gmra.mxu0 %v188
    %v1715 = vpop.f32.mrf.mxu0
    %v1716 = vadd.f32 %v337, %v1715
    %v1717 = vpop.f32.mrf.mxu0
    %v1718 = vadd.f32 %v337, %v1717
    %1719 = vmatmul.bf16.gmra.mxu0 %v189
    %v1720 = vpop.f32.mrf.mxu0
    %v1721 = vadd.f32 %v337, %v1720
    %v1722 = vpop.f32.mrf.mxu0
    %v1723 = vadd.f32 %v337, %v1722
    %1724 = vmatmul.bf16.gmra.mxu0 %v190
    %v1725 = vpop.f32.mrf.mxu0
    %v1726 = vadd.f32 %v337, %v1725
    %v1727 = vpop.f32.mrf.mxu0
    %v1728 = vadd.f32 %v337, %v1727
    %1729 = vdwg.mxu0
    %1730 = vmatpush.bf16.msra.mxu0 %v866
    %1731 = vmatpush.bf16.msra.mxu0 %v850
    %1732 = vmatpush.bf16.msra.mxu0 %v834
    %1733 = vmatpush.bf16.msra.mxu0 %v818
    %1734 = vmatpush.bf16.msra.mxu0 %v802
    %1735 = vmatpush.bf16.msra.mxu0 %v786
    %1736 = vmatpush.bf16.msra.mxu0 %v770
    %1737 = vmatpush.bf16.msra.mxu0 %v754
    %1738 = vmatmul.bf16.gmra.mxu0 %v183
    %v1739 = vpop.f32.mrf.mxu0
    %v1740 = vadd.f32 %v338, %v1739
    %v1741 = vpop.f32.mrf.mxu0
    %v1742 = vadd.f32 %v338, %v1741
    %1743 = vmatmul.bf16.gmra.mxu0 %v184
    %v1744 = vpop.f32.mrf.mxu0
    %v1745 = vadd.f32 %v338, %v1744
    %v1746 = vpop.f32.mrf.mxu0
    %v1747 = vadd.f32 %v338, %v1746
    %1748 = vmatmul.bf16.gmra.mxu0 %v185
    %v1749 = vpop.f32.mrf.mxu0
    %v1750 = vadd.f32 %v338, %v1749
    %v1751 = vpop.f32.mrf.mxu0
    %v1752 = vadd.f32 %v338, %v1751
    %1753 = vmatmul.bf16.gmra.mxu0 %v186
    %v1754 = vpop.f32.mrf.mxu0
    %v1755 = vadd.f32 %v338, %v1754
    %v1756 = vpop.f32.mrf.mxu0
    %v1757 = vadd.f32 %v338, %v1756
    %1758 = vmatmul.bf16.gmra.mxu0 %v187
    %v1759 = vpop.f32.mrf.mxu0
    %v1760 = vadd.f32 %v338, %v1759
    %v1761 = vpop.f32.mrf.mxu0
    %v1762 = vadd.f32 %v338, %v1761
    %1763 = vmatmul.bf16.gmra.mxu0 %v188
    %v1764 = vpop.f32.mrf.mxu0
    %v1765 = vadd.f32 %v338, %v1764
    %v1766 = vpop.f32.mrf.mxu0
    %v1767 = vadd.f32 %v338, %v1766
    %1768 = vmatmul.bf16.gmra.mxu0 %v189
    %v1769 = vpop.f32.mrf.mxu0
    %v1770 = vadd.f32 %v338, %v1769
    %v1771 = vpop.f32.mrf.mxu0
    %v1772 = vadd.f32 %v338, %v1771
    %1773 = vmatmul.bf16.gmra.mxu0 %v190
    %v1774 = vpop.f32.mrf.mxu0
    %v1775 = vadd.f32 %v338, %v1774
    %v1776 = vpop.f32.mrf.mxu0
    %v1777 = vadd.f32 %v338, %v1776
    %1778 = vdwg.mxu0
    %1779 = vst [vmem:[#allocation2] sm:$0xff] %v1005
    %1780 = vst [vmem:[#allocation2 + $0x8] sm:$0xff] %v1054
    %1781 = vst [vmem:[#allocation2 + $0x10] sm:$0xff] %v1103
    %1782 = vst [vmem:[#allocation2 + $0x18] sm:$0xff] %v1152
    %1783 = vst [vmem:[#allocation2 + $0x20] sm:$0xff] %v1201
    %1784 = vst [vmem:[#allocation2 + $0x28] sm:$0xff] %v1250
    %1785 = vst [vmem:[#allocation2 + $0x30] sm:$0xff] %v1299
    %1786 = vst [vmem:[#allocation2 + $0x38] sm:$0xff] %v1348
    %1787 = vst [vmem:[#allocation2 + $0x40] sm:$0xff] %v1397
    %1788 = vst [vmem:[#allocation2 + $0x48] sm:$0xff] %v1446
    %1789 = vst [vmem:[#allocation2 + $0x50] sm:$0xff] %v1495
    %1790 = vst [vmem:[#allocation2 + $0x58] sm:$0xff] %v1544
    %1791 = vst [vmem:[#allocation2 + $0x60] sm:$0xff] %v1593
    %1792 = vst [vmem:[#allocation2 + $0x68] sm:$0xff] %v1642
    %1793 = vst [vmem:[#allocation2 + $0x70] sm:$0xff] %v1691
    %1794 = vst [vmem:[#allocation2 + $0x78] sm:$0xff] %v1740
    %1795 = vst [vmem:[#allocation2 + $0x80] sm:$0xff] %v1007
    %1796 = vst [vmem:[#allocation2 + $0x88] sm:$0xff] %v1056
    %1797 = vst [vmem:[#allocation2 + $0x90] sm:$0xff] %v1105
    %1798 = vst [vmem:[#allocation2 + $0x98] sm:$0xff] %v1154
    %1799 = vst [vmem:[#allocation2 + $0xa0] sm:$0xff] %v1203
    %1800 = vst [vmem:[#allocation2 + $0xa8] sm:$0xff] %v1252
    %1801 = vst [vmem:[#allocation2 + $0xb0] sm:$0xff] %v1301
    %1802 = vst [vmem:[#allocation2 + $0xb8] sm:$0xff] %v1350
    %1803 = vst [vmem:[#allocation2 + $0xc0] sm:$0xff] %v1399
    %1804 = vst [vmem:[#allocation2 + $0xc8] sm:$0xff] %v1448
    %1805 = vst [vmem:[#allocation2 + $0xd0] sm:$0xff] %v1497
    %1806 = vst [vmem:[#allocation2 + $0xd8] sm:$0xff] %v1546
    %1807 = vst [vmem:[#allocation2 + $0xe0] sm:$0xff] %v1595
    %1808 = vst [vmem:[#allocation2 + $0xe8] sm:$0xff] %v1644
    %1809 = vst [vmem:[#allocation2 + $0xf0] sm:$0xff] %v1693
    %1810 = vst [vmem:[#allocation2 + $0xf8] sm:$0xff] %v1742
    %1811 = vst [vmem:[#allocation2 + $0x100] sm:$0xff] %v1010
    %1812 = vst [vmem:[#allocation2 + $0x108] sm:$0xff] %v1059
    %1813 = vst [vmem:[#allocation2 + $0x110] sm:$0xff] %v1108
    %1814 = vst [vmem:[#allocation2 + $0x118] sm:$0xff] %v1157
    %1815 = vst [vmem:[#allocation2 + $0x120] sm:$0xff] %v1206
    %1816 = vst [vmem:[#allocation2 + $0x128] sm:$0xff] %v1255
    %1817 = vst [vmem:[#allocation2 + $0x130] sm:$0xff] %v1304
    %1818 = vst [vmem:[#allocation2 + $0x138] sm:$0xff] %v1353
    %1819 = vst [vmem:[#allocation2 + $0x140] sm:$0xff] %v1402
    %1820 = vst [vmem:[#allocation2 + $0x148] sm:$0xff] %v1451
    %1821 = vst [vmem:[#allocation2 + $0x150] sm:$0xff] %v1500
    %1822 = vst [vmem:[#allocation2 + $0x158] sm:$0xff] %v1549
    %1823 = vst [vmem:[#allocation2 + $0x160] sm:$0xff] %v1598
    %1824 = vst [vmem:[#allocation2 + $0x168] sm:$0xff] %v1647
    %1825 = vst [vmem:[#allocation2 + $0x170] sm:$0xff] %v1696
    %1826 = vst [vmem:[#allocation2 + $0x178] sm:$0xff] %v1745
    %1827 = vst [vmem:[#allocation2 + $0x180] sm:$0xff] %v1012
    %1828 = vst [vmem:[#allocation2 + $0x188] sm:$0xff] %v1061
    %1829 = vst [vmem:[#allocation2 + $0x190] sm:$0xff] %v1110
    %1830 = vst [vmem:[#allocation2 + $0x198] sm:$0xff] %v1159
    %1831 = vst [vmem:[#allocation2 + $0x1a0] sm:$0xff] %v1208
    %1832 = vst [vmem:[#allocation2 + $0x1a8] sm:$0xff] %v1257
    %1833 = vst [vmem:[#allocation2 + $0x1b0] sm:$0xff] %v1306
    %1834 = vst [vmem:[#allocation2 + $0x1b8] sm:$0xff] %v1355
    %1835 = vst [vmem:[#allocation2 + $0x1c0] sm:$0xff] %v1404
    %1836 = vst [vmem:[#allocation2 + $0x1c8] sm:$0xff] %v1453
    %1837 = vst [vmem:[#allocation2 + $0x1d0] sm:$0xff] %v1502
    %1838 = vst [vmem:[#allocation2 + $0x1d8] sm:$0xff] %v1551
    %1839 = vst [vmem:[#allocation2 + $0x1e0] sm:$0xff] %v1600
    %1840 = vst [vmem:[#allocation2 + $0x1e8] sm:$0xff] %v1649
    %1841 = vst [vmem:[#allocation2 + $0x1f0] sm:$0xff] %v1698
    %1842 = vst [vmem:[#allocation2 + $0x1f8] sm:$0xff] %v1747
    %1843 = vst [vmem:[#allocation2 + $0x200] sm:$0xff] %v1015
    %1844 = vst [vmem:[#allocation2 + $0x208] sm:$0xff] %v1064
    %1845 = vst [vmem:[#allocation2 + $0x210] sm:$0xff] %v1113
    %1846 = vst [vmem:[#allocation2 + $0x218] sm:$0xff] %v1162
    %1847 = vst [vmem:[#allocation2 + $0x220] sm:$0xff] %v1211
    %1848 = vst [vmem:[#allocation2 + $0x228] sm:$0xff] %v1260
    %1849 = vst [vmem:[#allocation2 + $0x230] sm:$0xff] %v1309
    %1850 = vst [vmem:[#allocation2 + $0x238] sm:$0xff] %v1358
    %1851 = vst [vmem:[#allocation2 + $0x240] sm:$0xff] %v1407
    %1852 = vst [vmem:[#allocation2 + $0x248] sm:$0xff] %v1456
    %1853 = vst [vmem:[#allocation2 + $0x250] sm:$0xff] %v1505
    %1854 = vst [vmem:[#allocation2 + $0x258] sm:$0xff] %v1554
    %1855 = vst [vmem:[#allocation2 + $0x260] sm:$0xff] %v1603
    %1856 = vst [vmem:[#allocation2 + $0x268] sm:$0xff] %v1652
    %1857 = vst [vmem:[#allocation2 + $0x270] sm:$0xff] %v1701
    %1858 = vst [vmem:[#allocation2 + $0x278] sm:$0xff] %v1750
    %1859 = vst [vmem:[#allocation2 + $0x280] sm:$0xff] %v1017
    %1860 = vst [vmem:[#allocation2 + $0x288] sm:$0xff] %v1066
    %1861 = vst [vmem:[#allocation2 + $0x290] sm:$0xff] %v1115
    %1862 = vst [vmem:[#allocation2 + $0x298] sm:$0xff] %v1164
    %1863 = vst [vmem:[#allocation2 + $0x2a0] sm:$0xff] %v1213
    %1864 = vst [vmem:[#allocation2 + $0x2a8] sm:$0xff] %v1262
    %1865 = vst [vmem:[#allocation2 + $0x2b0] sm:$0xff] %v1311
    %1866 = vst [vmem:[#allocation2 + $0x2b8] sm:$0xff] %v1360
    %1867 = vst [vmem:[#allocation2 + $0x2c0] sm:$0xff] %v1409
    %1868 = vst [vmem:[#allocation2 + $0x2c8] sm:$0xff] %v1458
    %1869 = vst [vmem:[#allocation2 + $0x2d0] sm:$0xff] %v1507
    %1870 = vst [vmem:[#allocation2 + $0x2d8] sm:$0xff] %v1556
    %1871 = vst [vmem:[#allocation2 + $0x2e0] sm:$0xff] %v1605
    %1872 = vst [vmem:[#allocation2 + $0x2e8] sm:$0xff] %v1654
    %1873 = vst [vmem:[#allocation2 + $0x2f0] sm:$0xff] %v1703
    %1874 = vst [vmem:[#allocation2 + $0x2f8] sm:$0xff] %v1752
    %1875 = vst [vmem:[#allocation2 + $0x300] sm:$0xff] %v1020
    %1876 = vst [vmem:[#allocation2 + $0x308] sm:$0xff] %v1069
    %1877 = vst [vmem:[#allocation2 + $0x310] sm:$0xff] %v1118
    %1878 = vst [vmem:[#allocation2 + $0x318] sm:$0xff] %v1167
    %1879 = vst [vmem:[#allocation2 + $0x320] sm:$0xff] %v1216
    %1880 = vst [vmem:[#allocation2 + $0x328] sm:$0xff] %v1265
    %1881 = vst [vmem:[#allocation2 + $0x330] sm:$0xff] %v1314
    %1882 = vst [vmem:[#allocation2 + $0x338] sm:$0xff] %v1363
    %1883 = vst [vmem:[#allocation2 + $0x340] sm:$0xff] %v1412
    %1884 = vst [vmem:[#allocation2 + $0x348] sm:$0xff] %v1461
    %1885 = vst [vmem:[#allocation2 + $0x350] sm:$0xff] %v1510
    %1886 = vst [vmem:[#allocation2 + $0x358] sm:$0xff] %v1559
    %1887 = vst [vmem:[#allocation2 + $0x360] sm:$0xff] %v1608
    %1888 = vst [vmem:[#allocation2 + $0x368] sm:$0xff] %v1657
    %1889 = vst [vmem:[#allocation2 + $0x370] sm:$0xff] %v1706
    %1890 = vst [vmem:[#allocation2 + $0x378] sm:$0xff] %v1755
    %1891 = vst [vmem:[#allocation2 + $0x380] sm:$0xff] %v1022
    %1892 = vst [vmem:[#allocation2 + $0x388] sm:$0xff] %v1071
    %1893 = vst [vmem:[#allocation2 + $0x390] sm:$0xff] %v1120
    %1894 = vst [vmem:[#allocation2 + $0x398] sm:$0xff] %v1169
    %1895 = vst [vmem:[#allocation2 + $0x3a0] sm:$0xff] %v1218
    %1896 = vst [vmem:[#allocation2 + $0x3a8] sm:$0xff] %v1267
    %1897 = vst [vmem:[#allocation2 + $0x3b0] sm:$0xff] %v1316
    %1898 = vst [vmem:[#allocation2 + $0x3b8] sm:$0xff] %v1365
    %1899 = vst [vmem:[#allocation2 + $0x3c0] sm:$0xff] %v1414
    %1900 = vst [vmem:[#allocation2 + $0x3c8] sm:$0xff] %v1463
    %1901 = vst [vmem:[#allocation2 + $0x3d0] sm:$0xff] %v1512
    %1902 = vst [vmem:[#allocation2 + $0x3d8] sm:$0xff] %v1561
    %1903 = vst [vmem:[#allocation2 + $0x3e0] sm:$0xff] %v1610
    %1904 = vst [vmem:[#allocation2 + $0x3e8] sm:$0xff] %v1659
    %1905 = vst [vmem:[#allocation2 + $0x3f0] sm:$0xff] %v1708
    %1906 = vst [vmem:[#allocation2 + $0x3f8] sm:$0xff] %v1757
    %1907 = vst [vmem:[#allocation2 + $0x400] sm:$0xff] %v1025
    %1908 = vst [vmem:[#allocation2 + $0x408] sm:$0xff] %v1074
    %1909 = vst [vmem:[#allocation2 + $0x410] sm:$0xff] %v1123
    %1910 = vst [vmem:[#allocation2 + $0x418] sm:$0xff] %v1172
    %1911 = vst [vmem:[#allocation2 + $0x420] sm:$0xff] %v1221
    %1912 = vst [vmem:[#allocation2 + $0x428] sm:$0xff] %v1270
    %1913 = vst [vmem:[#allocation2 + $0x430] sm:$0xff] %v1319
    %1914 = vst [vmem:[#allocation2 + $0x438] sm:$0xff] %v1368
    %1915 = vst [vmem:[#allocation2 + $0x440] sm:$0xff] %v1417
    %1916 = vst [vmem:[#allocation2 + $0x448] sm:$0xff] %v1466
    %1917 = vst [vmem:[#allocation2 + $0x450] sm:$0xff] %v1515
    %1918 = vst [vmem:[#allocation2 + $0x458] sm:$0xff] %v1564
    %1919 = vst [vmem:[#allocation2 + $0x460] sm:$0xff] %v1613
    %1920 = vst [vmem:[#allocation2 + $0x468] sm:$0xff] %v1662
    %1921 = vst [vmem:[#allocation2 + $0x470] sm:$0xff] %v1711
    %1922 = vst [vmem:[#allocation2 + $0x478] sm:$0xff] %v1760
    %1923 = vst [vmem:[#allocation2 + $0x480] sm:$0xff] %v1027
    %1924 = vst [vmem:[#allocation2 + $0x488] sm:$0xff] %v1076
    %1925 = vst [vmem:[#allocation2 + $0x490] sm:$0xff] %v1125
    %1926 = vst [vmem:[#allocation2 + $0x498] sm:$0xff] %v1174
    %1927 = vst [vmem:[#allocation2 + $0x4a0] sm:$0xff] %v1223
    %1928 = vst [vmem:[#allocation2 + $0x4a8] sm:$0xff] %v1272
    %1929 = vst [vmem:[#allocation2 + $0x4b0] sm:$0xff] %v1321
    %1930 = vst [vmem:[#allocation2 + $0x4b8] sm:$0xff] %v1370
    %1931 = vst [vmem:[#allocation2 + $0x4c0] sm:$0xff] %v1419
    %1932 = vst [vmem:[#allocation2 + $0x4c8] sm:$0xff] %v1468
    %1933 = vst [vmem:[#allocation2 + $0x4d0] sm:$0xff] %v1517
    %1934 = vst [vmem:[#allocation2 + $0x4d8] sm:$0xff] %v1566
    %1935 = vst [vmem:[#allocation2 + $0x4e0] sm:$0xff] %v1615
    %1936 = vst [vmem:[#allocation2 + $0x4e8] sm:$0xff] %v1664
    %1937 = vst [vmem:[#allocation2 + $0x4f0] sm:$0xff] %v1713
    %1938 = vst [vmem:[#allocation2 + $0x4f8] sm:$0xff] %v1762
    %1939 = vst [vmem:[#allocation2 + $0x500] sm:$0xff] %v1030
    %1940 = vst [vmem:[#allocation2 + $0x508] sm:$0xff] %v1079
    %1941 = vst [vmem:[#allocation2 + $0x510] sm:$0xff] %v1128
    %1942 = vst [vmem:[#allocation2 + $0x518] sm:$0xff] %v1177
    %1943 = vst [vmem:[#allocation2 + $0x520] sm:$0xff] %v1226
    %1944 = vst [vmem:[#allocation2 + $0x528] sm:$0xff] %v1275
    %1945 = vst [vmem:[#allocation2 + $0x530] sm:$0xff] %v1324
    %1946 = vst [vmem:[#allocation2 + $0x538] sm:$0xff] %v1373
    %1947 = vst [vmem:[#allocation2 + $0x540] sm:$0xff] %v1422
    %1948 = vst [vmem:[#allocation2 + $0x548] sm:$0xff] %v1471
    %1949 = vst [vmem:[#allocation2 + $0x550] sm:$0xff] %v1520
    %1950 = vst [vmem:[#allocation2 + $0x558] sm:$0xff] %v1569
    %1951 = vst [vmem:[#allocation2 + $0x560] sm:$0xff] %v1618
    %1952 = vst [vmem:[#allocation2 + $0x568] sm:$0xff] %v1667
    %1953 = vst [vmem:[#allocation2 + $0x570] sm:$0xff] %v1716
    %1954 = vst [vmem:[#allocation2 + $0x578] sm:$0xff] %v1765
    %1955 = vst [vmem:[#allocation2 + $0x580] sm:$0xff] %v1032
    %1956 = vst [vmem:[#allocation2 + $0x588] sm:$0xff] %v1081
    %1957 = vst [vmem:[#allocation2 + $0x590] sm:$0xff] %v1130
    %1958 = vst [vmem:[#allocation2 + $0x598] sm:$0xff] %v1179
    %1959 = vst [vmem:[#allocation2 + $0x5a0] sm:$0xff] %v1228
    %1960 = vst [vmem:[#allocation2 + $0x5a8] sm:$0xff] %v1277
    %1961 = vst [vmem:[#allocation2 + $0x5b0] sm:$0xff] %v1326
    %1962 = vst [vmem:[#allocation2 + $0x5b8] sm:$0xff] %v1375
    %1963 = vst [vmem:[#allocation2 + $0x5c0] sm:$0xff] %v1424
    %1964 = vst [vmem:[#allocation2 + $0x5c8] sm:$0xff] %v1473
    %1965 = vst [vmem:[#allocation2 + $0x5d0] sm:$0xff] %v1522
    %1966 = vst [vmem:[#allocation2 + $0x5d8] sm:$0xff] %v1571
    %1967 = vst [vmem:[#allocation2 + $0x5e0] sm:$0xff] %v1620
    %1968 = vst [vmem:[#allocation2 + $0x5e8] sm:$0xff] %v1669
    %1969 = vst [vmem:[#allocation2 + $0x5f0] sm:$0xff] %v1718
    %1970 = vst [vmem:[#allocation2 + $0x5f8] sm:$0xff] %v1767
    %1971 = vst [vmem:[#allocation2 + $0x600] sm:$0xff] %v1035
    %1972 = vst [vmem:[#allocation2 + $0x608] sm:$0xff] %v1084
    %1973 = vst [vmem:[#allocation2 + $0x610] sm:$0xff] %v1133
    %1974 = vst [vmem:[#allocation2 + $0x618] sm:$0xff] %v1182
    %1975 = vst [vmem:[#allocation2 + $0x620] sm:$0xff] %v1231
    %1976 = vst [vmem:[#allocation2 + $0x628] sm:$0xff] %v1280
    %1977 = vst [vmem:[#allocation2 + $0x630] sm:$0xff] %v1329
    %1978 = vst [vmem:[#allocation2 + $0x638] sm:$0xff] %v1378
    %1979 = vst [vmem:[#allocation2 + $0x640] sm:$0xff] %v1427
    %1980 = vst [vmem:[#allocation2 + $0x648] sm:$0xff] %v1476
    %1981 = vst [vmem:[#allocation2 + $0x650] sm:$0xff] %v1525
    %1982 = vst [vmem:[#allocation2 + $0x658] sm:$0xff] %v1574
    %1983 = vst [vmem:[#allocation2 + $0x660] sm:$0xff] %v1623
    %1984 = vst [vmem:[#allocation2 + $0x668] sm:$0xff] %v1672
    %1985 = vst [vmem:[#allocation2 + $0x670] sm:$0xff] %v1721
    %1986 = vst [vmem:[#allocation2 + $0x678] sm:$0xff] %v1770
    %1987 = vst [vmem:[#allocation2 + $0x680] sm:$0xff] %v1037
    %1988 = vst [vmem:[#allocation2 + $0x688] sm:$0xff] %v1086
    %1989 = vst [vmem:[#allocation2 + $0x690] sm:$0xff] %v1135
    %1990 = vst [vmem:[#allocation2 + $0x698] sm:$0xff] %v1184
    %1991 = vst [vmem:[#allocation2 + $0x6a0] sm:$0xff] %v1233
    %1992 = vst [vmem:[#allocation2 + $0x6a8] sm:$0xff] %v1282
    %1993 = vst [vmem:[#allocation2 + $0x6b0] sm:$0xff] %v1331
    %1994 = vst [vmem:[#allocation2 + $0x6b8] sm:$0xff] %v1380
    %1995 = vst [vmem:[#allocation2 + $0x6c0] sm:$0xff] %v1429
    %1996 = vst [vmem:[#allocation2 + $0x6c8] sm:$0xff] %v1478
    %1997 = vst [vmem:[#allocation2 + $0x6d0] sm:$0xff] %v1527
    %1998 = vst [vmem:[#allocation2 + $0x6d8] sm:$0xff] %v1576
    %1999 = vst [vmem:[#allocation2 + $0x6e0] sm:$0xff] %v1625
    %2000 = vst [vmem:[#allocation2 + $0x6e8] sm:$0xff] %v1674
    %2001 = vst [vmem:[#allocation2 + $0x6f0] sm:$0xff] %v1723
    %2002 = vst [vmem:[#allocation2 + $0x6f8] sm:$0xff] %v1772
    %2003 = vst [vmem:[#allocation2 + $0x700] sm:$0xff] %v1040
    %2004 = vst [vmem:[#allocation2 + $0x708] sm:$0xff] %v1089
    %2005 = vst [vmem:[#allocation2 + $0x710] sm:$0xff] %v1138
    %2006 = vst [vmem:[#allocation2 + $0x718] sm:$0xff] %v1187
    %2007 = vst [vmem:[#allocation2 + $0x720] sm:$0xff] %v1236
    %2008 = vst [vmem:[#allocation2 + $0x728] sm:$0xff] %v1285
    %2009 = vst [vmem:[#allocation2 + $0x730] sm:$0xff] %v1334
    %2010 = vst [vmem:[#allocation2 + $0x738] sm:$0xff] %v1383
    %2011 = vst [vmem:[#allocation2 + $0x740] sm:$0xff] %v1432
    %2012 = vst [vmem:[#allocation2 + $0x748] sm:$0xff] %v1481
    %2013 = vst [vmem:[#allocation2 + $0x750] sm:$0xff] %v1530
    %2014 = vst [vmem:[#allocation2 + $0x758] sm:$0xff] %v1579
    %2015 = vst [vmem:[#allocation2 + $0x760] sm:$0xff] %v1628
    %2016 = vst [vmem:[#allocation2 + $0x768] sm:$0xff] %v1677
    %2017 = vst [vmem:[#allocation2 + $0x770] sm:$0xff] %v1726
    %2018 = vst [vmem:[#allocation2 + $0x778] sm:$0xff] %v1775
    %2019 = vst [vmem:[#allocation2 + $0x780] sm:$0xff] %v1042
    %2020 = vst [vmem:[#allocation2 + $0x788] sm:$0xff] %v1091
    %2021 = vst [vmem:[#allocation2 + $0x790] sm:$0xff] %v1140
    %2022 = vst [vmem:[#allocation2 + $0x798] sm:$0xff] %v1189
    %2023 = vst [vmem:[#allocation2 + $0x7a0] sm:$0xff] %v1238
    %2024 = vst [vmem:[#allocation2 + $0x7a8] sm:$0xff] %v1287
    %2025 = vst [vmem:[#allocation2 + $0x7b0] sm:$0xff] %v1336
    %2026 = vst [vmem:[#allocation2 + $0x7b8] sm:$0xff] %v1385
    %2027 = vst [vmem:[#allocation2 + $0x7c0] sm:$0xff] %v1434
    %2028 = vst [vmem:[#allocation2 + $0x7c8] sm:$0xff] %v1483
    %2029 = vst [vmem:[#allocation2 + $0x7d0] sm:$0xff] %v1532
    %2030 = vst [vmem:[#allocation2 + $0x7d8] sm:$0xff] %v1581
    %2031 = vst [vmem:[#allocation2 + $0x7e0] sm:$0xff] %v1630
    %2032 = vst [vmem:[#allocation2 + $0x7e8] sm:$0xff] %v1679
    %2033 = vst [vmem:[#allocation2 + $0x7f0] sm:$0xff] %v1728
    %2034 = vst [vmem:[#allocation2 + $0x7f8] sm:$0xff] %v1777
    loop: start=0, step=1, limit=16
    $region42: #{multi_head_forward.1} parent=1 // loop_pre_header
      _
    $region43: #{multi_head_forward.1} parent=1 // loop_header
      %s2036 = sphi 0, %s2040
      %p2037 = scmp.ge.s32.totalorder %s2036, 16
      %v2041 = vphi 0.0, %v4175
      %v2042 = vphi 0.0, %v4176
      %v2043 = vphi 0.0, %v4171
      %v2044 = vphi 0.0, %v4172
      %v2045 = vphi 0.0, %v4301
      %v2046 = vphi 0.0, %v4302
      %v2047 = vphi 0.0, %v4297
      %v2048 = vphi 0.0, %v4298
    $region44: #{multi_head_forward.1} parent=1 // loop_header_branch
      %2039 = sbr.rel (%p2037) target = $region48
    $region45: #{multi_head_forward.1} parent=1 // loop_body
      %s2049 = smul.u32 %s2036, 8
      %s2050 = ssub.s32 15, %s2036
      %s2051 = smul.u32 %s2050, 8
      %s2052 = sshra.s32 %s2049, 3
      %s2053 = sand.u32 %s2049, 7
      %s2054 = smul.u32 %s2052, 16
      %s2055 = smul.addr %s2054, 8
      %s2056 = scalar_lea.vmem [#allocation2], %s2055
      %v2057 = vld [vmem:[%s2056] sm:$0xff]
      %v2058 = vld [vmem:[%s2056 + $0x8] sm:$0xff]
      %v2059 = vld [vmem:[%s2056 + $0x10] sm:$0xff]
      %v2060 = vld [vmem:[%s2056 + $0x18] sm:$0xff]
      %v2061 = vld [vmem:[%s2056 + $0x20] sm:$0xff]
      %v2062 = vld [vmem:[%s2056 + $0x28] sm:$0xff]
      %v2063 = vld [vmem:[%s2056 + $0x30] sm:$0xff]
      %v2064 = vld [vmem:[%s2056 + $0x38] sm:$0xff]
      %s2065 = sshra.s32 %s2051, 3
      %s2066 = sand.u32 %s2051, 7
      %s2067 = smul.u32 %s2065, 16
      %s2068 = smul.addr %s2067, 8
      %s2069 = scalar_lea.vmem [#allocation2], %s2068
      %v2070 = vld [vmem:[%s2069 + $0x40] sm:$0xff]
      %v2071 = vld [vmem:[%s2069 + $0x48] sm:$0xff]
      %v2072 = vld [vmem:[%s2069 + $0x50] sm:$0xff]
      %v2073 = vld [vmem:[%s2069 + $0x58] sm:$0xff]
      %v2074 = vld [vmem:[%s2069 + $0x60] sm:$0xff]
      %v2075 = vld [vmem:[%s2069 + $0x68] sm:$0xff]
      %v2076 = vld [vmem:[%s2069 + $0x70] sm:$0xff]
      %v2077 = vld [vmem:[%s2069 + $0x78] sm:$0xff]
      %v2078 = vpack.c.bf16 %v2041, %v2041
      %v2079 = vpack.c.bf16 %v2042, %v2042
      %v2080 = vld [vmem:[%s3] sm:$0xff]
      %v2081 = vld [vmem:[%s3 + $0x8] sm:$0xff]
      %v2082 = vld [vmem:[%s3 + $0x10] sm:$0xff]
      %v2083 = vld [vmem:[%s3 + $0x18] sm:$0xff]
      %v2084 = vld [vmem:[%s3 + $0x20] sm:$0xff]
      %v2085 = vld [vmem:[%s3 + $0x28] sm:$0xff]
      %v2086 = vld [vmem:[%s3 + $0x30] sm:$0xff]
      %v2087 = vld [vmem:[%s3 + $0x38] sm:$0xff]
      %v2088 = vld [vmem:[%s3 + $0x40] sm:$0xff]
      %v2089 = vld [vmem:[%s3 + $0x48] sm:$0xff]
      %v2090 = vld [vmem:[%s3 + $0x50] sm:$0xff]
      %v2091 = vld [vmem:[%s3 + $0x58] sm:$0xff]
      %v2092 = vld [vmem:[%s3 + $0x60] sm:$0xff]
      %v2093 = vld [vmem:[%s3 + $0x68] sm:$0xff]
      %v2094 = vld [vmem:[%s3 + $0x70] sm:$0xff]
      %v2095 = vld [vmem:[%s3 + $0x78] sm:$0xff]
      %v2096 = vld [vmem:[%s3 + $0x80] sm:$0xff]
      %v2097 = vld [vmem:[%s3 + $0x88] sm:$0xff]
      %v2098 = vld [vmem:[%s3 + $0x90] sm:$0xff]
      %v2099 = vld [vmem:[%s3 + $0x98] sm:$0xff]
      %v2100 = vld [vmem:[%s3 + $0xa0] sm:$0xff]
      %v2101 = vld [vmem:[%s3 + $0xa8] sm:$0xff]
      %v2102 = vld [vmem:[%s3 + $0xb0] sm:$0xff]
      %v2103 = vld [vmem:[%s3 + $0xb8] sm:$0xff]
      %v2104 = vld [vmem:[%s3 + $0xc0] sm:$0xff]
      %v2105 = vld [vmem:[%s3 + $0xc8] sm:$0xff]
      %v2106 = vld [vmem:[%s3 + $0xd0] sm:$0xff]
      %v2107 = vld [vmem:[%s3 + $0xd8] sm:$0xff]
      %v2108 = vld [vmem:[%s3 + $0xe0] sm:$0xff]
      %v2109 = vld [vmem:[%s3 + $0xe8] sm:$0xff]
      %v2110 = vld [vmem:[%s3 + $0xf0] sm:$0xff]
      %v2111 = vld [vmem:[%s3 + $0xf8] sm:$0xff]
      %v2112 = vld [vmem:[%s3 + $0x100] sm:$0xff]
      %v2113 = vld [vmem:[%s3 + $0x108] sm:$0xff]
      %v2114 = vld [vmem:[%s3 + $0x110] sm:$0xff]
      %v2115 = vld [vmem:[%s3 + $0x118] sm:$0xff]
      %v2116 = vld [vmem:[%s3 + $0x120] sm:$0xff]
      %v2117 = vld [vmem:[%s3 + $0x128] sm:$0xff]
      %v2118 = vld [vmem:[%s3 + $0x130] sm:$0xff]
      %v2119 = vld [vmem:[%s3 + $0x138] sm:$0xff]
      %v2120 = vld [vmem:[%s3 + $0x140] sm:$0xff]
      %v2121 = vld [vmem:[%s3 + $0x148] sm:$0xff]
      %v2122 = vld [vmem:[%s3 + $0x150] sm:$0xff]
      %v2123 = vld [vmem:[%s3 + $0x158] sm:$0xff]
      %v2124 = vld [vmem:[%s3 + $0x160] sm:$0xff]
      %v2125 = vld [vmem:[%s3 + $0x168] sm:$0xff]
      %v2126 = vld [vmem:[%s3 + $0x170] sm:$0xff]
      %v2127 = vld [vmem:[%s3 + $0x178] sm:$0xff]
      %v2128 = vld [vmem:[%s3 + $0x180] sm:$0xff]
      %v2129 = vld [vmem:[%s3 + $0x188] sm:$0xff]
      %v2130 = vld [vmem:[%s3 + $0x190] sm:$0xff]
      %v2131 = vld [vmem:[%s3 + $0x198] sm:$0xff]
      %v2132 = vld [vmem:[%s3 + $0x1a0] sm:$0xff]
      %v2133 = vld [vmem:[%s3 + $0x1a8] sm:$0xff]
      %v2134 = vld [vmem:[%s3 + $0x1b0] sm:$0xff]
      %v2135 = vld [vmem:[%s3 + $0x1b8] sm:$0xff]
      %v2136 = vld [vmem:[%s3 + $0x1c0] sm:$0xff]
      %v2137 = vld [vmem:[%s3 + $0x1c8] sm:$0xff]
      %v2138 = vld [vmem:[%s3 + $0x1d0] sm:$0xff]
      %v2139 = vld [vmem:[%s3 + $0x1d8] sm:$0xff]
      %v2140 = vld [vmem:[%s3 + $0x1e0] sm:$0xff]
      %v2141 = vld [vmem:[%s3 + $0x1e8] sm:$0xff]
      %v2142 = vld [vmem:[%s3 + $0x1f0] sm:$0xff]
      %v2143 = vld [vmem:[%s3 + $0x1f8] sm:$0xff]
      %v2144 = vld [vmem:[%s3 + $0x200] sm:$0xff]
      %v2145 = vld [vmem:[%s3 + $0x208] sm:$0xff]
      %v2146 = vld [vmem:[%s3 + $0x210] sm:$0xff]
      %v2147 = vld [vmem:[%s3 + $0x218] sm:$0xff]
      %v2148 = vld [vmem:[%s3 + $0x220] sm:$0xff]
      %v2149 = vld [vmem:[%s3 + $0x228] sm:$0xff]
      %v2150 = vld [vmem:[%s3 + $0x230] sm:$0xff]
      %v2151 = vld [vmem:[%s3 + $0x238] sm:$0xff]
      %v2152 = vld [vmem:[%s3 + $0x240] sm:$0xff]
      %v2153 = vld [vmem:[%s3 + $0x248] sm:$0xff]
      %v2154 = vld [vmem:[%s3 + $0x250] sm:$0xff]
      %v2155 = vld [vmem:[%s3 + $0x258] sm:$0xff]
      %v2156 = vld [vmem:[%s3 + $0x260] sm:$0xff]
      %v2157 = vld [vmem:[%s3 + $0x268] sm:$0xff]
      %v2158 = vld [vmem:[%s3 + $0x270] sm:$0xff]
      %v2159 = vld [vmem:[%s3 + $0x278] sm:$0xff]
      %v2160 = vld [vmem:[%s3 + $0x280] sm:$0xff]
      %v2161 = vld [vmem:[%s3 + $0x288] sm:$0xff]
      %v2162 = vld [vmem:[%s3 + $0x290] sm:$0xff]
      %v2163 = vld [vmem:[%s3 + $0x298] sm:$0xff]
      %v2164 = vld [vmem:[%s3 + $0x2a0] sm:$0xff]
      %v2165 = vld [vmem:[%s3 + $0x2a8] sm:$0xff]
      %v2166 = vld [vmem:[%s3 + $0x2b0] sm:$0xff]
      %v2167 = vld [vmem:[%s3 + $0x2b8] sm:$0xff]
      %v2168 = vld [vmem:[%s3 + $0x2c0] sm:$0xff]
      %v2169 = vld [vmem:[%s3 + $0x2c8] sm:$0xff]
      %v2170 = vld [vmem:[%s3 + $0x2d0] sm:$0xff]
      %v2171 = vld [vmem:[%s3 + $0x2d8] sm:$0xff]
      %v2172 = vld [vmem:[%s3 + $0x2e0] sm:$0xff]
      %v2173 = vld [vmem:[%s3 + $0x2e8] sm:$0xff]
      %v2174 = vld [vmem:[%s3 + $0x2f0] sm:$0xff]
      %v2175 = vld [vmem:[%s3 + $0x2f8] sm:$0xff]
      %v2176 = vld [vmem:[%s3 + $0x300] sm:$0xff]
      %v2177 = vld [vmem:[%s3 + $0x308] sm:$0xff]
      %v2178 = vld [vmem:[%s3 + $0x310] sm:$0xff]
      %v2179 = vld [vmem:[%s3 + $0x318] sm:$0xff]
      %v2180 = vld [vmem:[%s3 + $0x320] sm:$0xff]
      %v2181 = vld [vmem:[%s3 + $0x328] sm:$0xff]
      %v2182 = vld [vmem:[%s3 + $0x330] sm:$0xff]
      %v2183 = vld [vmem:[%s3 + $0x338] sm:$0xff]
      %v2184 = vld [vmem:[%s3 + $0x340] sm:$0xff]
      %v2185 = vld [vmem:[%s3 + $0x348] sm:$0xff]
      %v2186 = vld [vmem:[%s3 + $0x350] sm:$0xff]
      %v2187 = vld [vmem:[%s3 + $0x358] sm:$0xff]
      %v2188 = vld [vmem:[%s3 + $0x360] sm:$0xff]
      %v2189 = vld [vmem:[%s3 + $0x368] sm:$0xff]
      %v2190 = vld [vmem:[%s3 + $0x370] sm:$0xff]
      %v2191 = vld [vmem:[%s3 + $0x378] sm:$0xff]
      %v2192 = vld [vmem:[%s3 + $0x380] sm:$0xff]
      %v2193 = vld [vmem:[%s3 + $0x388] sm:$0xff]
      %v2194 = vld [vmem:[%s3 + $0x390] sm:$0xff]
      %v2195 = vld [vmem:[%s3 + $0x398] sm:$0xff]
      %v2196 = vld [vmem:[%s3 + $0x3a0] sm:$0xff]
      %v2197 = vld [vmem:[%s3 + $0x3a8] sm:$0xff]
      %v2198 = vld [vmem:[%s3 + $0x3b0] sm:$0xff]
      %v2199 = vld [vmem:[%s3 + $0x3b8] sm:$0xff]
      %v2200 = vld [vmem:[%s3 + $0x3c0] sm:$0xff]
      %v2201 = vld [vmem:[%s3 + $0x3c8] sm:$0xff]
      %v2202 = vld [vmem:[%s3 + $0x3d0] sm:$0xff]
      %v2203 = vld [vmem:[%s3 + $0x3d8] sm:$0xff]
      %v2204 = vld [vmem:[%s3 + $0x3e0] sm:$0xff]
      %v2205 = vld [vmem:[%s3 + $0x3e8] sm:$0xff]
      %v2206 = vld [vmem:[%s3 + $0x3f0] sm:$0xff]
      %v2207 = vld [vmem:[%s3 + $0x3f8] sm:$0xff]
      %v2336 = vunpack.c.l.b16 %v2080
      %v2337 = vunpack.c.h.b16 %v2080
      %v2338 = vunpack.c.l.b16 %v2081
      %v2339 = vunpack.c.h.b16 %v2081
      %v2340 = vunpack.c.l.b16 %v2082
      %v2341 = vunpack.c.h.b16 %v2082
      %v2342 = vunpack.c.l.b16 %v2083
      %v2343 = vunpack.c.h.b16 %v2083
      %v2344 = vunpack.c.l.b16 %v2084
      %v2345 = vunpack.c.h.b16 %v2084
      %v2346 = vunpack.c.l.b16 %v2085
      %v2347 = vunpack.c.h.b16 %v2085
      %v2348 = vunpack.c.l.b16 %v2086
      %v2349 = vunpack.c.h.b16 %v2086
      %v2350 = vunpack.c.l.b16 %v2087
      %v2351 = vunpack.c.h.b16 %v2087
      %v2352 = vunpack.c.l.b16 %v2088
      %v2353 = vunpack.c.h.b16 %v2088
      %v2354 = vunpack.c.l.b16 %v2089
      %v2355 = vunpack.c.h.b16 %v2089
      %v2356 = vunpack.c.l.b16 %v2090
      %v2357 = vunpack.c.h.b16 %v2090
      %v2358 = vunpack.c.l.b16 %v2091
      %v2359 = vunpack.c.h.b16 %v2091
      %v2360 = vunpack.c.l.b16 %v2092
      %v2361 = vunpack.c.h.b16 %v2092
      %v2362 = vunpack.c.l.b16 %v2093
      %v2363 = vunpack.c.h.b16 %v2093
      %v2364 = vunpack.c.l.b16 %v2094
      %v2365 = vunpack.c.h.b16 %v2094
      %v2366 = vunpack.c.l.b16 %v2095
      %v2367 = vunpack.c.h.b16 %v2095
      %v2368 = vunpack.c.l.b16 %v2096
      %v2369 = vunpack.c.h.b16 %v2096
      %v2370 = vunpack.c.l.b16 %v2097
      %v2371 = vunpack.c.h.b16 %v2097
      %v2372 = vunpack.c.l.b16 %v2098
      %v2373 = vunpack.c.h.b16 %v2098
      %v2374 = vunpack.c.l.b16 %v2099
      %v2375 = vunpack.c.h.b16 %v2099
      %v2376 = vunpack.c.l.b16 %v2100
      %v2377 = vunpack.c.h.b16 %v2100
      %v2378 = vunpack.c.l.b16 %v2101
      %v2379 = vunpack.c.h.b16 %v2101
      %v2380 = vunpack.c.l.b16 %v2102
      %v2381 = vunpack.c.h.b16 %v2102
      %v2382 = vunpack.c.l.b16 %v2103
      %v2383 = vunpack.c.h.b16 %v2103
      %v2384 = vunpack.c.l.b16 %v2104
      %v2385 = vunpack.c.h.b16 %v2104
      %v2386 = vunpack.c.l.b16 %v2105
      %v2387 = vunpack.c.h.b16 %v2105
      %v2388 = vunpack.c.l.b16 %v2106
      %v2389 = vunpack.c.h.b16 %v2106
      %v2390 = vunpack.c.l.b16 %v2107
      %v2391 = vunpack.c.h.b16 %v2107
      %v2392 = vunpack.c.l.b16 %v2108
      %v2393 = vunpack.c.h.b16 %v2108
      %v2394 = vunpack.c.l.b16 %v2109
      %v2395 = vunpack.c.h.b16 %v2109
      %v2396 = vunpack.c.l.b16 %v2110
      %v2397 = vunpack.c.h.b16 %v2110
      %v2398 = vunpack.c.l.b16 %v2111
      %v2399 = vunpack.c.h.b16 %v2111
      %v2400 = vunpack.c.l.b16 %v2112
      %v2401 = vunpack.c.h.b16 %v2112
      %v2402 = vunpack.c.l.b16 %v2113
      %v2403 = vunpack.c.h.b16 %v2113
      %v2404 = vunpack.c.l.b16 %v2114
      %v2405 = vunpack.c.h.b16 %v2114
      %v2406 = vunpack.c.l.b16 %v2115
      %v2407 = vunpack.c.h.b16 %v2115
      %v2408 = vunpack.c.l.b16 %v2116
      %v2409 = vunpack.c.h.b16 %v2116
      %v2410 = vunpack.c.l.b16 %v2117
      %v2411 = vunpack.c.h.b16 %v2117
      %v2412 = vunpack.c.l.b16 %v2118
      %v2413 = vunpack.c.h.b16 %v2118
      %v2414 = vunpack.c.l.b16 %v2119
      %v2415 = vunpack.c.h.b16 %v2119
      %v2416 = vunpack.c.l.b16 %v2120
      %v2417 = vunpack.c.h.b16 %v2120
      %v2418 = vunpack.c.l.b16 %v2121
      %v2419 = vunpack.c.h.b16 %v2121
      %v2420 = vunpack.c.l.b16 %v2122
      %v2421 = vunpack.c.h.b16 %v2122
      %v2422 = vunpack.c.l.b16 %v2123
      %v2423 = vunpack.c.h.b16 %v2123
      %v2424 = vunpack.c.l.b16 %v2124
      %v2425 = vunpack.c.h.b16 %v2124
      %v2426 = vunpack.c.l.b16 %v2125
      %v2427 = vunpack.c.h.b16 %v2125
      %v2428 = vunpack.c.l.b16 %v2126
      %v2429 = vunpack.c.h.b16 %v2126
      %v2430 = vunpack.c.l.b16 %v2127
      %v2431 = vunpack.c.h.b16 %v2127
      %v2432 = vunpack.c.l.b16 %v2128
      %v2433 = vunpack.c.h.b16 %v2128
      %v2434 = vunpack.c.l.b16 %v2129
      %v2435 = vunpack.c.h.b16 %v2129
      %v2436 = vunpack.c.l.b16 %v2130
      %v2437 = vunpack.c.h.b16 %v2130
      %v2438 = vunpack.c.l.b16 %v2131
      %v2439 = vunpack.c.h.b16 %v2131
      %v2440 = vunpack.c.l.b16 %v2132
      %v2441 = vunpack.c.h.b16 %v2132
      %v2442 = vunpack.c.l.b16 %v2133
      %v2443 = vunpack.c.h.b16 %v2133
      %v2444 = vunpack.c.l.b16 %v2134
      %v2445 = vunpack.c.h.b16 %v2134
      %v2446 = vunpack.c.l.b16 %v2135
      %v2447 = vunpack.c.h.b16 %v2135
      %v2448 = vunpack.c.l.b16 %v2136
      %v2449 = vunpack.c.h.b16 %v2136
      %v2450 = vunpack.c.l.b16 %v2137
      %v2451 = vunpack.c.h.b16 %v2137
      %v2452 = vunpack.c.l.b16 %v2138
      %v2453 = vunpack.c.h.b16 %v2138
      %v2454 = vunpack.c.l.b16 %v2139
      %v2455 = vunpack.c.h.b16 %v2139
      %v2456 = vunpack.c.l.b16 %v2140
      %v2457 = vunpack.c.h.b16 %v2140
      %v2458 = vunpack.c.l.b16 %v2141
      %v2459 = vunpack.c.h.b16 %v2141
      %v2460 = vunpack.c.l.b16 %v2142
      %v2461 = vunpack.c.h.b16 %v2142
      %v2462 = vunpack.c.l.b16 %v2143
      %v2463 = vunpack.c.h.b16 %v2143
      %v2464 = vunpack.c.l.b16 %v2144
      %v2465 = vunpack.c.h.b16 %v2144
      %v2466 = vunpack.c.l.b16 %v2145
      %v2467 = vunpack.c.h.b16 %v2145
      %v2468 = vunpack.c.l.b16 %v2146
      %v2469 = vunpack.c.h.b16 %v2146
      %v2470 = vunpack.c.l.b16 %v2147
      %v2471 = vunpack.c.h.b16 %v2147
      %v2472 = vunpack.c.l.b16 %v2148
      %v2473 = vunpack.c.h.b16 %v2148
      %v2474 = vunpack.c.l.b16 %v2149
      %v2475 = vunpack.c.h.b16 %v2149
      %v2476 = vunpack.c.l.b16 %v2150
      %v2477 = vunpack.c.h.b16 %v2150
      %v2478 = vunpack.c.l.b16 %v2151
      %v2479 = vunpack.c.h.b16 %v2151
      %v2480 = vunpack.c.l.b16 %v2152
      %v2481 = vunpack.c.h.b16 %v2152
      %v2482 = vunpack.c.l.b16 %v2153
      %v2483 = vunpack.c.h.b16 %v2153
      %v2484 = vunpack.c.l.b16 %v2154
      %v2485 = vunpack.c.h.b16 %v2154
      %v2486 = vunpack.c.l.b16 %v2155
      %v2487 = vunpack.c.h.b16 %v2155
      %v2488 = vunpack.c.l.b16 %v2156
      %v2489 = vunpack.c.h.b16 %v2156
      %v2490 = vunpack.c.l.b16 %v2157
      %v2491 = vunpack.c.h.b16 %v2157
      %v2492 = vunpack.c.l.b16 %v2158
      %v2493 = vunpack.c.h.b16 %v2158
      %v2494 = vunpack.c.l.b16 %v2159
      %v2495 = vunpack.c.h.b16 %v2159
      %v2496 = vunpack.c.l.b16 %v2160
      %v2497 = vunpack.c.h.b16 %v2160
      %v2498 = vunpack.c.l.b16 %v2161
      %v2499 = vunpack.c.h.b16 %v2161
      %v2500 = vunpack.c.l.b16 %v2162
      %v2501 = vunpack.c.h.b16 %v2162
      %v2502 = vunpack.c.l.b16 %v2163
      %v2503 = vunpack.c.h.b16 %v2163
      %v2504 = vunpack.c.l.b16 %v2164
      %v2505 = vunpack.c.h.b16 %v2164
      %v2506 = vunpack.c.l.b16 %v2165
      %v2507 = vunpack.c.h.b16 %v2165
      %v2508 = vunpack.c.l.b16 %v2166
      %v2509 = vunpack.c.h.b16 %v2166
      %v2510 = vunpack.c.l.b16 %v2167
      %v2511 = vunpack.c.h.b16 %v2167
      %v2512 = vunpack.c.l.b16 %v2168
      %v2513 = vunpack.c.h.b16 %v2168
      %v2514 = vunpack.c.l.b16 %v2169
      %v2515 = vunpack.c.h.b16 %v2169
      %v2516 = vunpack.c.l.b16 %v2170
      %v2517 = vunpack.c.h.b16 %v2170
      %v2518 = vunpack.c.l.b16 %v2171
      %v2519 = vunpack.c.h.b16 %v2171
      %v2520 = vunpack.c.l.b16 %v2172
      %v2521 = vunpack.c.h.b16 %v2172
      %v2522 = vunpack.c.l.b16 %v2173
      %v2523 = vunpack.c.h.b16 %v2173
      %v2524 = vunpack.c.l.b16 %v2174
      %v2525 = vunpack.c.h.b16 %v2174
      %v2526 = vunpack.c.l.b16 %v2175
      %v2527 = vunpack.c.h.b16 %v2175
      %v2528 = vunpack.c.l.b16 %v2176
      %v2529 = vunpack.c.h.b16 %v2176
      %v2530 = vunpack.c.l.b16 %v2177
      %v2531 = vunpack.c.h.b16 %v2177
      %v2532 = vunpack.c.l.b16 %v2178
      %v2533 = vunpack.c.h.b16 %v2178
      %v2534 = vunpack.c.l.b16 %v2179
      %v2535 = vunpack.c.h.b16 %v2179
      %v2536 = vunpack.c.l.b16 %v2180
      %v2537 = vunpack.c.h.b16 %v2180
      %v2538 = vunpack.c.l.b16 %v2181
      %v2539 = vunpack.c.h.b16 %v2181
      %v2540 = vunpack.c.l.b16 %v2182
      %v2541 = vunpack.c.h.b16 %v2182
      %v2542 = vunpack.c.l.b16 %v2183
      %v2543 = vunpack.c.h.b16 %v2183
      %v2544 = vunpack.c.l.b16 %v2184
      %v2545 = vunpack.c.h.b16 %v2184
      %v2546 = vunpack.c.l.b16 %v2185
      %v2547 = vunpack.c.h.b16 %v2185
      %v2548 = vunpack.c.l.b16 %v2186
      %v2549 = vunpack.c.h.b16 %v2186
      %v2550 = vunpack.c.l.b16 %v2187
      %v2551 = vunpack.c.h.b16 %v2187
      %v2552 = vunpack.c.l.b16 %v2188
      %v2553 = vunpack.c.h.b16 %v2188
      %v2554 = vunpack.c.l.b16 %v2189
      %v2555 = vunpack.c.h.b16 %v2189
      %v2556 = vunpack.c.l.b16 %v2190
      %v2557 = vunpack.c.h.b16 %v2190
      %v2558 = vunpack.c.l.b16 %v2191
      %v2559 = vunpack.c.h.b16 %v2191
      %v2560 = vunpack.c.l.b16 %v2192
      %v2561 = vunpack.c.h.b16 %v2192
      %v2562 = vunpack.c.l.b16 %v2193
      %v2563 = vunpack.c.h.b16 %v2193
      %v2564 = vunpack.c.l.b16 %v2194
      %v2565 = vunpack.c.h.b16 %v2194
      %v2566 = vunpack.c.l.b16 %v2195
      %v2567 = vunpack.c.h.b16 %v2195
      %v2568 = vunpack.c.l.b16 %v2196
      %v2569 = vunpack.c.h.b16 %v2196
      %v2570 = vunpack.c.l.b16 %v2197
      %v2571 = vunpack.c.h.b16 %v2197
      %v2572 = vunpack.c.l.b16 %v2198
      %v2573 = vunpack.c.h.b16 %v2198
      %v2574 = vunpack.c.l.b16 %v2199
      %v2575 = vunpack.c.h.b16 %v2199
      %v2576 = vunpack.c.l.b16 %v2200
      %v2577 = vunpack.c.h.b16 %v2200
      %v2578 = vunpack.c.l.b16 %v2201
      %v2579 = vunpack.c.h.b16 %v2201
      %v2580 = vunpack.c.l.b16 %v2202
      %v2581 = vunpack.c.h.b16 %v2202
      %v2582 = vunpack.c.l.b16 %v2203
      %v2583 = vunpack.c.h.b16 %v2203
      %v2584 = vunpack.c.l.b16 %v2204
      %v2585 = vunpack.c.h.b16 %v2204
      %v2586 = vunpack.c.l.b16 %v2205
      %v2587 = vunpack.c.h.b16 %v2205
      %v2588 = vunpack.c.l.b16 %v2206
      %v2589 = vunpack.c.h.b16 %v2206
      %v2590 = vunpack.c.l.b16 %v2207
      %v2591 = vunpack.c.h.b16 %v2207
      %v2592 = vpack.c.b16 %v2344, %v2336
      %v2593 = vpack.c.b16 %v2345, %v2337
      %v2594 = vpack.c.b16 %v2346, %v2338
      %v2595 = vpack.c.b16 %v2347, %v2339
      %v2596 = vpack.c.b16 %v2348, %v2340
      %v2597 = vpack.c.b16 %v2349, %v2341
      %v2598 = vpack.c.b16 %v2350, %v2342
      %v2599 = vpack.c.b16 %v2351, %v2343
      %v2600 = vpack.c.b16 %v2360, %v2352
      %v2601 = vpack.c.b16 %v2361, %v2353
      %v2602 = vpack.c.b16 %v2362, %v2354
      %v2603 = vpack.c.b16 %v2363, %v2355
      %v2604 = vpack.c.b16 %v2364, %v2356
      %v2605 = vpack.c.b16 %v2365, %v2357
      %v2606 = vpack.c.b16 %v2366, %v2358
      %v2607 = vpack.c.b16 %v2367, %v2359
      %v2608 = vpack.c.b16 %v2376, %v2368
      %v2609 = vpack.c.b16 %v2377, %v2369
      %v2610 = vpack.c.b16 %v2378, %v2370
      %v2611 = vpack.c.b16 %v2379, %v2371
      %v2612 = vpack.c.b16 %v2380, %v2372
      %v2613 = vpack.c.b16 %v2381, %v2373
      %v2614 = vpack.c.b16 %v2382, %v2374
      %v2615 = vpack.c.b16 %v2383, %v2375
      %v2616 = vpack.c.b16 %v2392, %v2384
      %v2617 = vpack.c.b16 %v2393, %v2385
      %v2618 = vpack.c.b16 %v2394, %v2386
      %v2619 = vpack.c.b16 %v2395, %v2387
      %v2620 = vpack.c.b16 %v2396, %v2388
      %v2621 = vpack.c.b16 %v2397, %v2389
      %v2622 = vpack.c.b16 %v2398, %v2390
      %v2623 = vpack.c.b16 %v2399, %v2391
      %v2624 = vpack.c.b16 %v2408, %v2400
      %v2625 = vpack.c.b16 %v2409, %v2401
      %v2626 = vpack.c.b16 %v2410, %v2402
      %v2627 = vpack.c.b16 %v2411, %v2403
      %v2628 = vpack.c.b16 %v2412, %v2404
      %v2629 = vpack.c.b16 %v2413, %v2405
      %v2630 = vpack.c.b16 %v2414, %v2406
      %v2631 = vpack.c.b16 %v2415, %v2407
      %v2632 = vpack.c.b16 %v2424, %v2416
      %v2633 = vpack.c.b16 %v2425, %v2417
      %v2634 = vpack.c.b16 %v2426, %v2418
      %v2635 = vpack.c.b16 %v2427, %v2419
      %v2636 = vpack.c.b16 %v2428, %v2420
      %v2637 = vpack.c.b16 %v2429, %v2421
      %v2638 = vpack.c.b16 %v2430, %v2422
      %v2639 = vpack.c.b16 %v2431, %v2423
      %v2640 = vpack.c.b16 %v2440, %v2432
      %v2641 = vpack.c.b16 %v2441, %v2433
      %v2642 = vpack.c.b16 %v2442, %v2434
      %v2643 = vpack.c.b16 %v2443, %v2435
      %v2644 = vpack.c.b16 %v2444, %v2436
      %v2645 = vpack.c.b16 %v2445, %v2437
      %v2646 = vpack.c.b16 %v2446, %v2438
      %v2647 = vpack.c.b16 %v2447, %v2439
      %v2648 = vpack.c.b16 %v2456, %v2448
      %v2649 = vpack.c.b16 %v2457, %v2449
      %v2650 = vpack.c.b16 %v2458, %v2450
      %v2651 = vpack.c.b16 %v2459, %v2451
      %v2652 = vpack.c.b16 %v2460, %v2452
      %v2653 = vpack.c.b16 %v2461, %v2453
      %v2654 = vpack.c.b16 %v2462, %v2454
      %v2655 = vpack.c.b16 %v2463, %v2455
      %v2656 = vpack.c.b16 %v2472, %v2464
      %v2657 = vpack.c.b16 %v2473, %v2465
      %v2658 = vpack.c.b16 %v2474, %v2466
      %v2659 = vpack.c.b16 %v2475, %v2467
      %v2660 = vpack.c.b16 %v2476, %v2468
      %v2661 = vpack.c.b16 %v2477, %v2469
      %v2662 = vpack.c.b16 %v2478, %v2470
      %v2663 = vpack.c.b16 %v2479, %v2471
      %v2664 = vpack.c.b16 %v2488, %v2480
      %v2665 = vpack.c.b16 %v2489, %v2481
      %v2666 = vpack.c.b16 %v2490, %v2482
      %v2667 = vpack.c.b16 %v2491, %v2483
      %v2668 = vpack.c.b16 %v2492, %v2484
      %v2669 = vpack.c.b16 %v2493, %v2485
      %v2670 = vpack.c.b16 %v2494, %v2486
      %v2671 = vpack.c.b16 %v2495, %v2487
      %v2672 = vpack.c.b16 %v2504, %v2496
      %v2673 = vpack.c.b16 %v2505, %v2497
      %v2674 = vpack.c.b16 %v2506, %v2498
      %v2675 = vpack.c.b16 %v2507, %v2499
      %v2676 = vpack.c.b16 %v2508, %v2500
      %v2677 = vpack.c.b16 %v2509, %v2501
      %v2678 = vpack.c.b16 %v2510, %v2502
      %v2679 = vpack.c.b16 %v2511, %v2503
      %v2680 = vpack.c.b16 %v2520, %v2512
      %v2681 = vpack.c.b16 %v2521, %v2513
      %v2682 = vpack.c.b16 %v2522, %v2514
      %v2683 = vpack.c.b16 %v2523, %v2515
      %v2684 = vpack.c.b16 %v2524, %v2516
      %v2685 = vpack.c.b16 %v2525, %v2517
      %v2686 = vpack.c.b16 %v2526, %v2518
      %v2687 = vpack.c.b16 %v2527, %v2519
      %v2688 = vpack.c.b16 %v2536, %v2528
      %v2689 = vpack.c.b16 %v2537, %v2529
      %v2690 = vpack.c.b16 %v2538, %v2530
      %v2691 = vpack.c.b16 %v2539, %v2531
      %v2692 = vpack.c.b16 %v2540, %v2532
      %v2693 = vpack.c.b16 %v2541, %v2533
      %v2694 = vpack.c.b16 %v2542, %v2534
      %v2695 = vpack.c.b16 %v2543, %v2535
      %v2696 = vpack.c.b16 %v2552, %v2544
      %v2697 = vpack.c.b16 %v2553, %v2545
      %v2698 = vpack.c.b16 %v2554, %v2546
      %v2699 = vpack.c.b16 %v2555, %v2547
      %v2700 = vpack.c.b16 %v2556, %v2548
      %v2701 = vpack.c.b16 %v2557, %v2549
      %v2702 = vpack.c.b16 %v2558, %v2550
      %v2703 = vpack.c.b16 %v2559, %v2551
      %v2704 = vpack.c.b16 %v2568, %v2560
      %v2705 = vpack.c.b16 %v2569, %v2561
      %v2706 = vpack.c.b16 %v2570, %v2562
      %v2707 = vpack.c.b16 %v2571, %v2563
      %v2708 = vpack.c.b16 %v2572, %v2564
      %v2709 = vpack.c.b16 %v2573, %v2565
      %v2710 = vpack.c.b16 %v2574, %v2566
      %v2711 = vpack.c.b16 %v2575, %v2567
      %v2712 = vpack.c.b16 %v2584, %v2576
      %v2713 = vpack.c.b16 %v2585, %v2577
      %v2714 = vpack.c.b16 %v2586, %v2578
      %v2715 = vpack.c.b16 %v2587, %v2579
      %v2716 = vpack.c.b16 %v2588, %v2580
      %v2717 = vpack.c.b16 %v2589, %v2581
      %v2718 = vpack.c.b16 %v2590, %v2582
      %v2719 = vpack.c.b16 %v2591, %v2583
      %2848 = vmatpush.bf16.msra.mxu0 %v2648
      %2849 = vmatpush.bf16.msra.mxu0 %v2640
      %2850 = vmatpush.bf16.msra.mxu0 %v2632
      %2851 = vmatpush.bf16.msra.mxu0 %v2624
      %2852 = vmatpush.bf16.msra.mxu0 %v2616
      %2853 = vmatpush.bf16.msra.mxu0 %v2608
      %2854 = vmatpush.bf16.msra.mxu0 %v2600
      %2855 = vmatpush.bf16.msra.mxu0 %v2592
      %2856 = vmatmul.bf16.gmra.mxu0 %v2078
      %v2857 = vpop.f32.mrf.mxu0
      %v2858 = vadd.f32 0.0, %v2857
      %v2859 = vpop.f32.mrf.mxu0
      %2860 = vdwg.mxu0
      %2861 = vmatpush.bf16.msra.mxu0 %v2712
      %2862 = vmatpush.bf16.msra.mxu0 %v2704
      %2863 = vmatpush.bf16.msra.mxu0 %v2696
      %2864 = vmatpush.bf16.msra.mxu0 %v2688
      %2865 = vmatpush.bf16.msra.mxu0 %v2680
      %2866 = vmatpush.bf16.msra.mxu0 %v2672
      %2867 = vmatpush.bf16.msra.mxu0 %v2664
      %2868 = vmatpush.bf16.msra.mxu0 %v2656
      %2869 = vmatmul.bf16.gmra.mxu0 %v2079
      %v2870 = vpop.f32.mrf.mxu0
      %v2871 = vadd.f32 %v2858, %v2870
      %v2872 = vpop.f32.mrf.mxu0
      %2873 = vdwg.mxu0
      %2874 = vmatpush.bf16.msra.mxu0 %v2649
      %2875 = vmatpush.bf16.msra.mxu0 %v2641
      %2876 = vmatpush.bf16.msra.mxu0 %v2633
      %2877 = vmatpush.bf16.msra.mxu0 %v2625
      %2878 = vmatpush.bf16.msra.mxu0 %v2617
      %2879 = vmatpush.bf16.msra.mxu0 %v2609
      %2880 = vmatpush.bf16.msra.mxu0 %v2601
      %2881 = vmatpush.bf16.msra.mxu0 %v2593
      %2882 = vmatmul.bf16.gmra.mxu0 %v2078
      %v2883 = vpop.f32.mrf.mxu0
      %v2884 = vadd.f32 0.0, %v2883
      %v2885 = vpop.f32.mrf.mxu0
      %2886 = vdwg.mxu0
      %2887 = vmatpush.bf16.msra.mxu0 %v2713
      %2888 = vmatpush.bf16.msra.mxu0 %v2705
      %2889 = vmatpush.bf16.msra.mxu0 %v2697
      %2890 = vmatpush.bf16.msra.mxu0 %v2689
      %2891 = vmatpush.bf16.msra.mxu0 %v2681
      %2892 = vmatpush.bf16.msra.mxu0 %v2673
      %2893 = vmatpush.bf16.msra.mxu0 %v2665
      %2894 = vmatpush.bf16.msra.mxu0 %v2657
      %2895 = vmatmul.bf16.gmra.mxu0 %v2079
      %v2896 = vpop.f32.mrf.mxu0
      %v2897 = vadd.f32 %v2884, %v2896
      %v2898 = vpop.f32.mrf.mxu0
      %2899 = vdwg.mxu0
      %2900 = vmatpush.bf16.msra.mxu0 %v2650
      %2901 = vmatpush.bf16.msra.mxu0 %v2642
      %2902 = vmatpush.bf16.msra.mxu0 %v2634
      %2903 = vmatpush.bf16.msra.mxu0 %v2626
      %2904 = vmatpush.bf16.msra.mxu0 %v2618
      %2905 = vmatpush.bf16.msra.mxu0 %v2610
      %2906 = vmatpush.bf16.msra.mxu0 %v2602
      %2907 = vmatpush.bf16.msra.mxu0 %v2594
      %2908 = vmatmul.bf16.gmra.mxu0 %v2078
      %v2909 = vpop.f32.mrf.mxu0
      %v2910 = vadd.f32 0.0, %v2909
      %v2911 = vpop.f32.mrf.mxu0
      %2912 = vdwg.mxu0
      %2913 = vmatpush.bf16.msra.mxu0 %v2714
      %2914 = vmatpush.bf16.msra.mxu0 %v2706
      %2915 = vmatpush.bf16.msra.mxu0 %v2698
      %2916 = vmatpush.bf16.msra.mxu0 %v2690
      %2917 = vmatpush.bf16.msra.mxu0 %v2682
      %2918 = vmatpush.bf16.msra.mxu0 %v2674
      %2919 = vmatpush.bf16.msra.mxu0 %v2666
      %2920 = vmatpush.bf16.msra.mxu0 %v2658
      %2921 = vmatmul.bf16.gmra.mxu0 %v2079
      %v2922 = vpop.f32.mrf.mxu0
      %v2923 = vadd.f32 %v2910, %v2922
      %v2924 = vpop.f32.mrf.mxu0
      %2925 = vdwg.mxu0
      %2926 = vmatpush.bf16.msra.mxu0 %v2651
      %2927 = vmatpush.bf16.msra.mxu0 %v2643
      %2928 = vmatpush.bf16.msra.mxu0 %v2635
      %2929 = vmatpush.bf16.msra.mxu0 %v2627
      %2930 = vmatpush.bf16.msra.mxu0 %v2619
      %2931 = vmatpush.bf16.msra.mxu0 %v2611
      %2932 = vmatpush.bf16.msra.mxu0 %v2603
      %2933 = vmatpush.bf16.msra.mxu0 %v2595
      %2934 = vmatmul.bf16.gmra.mxu0 %v2078
      %v2935 = vpop.f32.mrf.mxu0
      %v2936 = vadd.f32 0.0, %v2935
      %v2937 = vpop.f32.mrf.mxu0
      %2938 = vdwg.mxu0
      %2939 = vmatpush.bf16.msra.mxu0 %v2715
      %2940 = vmatpush.bf16.msra.mxu0 %v2707
      %2941 = vmatpush.bf16.msra.mxu0 %v2699
      %2942 = vmatpush.bf16.msra.mxu0 %v2691
      %2943 = vmatpush.bf16.msra.mxu0 %v2683
      %2944 = vmatpush.bf16.msra.mxu0 %v2675
      %2945 = vmatpush.bf16.msra.mxu0 %v2667
      %2946 = vmatpush.bf16.msra.mxu0 %v2659
      %2947 = vmatmul.bf16.gmra.mxu0 %v2079
      %v2948 = vpop.f32.mrf.mxu0
      %v2949 = vadd.f32 %v2936, %v2948
      %v2950 = vpop.f32.mrf.mxu0
      %2951 = vdwg.mxu0
      %2952 = vmatpush.bf16.msra.mxu0 %v2652
      %2953 = vmatpush.bf16.msra.mxu0 %v2644
      %2954 = vmatpush.bf16.msra.mxu0 %v2636
      %2955 = vmatpush.bf16.msra.mxu0 %v2628
      %2956 = vmatpush.bf16.msra.mxu0 %v2620
      %2957 = vmatpush.bf16.msra.mxu0 %v2612
      %2958 = vmatpush.bf16.msra.mxu0 %v2604
      %2959 = vmatpush.bf16.msra.mxu0 %v2596
      %2960 = vmatmul.bf16.gmra.mxu0 %v2078
      %v2961 = vpop.f32.mrf.mxu0
      %v2962 = vadd.f32 0.0, %v2961
      %v2963 = vpop.f32.mrf.mxu0
      %2964 = vdwg.mxu0
      %2965 = vmatpush.bf16.msra.mxu0 %v2716
      %2966 = vmatpush.bf16.msra.mxu0 %v2708
      %2967 = vmatpush.bf16.msra.mxu0 %v2700
      %2968 = vmatpush.bf16.msra.mxu0 %v2692
      %2969 = vmatpush.bf16.msra.mxu0 %v2684
      %2970 = vmatpush.bf16.msra.mxu0 %v2676
      %2971 = vmatpush.bf16.msra.mxu0 %v2668
      %2972 = vmatpush.bf16.msra.mxu0 %v2660
      %2973 = vmatmul.bf16.gmra.mxu0 %v2079
      %v2974 = vpop.f32.mrf.mxu0
      %v2975 = vadd.f32 %v2962, %v2974
      %v2976 = vpop.f32.mrf.mxu0
      %2977 = vdwg.mxu0
      %2978 = vmatpush.bf16.msra.mxu0 %v2653
      %2979 = vmatpush.bf16.msra.mxu0 %v2645
      %2980 = vmatpush.bf16.msra.mxu0 %v2637
      %2981 = vmatpush.bf16.msra.mxu0 %v2629
      %2982 = vmatpush.bf16.msra.mxu0 %v2621
      %2983 = vmatpush.bf16.msra.mxu0 %v2613
      %2984 = vmatpush.bf16.msra.mxu0 %v2605
      %2985 = vmatpush.bf16.msra.mxu0 %v2597
      %2986 = vmatmul.bf16.gmra.mxu0 %v2078
      %v2987 = vpop.f32.mrf.mxu0
      %v2988 = vadd.f32 0.0, %v2987
      %v2989 = vpop.f32.mrf.mxu0
      %2990 = vdwg.mxu0
      %2991 = vmatpush.bf16.msra.mxu0 %v2717
      %2992 = vmatpush.bf16.msra.mxu0 %v2709
      %2993 = vmatpush.bf16.msra.mxu0 %v2701
      %2994 = vmatpush.bf16.msra.mxu0 %v2693
      %2995 = vmatpush.bf16.msra.mxu0 %v2685
      %2996 = vmatpush.bf16.msra.mxu0 %v2677
      %2997 = vmatpush.bf16.msra.mxu0 %v2669
      %2998 = vmatpush.bf16.msra.mxu0 %v2661
      %2999 = vmatmul.bf16.gmra.mxu0 %v2079
      %v3000 = vpop.f32.mrf.mxu0
      %v3001 = vadd.f32 %v2988, %v3000
      %v3002 = vpop.f32.mrf.mxu0
      %3003 = vdwg.mxu0
      %3004 = vmatpush.bf16.msra.mxu0 %v2654
      %3005 = vmatpush.bf16.msra.mxu0 %v2646
      %3006 = vmatpush.bf16.msra.mxu0 %v2638
      %3007 = vmatpush.bf16.msra.mxu0 %v2630
      %3008 = vmatpush.bf16.msra.mxu0 %v2622
      %3009 = vmatpush.bf16.msra.mxu0 %v2614
      %3010 = vmatpush.bf16.msra.mxu0 %v2606
      %3011 = vmatpush.bf16.msra.mxu0 %v2598
      %3012 = vmatmul.bf16.gmra.mxu0 %v2078
      %v3013 = vpop.f32.mrf.mxu0
      %v3014 = vadd.f32 0.0, %v3013
      %v3015 = vpop.f32.mrf.mxu0
      %3016 = vdwg.mxu0
      %3017 = vmatpush.bf16.msra.mxu0 %v2718
      %3018 = vmatpush.bf16.msra.mxu0 %v2710
      %3019 = vmatpush.bf16.msra.mxu0 %v2702
      %3020 = vmatpush.bf16.msra.mxu0 %v2694
      %3021 = vmatpush.bf16.msra.mxu0 %v2686
      %3022 = vmatpush.bf16.msra.mxu0 %v2678
      %3023 = vmatpush.bf16.msra.mxu0 %v2670
      %3024 = vmatpush.bf16.msra.mxu0 %v2662
      %3025 = vmatmul.bf16.gmra.mxu0 %v2079
      %v3026 = vpop.f32.mrf.mxu0
      %v3027 = vadd.f32 %v3014, %v3026
      %v3028 = vpop.f32.mrf.mxu0
      %3029 = vdwg.mxu0
      %3030 = vmatpush.bf16.msra.mxu0 %v2655
      %3031 = vmatpush.bf16.msra.mxu0 %v2647
      %3032 = vmatpush.bf16.msra.mxu0 %v2639
      %3033 = vmatpush.bf16.msra.mxu0 %v2631
      %3034 = vmatpush.bf16.msra.mxu0 %v2623
      %3035 = vmatpush.bf16.msra.mxu0 %v2615
      %3036 = vmatpush.bf16.msra.mxu0 %v2607
      %3037 = vmatpush.bf16.msra.mxu0 %v2599
      %3038 = vmatmul.bf16.gmra.mxu0 %v2078
      %v3039 = vpop.f32.mrf.mxu0
      %v3040 = vadd.f32 0.0, %v3039
      %v3041 = vpop.f32.mrf.mxu0
      %3042 = vdwg.mxu0
      %3043 = vmatpush.bf16.msra.mxu0 %v2719
      %3044 = vmatpush.bf16.msra.mxu0 %v2711
      %3045 = vmatpush.bf16.msra.mxu0 %v2703
      %3046 = vmatpush.bf16.msra.mxu0 %v2695
      %3047 = vmatpush.bf16.msra.mxu0 %v2687
      %3048 = vmatpush.bf16.msra.mxu0 %v2679
      %3049 = vmatpush.bf16.msra.mxu0 %v2671
      %3050 = vmatpush.bf16.msra.mxu0 %v2663
      %3051 = vmatmul.bf16.gmra.mxu0 %v2079
      %v3052 = vpop.f32.mrf.mxu0
      %v3053 = vadd.f32 %v3040, %v3052
      %v3054 = vpop.f32.mrf.mxu0
      %3055 = vdwg.mxu0
      %v3056 = vadd.f32 %v2057, %v2871
      %v3057 = vadd.f32 %v2058, %v2897
      %v3058 = vadd.f32 %v2059, %v2923
      %v3059 = vadd.f32 %v2060, %v2949
      %v3060 = vadd.f32 %v2061, %v2975
      %v3061 = vadd.f32 %v2062, %v3001
      %v3062 = vadd.f32 %v2063, %v3027
      %v3063 = vadd.f32 %v2064, %v3053
      %v3064 = vpack.c.bf16 %v2045, %v2045
      %v3065 = vpack.c.bf16 %v2046, %v2046
      %s3066 = scalar_lea.vmem %s3, 1024
      %v3067 = vld [vmem:[%s3066] sm:$0xff]
      %v3068 = vld [vmem:[%s3066 + $0x8] sm:$0xff]
      %v3069 = vld [vmem:[%s3066 + $0x10] sm:$0xff]
      %v3070 = vld [vmem:[%s3066 + $0x18] sm:$0xff]
      %v3071 = vld [vmem:[%s3066 + $0x20] sm:$0xff]
      %v3072 = vld [vmem:[%s3066 + $0x28] sm:$0xff]
      %v3073 = vld [vmem:[%s3066 + $0x30] sm:$0xff]
      %v3074 = vld [vmem:[%s3066 + $0x38] sm:$0xff]
      %v3075 = vld [vmem:[%s3066 + $0x40] sm:$0xff]
      %v3076 = vld [vmem:[%s3066 + $0x48] sm:$0xff]
      %v3077 = vld [vmem:[%s3066 + $0x50] sm:$0xff]
      %v3078 = vld [vmem:[%s3066 + $0x58] sm:$0xff]
      %v3079 = vld [vmem:[%s3066 + $0x60] sm:$0xff]
      %v3080 = vld [vmem:[%s3066 + $0x68] sm:$0xff]
      %v3081 = vld [vmem:[%s3066 + $0x70] sm:$0xff]
      %v3082 = vld [vmem:[%s3066 + $0x78] sm:$0xff]
      %v3083 = vld [vmem:[%s3066 + $0x80] sm:$0xff]
      %v3084 = vld [vmem:[%s3066 + $0x88] sm:$0xff]
      %v3085 = vld [vmem:[%s3066 + $0x90] sm:$0xff]
      %v3086 = vld [vmem:[%s3066 + $0x98] sm:$0xff]
      %v3087 = vld [vmem:[%s3066 + $0xa0] sm:$0xff]
      %v3088 = vld [vmem:[%s3066 + $0xa8] sm:$0xff]
      %v3089 = vld [vmem:[%s3066 + $0xb0] sm:$0xff]
      %v3090 = vld [vmem:[%s3066 + $0xb8] sm:$0xff]
      %v3091 = vld [vmem:[%s3066 + $0xc0] sm:$0xff]
      %v3092 = vld [vmem:[%s3066 + $0xc8] sm:$0xff]
      %v3093 = vld [vmem:[%s3066 + $0xd0] sm:$0xff]
      %v3094 = vld [vmem:[%s3066 + $0xd8] sm:$0xff]
      %v3095 = vld [vmem:[%s3066 + $0xe0] sm:$0xff]
      %v3096 = vld [vmem:[%s3066 + $0xe8] sm:$0xff]
      %v3097 = vld [vmem:[%s3066 + $0xf0] sm:$0xff]
      %v3098 = vld [vmem:[%s3066 + $0xf8] sm:$0xff]
      %v3099 = vld [vmem:[%s3066 + $0x100] sm:$0xff]
      %v3100 = vld [vmem:[%s3066 + $0x108] sm:$0xff]
      %v3101 = vld [vmem:[%s3066 + $0x110] sm:$0xff]
      %v3102 = vld [vmem:[%s3066 + $0x118] sm:$0xff]
      %v3103 = vld [vmem:[%s3066 + $0x120] sm:$0xff]
      %v3104 = vld [vmem:[%s3066 + $0x128] sm:$0xff]
      %v3105 = vld [vmem:[%s3066 + $0x130] sm:$0xff]
      %v3106 = vld [vmem:[%s3066 + $0x138] sm:$0xff]
      %v3107 = vld [vmem:[%s3066 + $0x140] sm:$0xff]
      %v3108 = vld [vmem:[%s3066 + $0x148] sm:$0xff]
      %v3109 = vld [vmem:[%s3066 + $0x150] sm:$0xff]
      %v3110 = vld [vmem:[%s3066 + $0x158] sm:$0xff]
      %v3111 = vld [vmem:[%s3066 + $0x160] sm:$0xff]
      %v3112 = vld [vmem:[%s3066 + $0x168] sm:$0xff]
      %v3113 = vld [vmem:[%s3066 + $0x170] sm:$0xff]
      %v3114 = vld [vmem:[%s3066 + $0x178] sm:$0xff]
      %v3115 = vld [vmem:[%s3066 + $0x180] sm:$0xff]
      %v3116 = vld [vmem:[%s3066 + $0x188] sm:$0xff]
      %v3117 = vld [vmem:[%s3066 + $0x190] sm:$0xff]
      %v3118 = vld [vmem:[%s3066 + $0x198] sm:$0xff]
      %v3119 = vld [vmem:[%s3066 + $0x1a0] sm:$0xff]
      %v3120 = vld [vmem:[%s3066 + $0x1a8] sm:$0xff]
      %v3121 = vld [vmem:[%s3066 + $0x1b0] sm:$0xff]
      %v3122 = vld [vmem:[%s3066 + $0x1b8] sm:$0xff]
      %v3123 = vld [vmem:[%s3066 + $0x1c0] sm:$0xff]
      %v3124 = vld [vmem:[%s3066 + $0x1c8] sm:$0xff]
      %v3125 = vld [vmem:[%s3066 + $0x1d0] sm:$0xff]
      %v3126 = vld [vmem:[%s3066 + $0x1d8] sm:$0xff]
      %v3127 = vld [vmem:[%s3066 + $0x1e0] sm:$0xff]
      %v3128 = vld [vmem:[%s3066 + $0x1e8] sm:$0xff]
      %v3129 = vld [vmem:[%s3066 + $0x1f0] sm:$0xff]
      %v3130 = vld [vmem:[%s3066 + $0x1f8] sm:$0xff]
      %v3131 = vld [vmem:[%s3066 + $0x200] sm:$0xff]
      %v3132 = vld [vmem:[%s3066 + $0x208] sm:$0xff]
      %v3133 = vld [vmem:[%s3066 + $0x210] sm:$0xff]
      %v3134 = vld [vmem:[%s3066 + $0x218] sm:$0xff]
      %v3135 = vld [vmem:[%s3066 + $0x220] sm:$0xff]
      %v3136 = vld [vmem:[%s3066 + $0x228] sm:$0xff]
      %v3137 = vld [vmem:[%s3066 + $0x230] sm:$0xff]
      %v3138 = vld [vmem:[%s3066 + $0x238] sm:$0xff]
      %v3139 = vld [vmem:[%s3066 + $0x240] sm:$0xff]
      %v3140 = vld [vmem:[%s3066 + $0x248] sm:$0xff]
      %v3141 = vld [vmem:[%s3066 + $0x250] sm:$0xff]
      %v3142 = vld [vmem:[%s3066 + $0x258] sm:$0xff]
      %v3143 = vld [vmem:[%s3066 + $0x260] sm:$0xff]
      %v3144 = vld [vmem:[%s3066 + $0x268] sm:$0xff]
      %v3145 = vld [vmem:[%s3066 + $0x270] sm:$0xff]
      %v3146 = vld [vmem:[%s3066 + $0x278] sm:$0xff]
      %v3147 = vld [vmem:[%s3066 + $0x280] sm:$0xff]
      %v3148 = vld [vmem:[%s3066 + $0x288] sm:$0xff]
      %v3149 = vld [vmem:[%s3066 + $0x290] sm:$0xff]
      %v3150 = vld [vmem:[%s3066 + $0x298] sm:$0xff]
      %v3151 = vld [vmem:[%s3066 + $0x2a0] sm:$0xff]
      %v3152 = vld [vmem:[%s3066 + $0x2a8] sm:$0xff]
      %v3153 = vld [vmem:[%s3066 + $0x2b0] sm:$0xff]
      %v3154 = vld [vmem:[%s3066 + $0x2b8] sm:$0xff]
      %v3155 = vld [vmem:[%s3066 + $0x2c0] sm:$0xff]
      %v3156 = vld [vmem:[%s3066 + $0x2c8] sm:$0xff]
      %v3157 = vld [vmem:[%s3066 + $0x2d0] sm:$0xff]
      %v3158 = vld [vmem:[%s3066 + $0x2d8] sm:$0xff]
      %v3159 = vld [vmem:[%s3066 + $0x2e0] sm:$0xff]
      %v3160 = vld [vmem:[%s3066 + $0x2e8] sm:$0xff]
      %v3161 = vld [vmem:[%s3066 + $0x2f0] sm:$0xff]
      %v3162 = vld [vmem:[%s3066 + $0x2f8] sm:$0xff]
      %v3163 = vld [vmem:[%s3066 + $0x300] sm:$0xff]
      %v3164 = vld [vmem:[%s3066 + $0x308] sm:$0xff]
      %v3165 = vld [vmem:[%s3066 + $0x310] sm:$0xff]
      %v3166 = vld [vmem:[%s3066 + $0x318] sm:$0xff]
      %v3167 = vld [vmem:[%s3066 + $0x320] sm:$0xff]
      %v3168 = vld [vmem:[%s3066 + $0x328] sm:$0xff]
      %v3169 = vld [vmem:[%s3066 + $0x330] sm:$0xff]
      %v3170 = vld [vmem:[%s3066 + $0x338] sm:$0xff]
      %v3171 = vld [vmem:[%s3066 + $0x340] sm:$0xff]
      %v3172 = vld [vmem:[%s3066 + $0x348] sm:$0xff]
      %v3173 = vld [vmem:[%s3066 + $0x350] sm:$0xff]
      %v3174 = vld [vmem:[%s3066 + $0x358] sm:$0xff]
      %v3175 = vld [vmem:[%s3066 + $0x360] sm:$0xff]
      %v3176 = vld [vmem:[%s3066 + $0x368] sm:$0xff]
      %v3177 = vld [vmem:[%s3066 + $0x370] sm:$0xff]
      %v3178 = vld [vmem:[%s3066 + $0x378] sm:$0xff]
      %v3179 = vld [vmem:[%s3066 + $0x380] sm:$0xff]
      %v3180 = vld [vmem:[%s3066 + $0x388] sm:$0xff]
      %v3181 = vld [vmem:[%s3066 + $0x390] sm:$0xff]
      %v3182 = vld [vmem:[%s3066 + $0x398] sm:$0xff]
      %v3183 = vld [vmem:[%s3066 + $0x3a0] sm:$0xff]
      %v3184 = vld [vmem:[%s3066 + $0x3a8] sm:$0xff]
      %v3185 = vld [vmem:[%s3066 + $0x3b0] sm:$0xff]
      %v3186 = vld [vmem:[%s3066 + $0x3b8] sm:$0xff]
      %v3187 = vld [vmem:[%s3066 + $0x3c0] sm:$0xff]
      %v3188 = vld [vmem:[%s3066 + $0x3c8] sm:$0xff]
      %v3189 = vld [vmem:[%s3066 + $0x3d0] sm:$0xff]
      %v3190 = vld [vmem:[%s3066 + $0x3d8] sm:$0xff]
      %v3191 = vld [vmem:[%s3066 + $0x3e0] sm:$0xff]
      %v3192 = vld [vmem:[%s3066 + $0x3e8] sm:$0xff]
      %v3193 = vld [vmem:[%s3066 + $0x3f0] sm:$0xff]
      %v3194 = vld [vmem:[%s3066 + $0x3f8] sm:$0xff]
      %v3323 = vunpack.c.l.b16 %v3067
      %v3324 = vunpack.c.h.b16 %v3067
      %v3325 = vunpack.c.l.b16 %v3068
      %v3326 = vunpack.c.h.b16 %v3068
      %v3327 = vunpack.c.l.b16 %v3069
      %v3328 = vunpack.c.h.b16 %v3069
      %v3329 = vunpack.c.l.b16 %v3070
      %v3330 = vunpack.c.h.b16 %v3070
      %v3331 = vunpack.c.l.b16 %v3071
      %v3332 = vunpack.c.h.b16 %v3071
      %v3333 = vunpack.c.l.b16 %v3072
      %v3334 = vunpack.c.h.b16 %v3072
      %v3335 = vunpack.c.l.b16 %v3073
      %v3336 = vunpack.c.h.b16 %v3073
      %v3337 = vunpack.c.l.b16 %v3074
      %v3338 = vunpack.c.h.b16 %v3074
      %v3339 = vunpack.c.l.b16 %v3075
      %v3340 = vunpack.c.h.b16 %v3075
      %v3341 = vunpack.c.l.b16 %v3076
      %v3342 = vunpack.c.h.b16 %v3076
      %v3343 = vunpack.c.l.b16 %v3077
      %v3344 = vunpack.c.h.b16 %v3077
      %v3345 = vunpack.c.l.b16 %v3078
      %v3346 = vunpack.c.h.b16 %v3078
      %v3347 = vunpack.c.l.b16 %v3079
      %v3348 = vunpack.c.h.b16 %v3079
      %v3349 = vunpack.c.l.b16 %v3080
      %v3350 = vunpack.c.h.b16 %v3080
      %v3351 = vunpack.c.l.b16 %v3081
      %v3352 = vunpack.c.h.b16 %v3081
      %v3353 = vunpack.c.l.b16 %v3082
      %v3354 = vunpack.c.h.b16 %v3082
      %v3355 = vunpack.c.l.b16 %v3083
      %v3356 = vunpack.c.h.b16 %v3083
      %v3357 = vunpack.c.l.b16 %v3084
      %v3358 = vunpack.c.h.b16 %v3084
      %v3359 = vunpack.c.l.b16 %v3085
      %v3360 = vunpack.c.h.b16 %v3085
      %v3361 = vunpack.c.l.b16 %v3086
      %v3362 = vunpack.c.h.b16 %v3086
      %v3363 = vunpack.c.l.b16 %v3087
      %v3364 = vunpack.c.h.b16 %v3087
      %v3365 = vunpack.c.l.b16 %v3088
      %v3366 = vunpack.c.h.b16 %v3088
      %v3367 = vunpack.c.l.b16 %v3089
      %v3368 = vunpack.c.h.b16 %v3089
      %v3369 = vunpack.c.l.b16 %v3090
      %v3370 = vunpack.c.h.b16 %v3090
      %v3371 = vunpack.c.l.b16 %v3091
      %v3372 = vunpack.c.h.b16 %v3091
      %v3373 = vunpack.c.l.b16 %v3092
      %v3374 = vunpack.c.h.b16 %v3092
      %v3375 = vunpack.c.l.b16 %v3093
      %v3376 = vunpack.c.h.b16 %v3093
      %v3377 = vunpack.c.l.b16 %v3094
      %v3378 = vunpack.c.h.b16 %v3094
      %v3379 = vunpack.c.l.b16 %v3095
      %v3380 = vunpack.c.h.b16 %v3095
      %v3381 = vunpack.c.l.b16 %v3096
      %v3382 = vunpack.c.h.b16 %v3096
      %v3383 = vunpack.c.l.b16 %v3097
      %v3384 = vunpack.c.h.b16 %v3097
      %v3385 = vunpack.c.l.b16 %v3098
      %v3386 = vunpack.c.h.b16 %v3098
      %v3387 = vunpack.c.l.b16 %v3099
      %v3388 = vunpack.c.h.b16 %v3099
      %v3389 = vunpack.c.l.b16 %v3100
      %v3390 = vunpack.c.h.b16 %v3100
      %v3391 = vunpack.c.l.b16 %v3101
      %v3392 = vunpack.c.h.b16 %v3101
      %v3393 = vunpack.c.l.b16 %v3102
      %v3394 = vunpack.c.h.b16 %v3102
      %v3395 = vunpack.c.l.b16 %v3103
      %v3396 = vunpack.c.h.b16 %v3103
      %v3397 = vunpack.c.l.b16 %v3104
      %v3398 = vunpack.c.h.b16 %v3104
      %v3399 = vunpack.c.l.b16 %v3105
      %v3400 = vunpack.c.h.b16 %v3105
      %v3401 = vunpack.c.l.b16 %v3106
      %v3402 = vunpack.c.h.b16 %v3106
      %v3403 = vunpack.c.l.b16 %v3107
      %v3404 = vunpack.c.h.b16 %v3107
      %v3405 = vunpack.c.l.b16 %v3108
      %v3406 = vunpack.c.h.b16 %v3108
      %v3407 = vunpack.c.l.b16 %v3109
      %v3408 = vunpack.c.h.b16 %v3109
      %v3409 = vunpack.c.l.b16 %v3110
      %v3410 = vunpack.c.h.b16 %v3110
      %v3411 = vunpack.c.l.b16 %v3111
      %v3412 = vunpack.c.h.b16 %v3111
      %v3413 = vunpack.c.l.b16 %v3112
      %v3414 = vunpack.c.h.b16 %v3112
      %v3415 = vunpack.c.l.b16 %v3113
      %v3416 = vunpack.c.h.b16 %v3113
      %v3417 = vunpack.c.l.b16 %v3114
      %v3418 = vunpack.c.h.b16 %v3114
      %v3419 = vunpack.c.l.b16 %v3115
      %v3420 = vunpack.c.h.b16 %v3115
      %v3421 = vunpack.c.l.b16 %v3116
      %v3422 = vunpack.c.h.b16 %v3116
      %v3423 = vunpack.c.l.b16 %v3117
      %v3424 = vunpack.c.h.b16 %v3117
      %v3425 = vunpack.c.l.b16 %v3118
      %v3426 = vunpack.c.h.b16 %v3118
      %v3427 = vunpack.c.l.b16 %v3119
      %v3428 = vunpack.c.h.b16 %v3119
      %v3429 = vunpack.c.l.b16 %v3120
      %v3430 = vunpack.c.h.b16 %v3120
      %v3431 = vunpack.c.l.b16 %v3121
      %v3432 = vunpack.c.h.b16 %v3121
      %v3433 = vunpack.c.l.b16 %v3122
      %v3434 = vunpack.c.h.b16 %v3122
      %v3435 = vunpack.c.l.b16 %v3123
      %v3436 = vunpack.c.h.b16 %v3123
      %v3437 = vunpack.c.l.b16 %v3124
      %v3438 = vunpack.c.h.b16 %v3124
      %v3439 = vunpack.c.l.b16 %v3125
      %v3440 = vunpack.c.h.b16 %v3125
      %v3441 = vunpack.c.l.b16 %v3126
      %v3442 = vunpack.c.h.b16 %v3126
      %v3443 = vunpack.c.l.b16 %v3127
      %v3444 = vunpack.c.h.b16 %v3127
      %v3445 = vunpack.c.l.b16 %v3128
      %v3446 = vunpack.c.h.b16 %v3128
      %v3447 = vunpack.c.l.b16 %v3129
      %v3448 = vunpack.c.h.b16 %v3129
      %v3449 = vunpack.c.l.b16 %v3130
      %v3450 = vunpack.c.h.b16 %v3130
      %v3451 = vunpack.c.l.b16 %v3131
      %v3452 = vunpack.c.h.b16 %v3131
      %v3453 = vunpack.c.l.b16 %v3132
      %v3454 = vunpack.c.h.b16 %v3132
      %v3455 = vunpack.c.l.b16 %v3133
      %v3456 = vunpack.c.h.b16 %v3133
      %v3457 = vunpack.c.l.b16 %v3134
      %v3458 = vunpack.c.h.b16 %v3134
      %v3459 = vunpack.c.l.b16 %v3135
      %v3460 = vunpack.c.h.b16 %v3135
      %v3461 = vunpack.c.l.b16 %v3136
      %v3462 = vunpack.c.h.b16 %v3136
      %v3463 = vunpack.c.l.b16 %v3137
      %v3464 = vunpack.c.h.b16 %v3137
      %v3465 = vunpack.c.l.b16 %v3138
      %v3466 = vunpack.c.h.b16 %v3138
      %v3467 = vunpack.c.l.b16 %v3139
      %v3468 = vunpack.c.h.b16 %v3139
      %v3469 = vunpack.c.l.b16 %v3140
      %v3470 = vunpack.c.h.b16 %v3140
      %v3471 = vunpack.c.l.b16 %v3141
      %v3472 = vunpack.c.h.b16 %v3141
      %v3473 = vunpack.c.l.b16 %v3142
      %v3474 = vunpack.c.h.b16 %v3142
      %v3475 = vunpack.c.l.b16 %v3143
      %v3476 = vunpack.c.h.b16 %v3143
      %v3477 = vunpack.c.l.b16 %v3144
      %v3478 = vunpack.c.h.b16 %v3144
      %v3479 = vunpack.c.l.b16 %v3145
      %v3480 = vunpack.c.h.b16 %v3145
      %v3481 = vunpack.c.l.b16 %v3146
      %v3482 = vunpack.c.h.b16 %v3146
      %v3483 = vunpack.c.l.b16 %v3147
      %v3484 = vunpack.c.h.b16 %v3147
      %v3485 = vunpack.c.l.b16 %v3148
      %v3486 = vunpack.c.h.b16 %v3148
      %v3487 = vunpack.c.l.b16 %v3149
      %v3488 = vunpack.c.h.b16 %v3149
      %v3489 = vunpack.c.l.b16 %v3150
      %v3490 = vunpack.c.h.b16 %v3150
      %v3491 = vunpack.c.l.b16 %v3151
      %v3492 = vunpack.c.h.b16 %v3151
      %v3493 = vunpack.c.l.b16 %v3152
      %v3494 = vunpack.c.h.b16 %v3152
      %v3495 = vunpack.c.l.b16 %v3153
      %v3496 = vunpack.c.h.b16 %v3153
      %v3497 = vunpack.c.l.b16 %v3154
      %v3498 = vunpack.c.h.b16 %v3154
      %v3499 = vunpack.c.l.b16 %v3155
      %v3500 = vunpack.c.h.b16 %v3155
      %v3501 = vunpack.c.l.b16 %v3156
      %v3502 = vunpack.c.h.b16 %v3156
      %v3503 = vunpack.c.l.b16 %v3157
      %v3504 = vunpack.c.h.b16 %v3157
      %v3505 = vunpack.c.l.b16 %v3158
      %v3506 = vunpack.c.h.b16 %v3158
      %v3507 = vunpack.c.l.b16 %v3159
      %v3508 = vunpack.c.h.b16 %v3159
      %v3509 = vunpack.c.l.b16 %v3160
      %v3510 = vunpack.c.h.b16 %v3160
      %v3511 = vunpack.c.l.b16 %v3161
      %v3512 = vunpack.c.h.b16 %v3161
      %v3513 = vunpack.c.l.b16 %v3162
      %v3514 = vunpack.c.h.b16 %v3162
      %v3515 = vunpack.c.l.b16 %v3163
      %v3516 = vunpack.c.h.b16 %v3163
      %v3517 = vunpack.c.l.b16 %v3164
      %v3518 = vunpack.c.h.b16 %v3164
      %v3519 = vunpack.c.l.b16 %v3165
      %v3520 = vunpack.c.h.b16 %v3165
      %v3521 = vunpack.c.l.b16 %v3166
      %v3522 = vunpack.c.h.b16 %v3166
      %v3523 = vunpack.c.l.b16 %v3167
      %v3524 = vunpack.c.h.b16 %v3167
      %v3525 = vunpack.c.l.b16 %v3168
      %v3526 = vunpack.c.h.b16 %v3168
      %v3527 = vunpack.c.l.b16 %v3169
      %v3528 = vunpack.c.h.b16 %v3169
      %v3529 = vunpack.c.l.b16 %v3170
      %v3530 = vunpack.c.h.b16 %v3170
      %v3531 = vunpack.c.l.b16 %v3171
      %v3532 = vunpack.c.h.b16 %v3171
      %v3533 = vunpack.c.l.b16 %v3172
      %v3534 = vunpack.c.h.b16 %v3172
      %v3535 = vunpack.c.l.b16 %v3173
      %v3536 = vunpack.c.h.b16 %v3173
      %v3537 = vunpack.c.l.b16 %v3174
      %v3538 = vunpack.c.h.b16 %v3174
      %v3539 = vunpack.c.l.b16 %v3175
      %v3540 = vunpack.c.h.b16 %v3175
      %v3541 = vunpack.c.l.b16 %v3176
      %v3542 = vunpack.c.h.b16 %v3176
      %v3543 = vunpack.c.l.b16 %v3177
      %v3544 = vunpack.c.h.b16 %v3177
      %v3545 = vunpack.c.l.b16 %v3178
      %v3546 = vunpack.c.h.b16 %v3178
      %v3547 = vunpack.c.l.b16 %v3179
      %v3548 = vunpack.c.h.b16 %v3179
      %v3549 = vunpack.c.l.b16 %v3180
      %v3550 = vunpack.c.h.b16 %v3180
      %v3551 = vunpack.c.l.b16 %v3181
      %v3552 = vunpack.c.h.b16 %v3181
      %v3553 = vunpack.c.l.b16 %v3182
      %v3554 = vunpack.c.h.b16 %v3182
      %v3555 = vunpack.c.l.b16 %v3183
      %v3556 = vunpack.c.h.b16 %v3183
      %v3557 = vunpack.c.l.b16 %v3184
      %v3558 = vunpack.c.h.b16 %v3184
      %v3559 = vunpack.c.l.b16 %v3185
      %v3560 = vunpack.c.h.b16 %v3185
      %v3561 = vunpack.c.l.b16 %v3186
      %v3562 = vunpack.c.h.b16 %v3186
      %v3563 = vunpack.c.l.b16 %v3187
      %v3564 = vunpack.c.h.b16 %v3187
      %v3565 = vunpack.c.l.b16 %v3188
      %v3566 = vunpack.c.h.b16 %v3188
      %v3567 = vunpack.c.l.b16 %v3189
      %v3568 = vunpack.c.h.b16 %v3189
      %v3569 = vunpack.c.l.b16 %v3190
      %v3570 = vunpack.c.h.b16 %v3190
      %v3571 = vunpack.c.l.b16 %v3191
      %v3572 = vunpack.c.h.b16 %v3191
      %v3573 = vunpack.c.l.b16 %v3192
      %v3574 = vunpack.c.h.b16 %v3192
      %v3575 = vunpack.c.l.b16 %v3193
      %v3576 = vunpack.c.h.b16 %v3193
      %v3577 = vunpack.c.l.b16 %v3194
      %v3578 = vunpack.c.h.b16 %v3194
      %v3579 = vpack.c.b16 %v3331, %v3323
      %v3580 = vpack.c.b16 %v3332, %v3324
      %v3581 = vpack.c.b16 %v3333, %v3325
      %v3582 = vpack.c.b16 %v3334, %v3326
      %v3583 = vpack.c.b16 %v3335, %v3327
      %v3584 = vpack.c.b16 %v3336, %v3328
      %v3585 = vpack.c.b16 %v3337, %v3329
      %v3586 = vpack.c.b16 %v3338, %v3330
      %v3587 = vpack.c.b16 %v3347, %v3339
      %v3588 = vpack.c.b16 %v3348, %v3340
      %v3589 = vpack.c.b16 %v3349, %v3341
      %v3590 = vpack.c.b16 %v3350, %v3342
      %v3591 = vpack.c.b16 %v3351, %v3343
      %v3592 = vpack.c.b16 %v3352, %v3344
      %v3593 = vpack.c.b16 %v3353, %v3345
      %v3594 = vpack.c.b16 %v3354, %v3346
      %v3595 = vpack.c.b16 %v3363, %v3355
      %v3596 = vpack.c.b16 %v3364, %v3356
      %v3597 = vpack.c.b16 %v3365, %v3357
      %v3598 = vpack.c.b16 %v3366, %v3358
      %v3599 = vpack.c.b16 %v3367, %v3359
      %v3600 = vpack.c.b16 %v3368, %v3360
      %v3601 = vpack.c.b16 %v3369, %v3361
      %v3602 = vpack.c.b16 %v3370, %v3362
      %v3603 = vpack.c.b16 %v3379, %v3371
      %v3604 = vpack.c.b16 %v3380, %v3372
      %v3605 = vpack.c.b16 %v3381, %v3373
      %v3606 = vpack.c.b16 %v3382, %v3374
      %v3607 = vpack.c.b16 %v3383, %v3375
      %v3608 = vpack.c.b16 %v3384, %v3376
      %v3609 = vpack.c.b16 %v3385, %v3377
      %v3610 = vpack.c.b16 %v3386, %v3378
      %v3611 = vpack.c.b16 %v3395, %v3387
      %v3612 = vpack.c.b16 %v3396, %v3388
      %v3613 = vpack.c.b16 %v3397, %v3389
      %v3614 = vpack.c.b16 %v3398, %v3390
      %v3615 = vpack.c.b16 %v3399, %v3391
      %v3616 = vpack.c.b16 %v3400, %v3392
      %v3617 = vpack.c.b16 %v3401, %v3393
      %v3618 = vpack.c.b16 %v3402, %v3394
      %v3619 = vpack.c.b16 %v3411, %v3403
      %v3620 = vpack.c.b16 %v3412, %v3404
      %v3621 = vpack.c.b16 %v3413, %v3405
      %v3622 = vpack.c.b16 %v3414, %v3406
      %v3623 = vpack.c.b16 %v3415, %v3407
      %v3624 = vpack.c.b16 %v3416, %v3408
      %v3625 = vpack.c.b16 %v3417, %v3409
      %v3626 = vpack.c.b16 %v3418, %v3410
      %v3627 = vpack.c.b16 %v3427, %v3419
      %v3628 = vpack.c.b16 %v3428, %v3420
      %v3629 = vpack.c.b16 %v3429, %v3421
      %v3630 = vpack.c.b16 %v3430, %v3422
      %v3631 = vpack.c.b16 %v3431, %v3423
      %v3632 = vpack.c.b16 %v3432, %v3424
      %v3633 = vpack.c.b16 %v3433, %v3425
      %v3634 = vpack.c.b16 %v3434, %v3426
      %v3635 = vpack.c.b16 %v3443, %v3435
      %v3636 = vpack.c.b16 %v3444, %v3436
      %v3637 = vpack.c.b16 %v3445, %v3437
      %v3638 = vpack.c.b16 %v3446, %v3438
      %v3639 = vpack.c.b16 %v3447, %v3439
      %v3640 = vpack.c.b16 %v3448, %v3440
      %v3641 = vpack.c.b16 %v3449, %v3441
      %v3642 = vpack.c.b16 %v3450, %v3442
      %v3643 = vpack.c.b16 %v3459, %v3451
      %v3644 = vpack.c.b16 %v3460, %v3452
      %v3645 = vpack.c.b16 %v3461, %v3453
      %v3646 = vpack.c.b16 %v3462, %v3454
      %v3647 = vpack.c.b16 %v3463, %v3455
      %v3648 = vpack.c.b16 %v3464, %v3456
      %v3649 = vpack.c.b16 %v3465, %v3457
      %v3650 = vpack.c.b16 %v3466, %v3458
      %v3651 = vpack.c.b16 %v3475, %v3467
      %v3652 = vpack.c.b16 %v3476, %v3468
      %v3653 = vpack.c.b16 %v3477, %v3469
      %v3654 = vpack.c.b16 %v3478, %v3470
      %v3655 = vpack.c.b16 %v3479, %v3471
      %v3656 = vpack.c.b16 %v3480, %v3472
      %v3657 = vpack.c.b16 %v3481, %v3473
      %v3658 = vpack.c.b16 %v3482, %v3474
      %v3659 = vpack.c.b16 %v3491, %v3483
      %v3660 = vpack.c.b16 %v3492, %v3484
      %v3661 = vpack.c.b16 %v3493, %v3485
      %v3662 = vpack.c.b16 %v3494, %v3486
      %v3663 = vpack.c.b16 %v3495, %v3487
      %v3664 = vpack.c.b16 %v3496, %v3488
      %v3665 = vpack.c.b16 %v3497, %v3489
      %v3666 = vpack.c.b16 %v3498, %v3490
      %v3667 = vpack.c.b16 %v3507, %v3499
      %v3668 = vpack.c.b16 %v3508, %v3500
      %v3669 = vpack.c.b16 %v3509, %v3501
      %v3670 = vpack.c.b16 %v3510, %v3502
      %v3671 = vpack.c.b16 %v3511, %v3503
      %v3672 = vpack.c.b16 %v3512, %v3504
      %v3673 = vpack.c.b16 %v3513, %v3505
      %v3674 = vpack.c.b16 %v3514, %v3506
      %v3675 = vpack.c.b16 %v3523, %v3515
      %v3676 = vpack.c.b16 %v3524, %v3516
      %v3677 = vpack.c.b16 %v3525, %v3517
      %v3678 = vpack.c.b16 %v3526, %v3518
      %v3679 = vpack.c.b16 %v3527, %v3519
      %v3680 = vpack.c.b16 %v3528, %v3520
      %v3681 = vpack.c.b16 %v3529, %v3521
      %v3682 = vpack.c.b16 %v3530, %v3522
      %v3683 = vpack.c.b16 %v3539, %v3531
      %v3684 = vpack.c.b16 %v3540, %v3532
      %v3685 = vpack.c.b16 %v3541, %v3533
      %v3686 = vpack.c.b16 %v3542, %v3534
      %v3687 = vpack.c.b16 %v3543, %v3535
      %v3688 = vpack.c.b16 %v3544, %v3536
      %v3689 = vpack.c.b16 %v3545, %v3537
      %v3690 = vpack.c.b16 %v3546, %v3538
      %v3691 = vpack.c.b16 %v3555, %v3547
      %v3692 = vpack.c.b16 %v3556, %v3548
      %v3693 = vpack.c.b16 %v3557, %v3549
      %v3694 = vpack.c.b16 %v3558, %v3550
      %v3695 = vpack.c.b16 %v3559, %v3551
      %v3696 = vpack.c.b16 %v3560, %v3552
      %v3697 = vpack.c.b16 %v3561, %v3553
      %v3698 = vpack.c.b16 %v3562, %v3554
      %v3699 = vpack.c.b16 %v3571, %v3563
      %v3700 = vpack.c.b16 %v3572, %v3564
      %v3701 = vpack.c.b16 %v3573, %v3565
      %v3702 = vpack.c.b16 %v3574, %v3566
      %v3703 = vpack.c.b16 %v3575, %v3567
      %v3704 = vpack.c.b16 %v3576, %v3568
      %v3705 = vpack.c.b16 %v3577, %v3569
      %v3706 = vpack.c.b16 %v3578, %v3570
      %3835 = vmatpush.bf16.msra.mxu0 %v3635
      %3836 = vmatpush.bf16.msra.mxu0 %v3627
      %3837 = vmatpush.bf16.msra.mxu0 %v3619
      %3838 = vmatpush.bf16.msra.mxu0 %v3611
      %3839 = vmatpush.bf16.msra.mxu0 %v3603
      %3840 = vmatpush.bf16.msra.mxu0 %v3595
      %3841 = vmatpush.bf16.msra.mxu0 %v3587
      %3842 = vmatpush.bf16.msra.mxu0 %v3579
      %3843 = vmatmul.bf16.gmra.mxu0 %v3064
      %v3844 = vpop.f32.mrf.mxu0
      %v3845 = vadd.f32 0.0, %v3844
      %v3846 = vpop.f32.mrf.mxu0
      %3847 = vdwg.mxu0
      %3848 = vmatpush.bf16.msra.mxu0 %v3699
      %3849 = vmatpush.bf16.msra.mxu0 %v3691
      %3850 = vmatpush.bf16.msra.mxu0 %v3683
      %3851 = vmatpush.bf16.msra.mxu0 %v3675
      %3852 = vmatpush.bf16.msra.mxu0 %v3667
      %3853 = vmatpush.bf16.msra.mxu0 %v3659
      %3854 = vmatpush.bf16.msra.mxu0 %v3651
      %3855 = vmatpush.bf16.msra.mxu0 %v3643
      %3856 = vmatmul.bf16.gmra.mxu0 %v3065
      %v3857 = vpop.f32.mrf.mxu0
      %v3858 = vadd.f32 %v3845, %v3857
      %v3859 = vpop.f32.mrf.mxu0
      %3860 = vdwg.mxu0
      %3861 = vmatpush.bf16.msra.mxu0 %v3636
      %3862 = vmatpush.bf16.msra.mxu0 %v3628
      %3863 = vmatpush.bf16.msra.mxu0 %v3620
      %3864 = vmatpush.bf16.msra.mxu0 %v3612
      %3865 = vmatpush.bf16.msra.mxu0 %v3604
      %3866 = vmatpush.bf16.msra.mxu0 %v3596
      %3867 = vmatpush.bf16.msra.mxu0 %v3588
      %3868 = vmatpush.bf16.msra.mxu0 %v3580
      %3869 = vmatmul.bf16.gmra.mxu0 %v3064
      %v3870 = vpop.f32.mrf.mxu0
      %v3871 = vadd.f32 0.0, %v3870
      %v3872 = vpop.f32.mrf.mxu0
      %3873 = vdwg.mxu0
      %3874 = vmatpush.bf16.msra.mxu0 %v3700
      %3875 = vmatpush.bf16.msra.mxu0 %v3692
      %3876 = vmatpush.bf16.msra.mxu0 %v3684
      %3877 = vmatpush.bf16.msra.mxu0 %v3676
      %3878 = vmatpush.bf16.msra.mxu0 %v3668
      %3879 = vmatpush.bf16.msra.mxu0 %v3660
      %3880 = vmatpush.bf16.msra.mxu0 %v3652
      %3881 = vmatpush.bf16.msra.mxu0 %v3644
      %3882 = vmatmul.bf16.gmra.mxu0 %v3065
      %v3883 = vpop.f32.mrf.mxu0
      %v3884 = vadd.f32 %v3871, %v3883
      %v3885 = vpop.f32.mrf.mxu0
      %3886 = vdwg.mxu0
      %3887 = vmatpush.bf16.msra.mxu0 %v3637
      %3888 = vmatpush.bf16.msra.mxu0 %v3629
      %3889 = vmatpush.bf16.msra.mxu0 %v3621
      %3890 = vmatpush.bf16.msra.mxu0 %v3613
      %3891 = vmatpush.bf16.msra.mxu0 %v3605
      %3892 = vmatpush.bf16.msra.mxu0 %v3597
      %3893 = vmatpush.bf16.msra.mxu0 %v3589
      %3894 = vmatpush.bf16.msra.mxu0 %v3581
      %3895 = vmatmul.bf16.gmra.mxu0 %v3064
      %v3896 = vpop.f32.mrf.mxu0
      %v3897 = vadd.f32 0.0, %v3896
      %v3898 = vpop.f32.mrf.mxu0
      %3899 = vdwg.mxu0
      %3900 = vmatpush.bf16.msra.mxu0 %v3701
      %3901 = vmatpush.bf16.msra.mxu0 %v3693
      %3902 = vmatpush.bf16.msra.mxu0 %v3685
      %3903 = vmatpush.bf16.msra.mxu0 %v3677
      %3904 = vmatpush.bf16.msra.mxu0 %v3669
      %3905 = vmatpush.bf16.msra.mxu0 %v3661
      %3906 = vmatpush.bf16.msra.mxu0 %v3653
      %3907 = vmatpush.bf16.msra.mxu0 %v3645
      %3908 = vmatmul.bf16.gmra.mxu0 %v3065
      %v3909 = vpop.f32.mrf.mxu0
      %v3910 = vadd.f32 %v3897, %v3909
      %v3911 = vpop.f32.mrf.mxu0
      %3912 = vdwg.mxu0
      %3913 = vmatpush.bf16.msra.mxu0 %v3638
      %3914 = vmatpush.bf16.msra.mxu0 %v3630
      %3915 = vmatpush.bf16.msra.mxu0 %v3622
      %3916 = vmatpush.bf16.msra.mxu0 %v3614
      %3917 = vmatpush.bf16.msra.mxu0 %v3606
      %3918 = vmatpush.bf16.msra.mxu0 %v3598
      %3919 = vmatpush.bf16.msra.mxu0 %v3590
      %3920 = vmatpush.bf16.msra.mxu0 %v3582
      %3921 = vmatmul.bf16.gmra.mxu0 %v3064
      %v3922 = vpop.f32.mrf.mxu0
      %v3923 = vadd.f32 0.0, %v3922
      %v3924 = vpop.f32.mrf.mxu0
      %3925 = vdwg.mxu0
      %3926 = vmatpush.bf16.msra.mxu0 %v3702
      %3927 = vmatpush.bf16.msra.mxu0 %v3694
      %3928 = vmatpush.bf16.msra.mxu0 %v3686
      %3929 = vmatpush.bf16.msra.mxu0 %v3678
      %3930 = vmatpush.bf16.msra.mxu0 %v3670
      %3931 = vmatpush.bf16.msra.mxu0 %v3662
      %3932 = vmatpush.bf16.msra.mxu0 %v3654
      %3933 = vmatpush.bf16.msra.mxu0 %v3646
      %3934 = vmatmul.bf16.gmra.mxu0 %v3065
      %v3935 = vpop.f32.mrf.mxu0
      %v3936 = vadd.f32 %v3923, %v3935
      %v3937 = vpop.f32.mrf.mxu0
      %3938 = vdwg.mxu0
      %3939 = vmatpush.bf16.msra.mxu0 %v3639
      %3940 = vmatpush.bf16.msra.mxu0 %v3631
      %3941 = vmatpush.bf16.msra.mxu0 %v3623
      %3942 = vmatpush.bf16.msra.mxu0 %v3615
      %3943 = vmatpush.bf16.msra.mxu0 %v3607
      %3944 = vmatpush.bf16.msra.mxu0 %v3599
      %3945 = vmatpush.bf16.msra.mxu0 %v3591
      %3946 = vmatpush.bf16.msra.mxu0 %v3583
      %3947 = vmatmul.bf16.gmra.mxu0 %v3064
      %v3948 = vpop.f32.mrf.mxu0
      %v3949 = vadd.f32 0.0, %v3948
      %v3950 = vpop.f32.mrf.mxu0
      %3951 = vdwg.mxu0
      %3952 = vmatpush.bf16.msra.mxu0 %v3703
      %3953 = vmatpush.bf16.msra.mxu0 %v3695
      %3954 = vmatpush.bf16.msra.mxu0 %v3687
      %3955 = vmatpush.bf16.msra.mxu0 %v3679
      %3956 = vmatpush.bf16.msra.mxu0 %v3671
      %3957 = vmatpush.bf16.msra.mxu0 %v3663
      %3958 = vmatpush.bf16.msra.mxu0 %v3655
      %3959 = vmatpush.bf16.msra.mxu0 %v3647
      %3960 = vmatmul.bf16.gmra.mxu0 %v3065
      %v3961 = vpop.f32.mrf.mxu0
      %v3962 = vadd.f32 %v3949, %v3961
      %v3963 = vpop.f32.mrf.mxu0
      %3964 = vdwg.mxu0
      %3965 = vmatpush.bf16.msra.mxu0 %v3640
      %3966 = vmatpush.bf16.msra.mxu0 %v3632
      %3967 = vmatpush.bf16.msra.mxu0 %v3624
      %3968 = vmatpush.bf16.msra.mxu0 %v3616
      %3969 = vmatpush.bf16.msra.mxu0 %v3608
      %3970 = vmatpush.bf16.msra.mxu0 %v3600
      %3971 = vmatpush.bf16.msra.mxu0 %v3592
      %3972 = vmatpush.bf16.msra.mxu0 %v3584
      %3973 = vmatmul.bf16.gmra.mxu0 %v3064
      %v3974 = vpop.f32.mrf.mxu0
      %v3975 = vadd.f32 0.0, %v3974
      %v3976 = vpop.f32.mrf.mxu0
      %3977 = vdwg.mxu0
      %3978 = vmatpush.bf16.msra.mxu0 %v3704
      %3979 = vmatpush.bf16.msra.mxu0 %v3696
      %3980 = vmatpush.bf16.msra.mxu0 %v3688
      %3981 = vmatpush.bf16.msra.mxu0 %v3680
      %3982 = vmatpush.bf16.msra.mxu0 %v3672
      %3983 = vmatpush.bf16.msra.mxu0 %v3664
      %3984 = vmatpush.bf16.msra.mxu0 %v3656
      %3985 = vmatpush.bf16.msra.mxu0 %v3648
      %3986 = vmatmul.bf16.gmra.mxu0 %v3065
      %v3987 = vpop.f32.mrf.mxu0
      %v3988 = vadd.f32 %v3975, %v3987
      %v3989 = vpop.f32.mrf.mxu0
      %3990 = vdwg.mxu0
      %3991 = vmatpush.bf16.msra.mxu0 %v3641
      %3992 = vmatpush.bf16.msra.mxu0 %v3633
      %3993 = vmatpush.bf16.msra.mxu0 %v3625
      %3994 = vmatpush.bf16.msra.mxu0 %v3617
      %3995 = vmatpush.bf16.msra.mxu0 %v3609
      %3996 = vmatpush.bf16.msra.mxu0 %v3601
      %3997 = vmatpush.bf16.msra.mxu0 %v3593
      %3998 = vmatpush.bf16.msra.mxu0 %v3585
      %3999 = vmatmul.bf16.gmra.mxu0 %v3064
      %v4000 = vpop.f32.mrf.mxu0
      %v4001 = vadd.f32 0.0, %v4000
      %v4002 = vpop.f32.mrf.mxu0
      %4003 = vdwg.mxu0
      %4004 = vmatpush.bf16.msra.mxu0 %v3705
      %4005 = vmatpush.bf16.msra.mxu0 %v3697
      %4006 = vmatpush.bf16.msra.mxu0 %v3689
      %4007 = vmatpush.bf16.msra.mxu0 %v3681
      %4008 = vmatpush.bf16.msra.mxu0 %v3673
      %4009 = vmatpush.bf16.msra.mxu0 %v3665
      %4010 = vmatpush.bf16.msra.mxu0 %v3657
      %4011 = vmatpush.bf16.msra.mxu0 %v3649
      %4012 = vmatmul.bf16.gmra.mxu0 %v3065
      %v4013 = vpop.f32.mrf.mxu0
      %v4014 = vadd.f32 %v4001, %v4013
      %v4015 = vpop.f32.mrf.mxu0
      %4016 = vdwg.mxu0
      %4017 = vmatpush.bf16.msra.mxu0 %v3642
      %4018 = vmatpush.bf16.msra.mxu0 %v3634
      %4019 = vmatpush.bf16.msra.mxu0 %v3626
      %4020 = vmatpush.bf16.msra.mxu0 %v3618
      %4021 = vmatpush.bf16.msra.mxu0 %v3610
      %4022 = vmatpush.bf16.msra.mxu0 %v3602
      %4023 = vmatpush.bf16.msra.mxu0 %v3594
      %4024 = vmatpush.bf16.msra.mxu0 %v3586
      %4025 = vmatmul.bf16.gmra.mxu0 %v3064
      %v4026 = vpop.f32.mrf.mxu0
      %v4027 = vadd.f32 0.0, %v4026
      %v4028 = vpop.f32.mrf.mxu0
      %4029 = vdwg.mxu0
      %4030 = vmatpush.bf16.msra.mxu0 %v3706
      %4031 = vmatpush.bf16.msra.mxu0 %v3698
      %4032 = vmatpush.bf16.msra.mxu0 %v3690
      %4033 = vmatpush.bf16.msra.mxu0 %v3682
      %4034 = vmatpush.bf16.msra.mxu0 %v3674
      %4035 = vmatpush.bf16.msra.mxu0 %v3666
      %4036 = vmatpush.bf16.msra.mxu0 %v3658
      %4037 = vmatpush.bf16.msra.mxu0 %v3650
      %4038 = vmatmul.bf16.gmra.mxu0 %v3065
      %v4039 = vpop.f32.mrf.mxu0
      %v4040 = vadd.f32 %v4027, %v4039
      %v4041 = vpop.f32.mrf.mxu0
      %4042 = vdwg.mxu0
      %v4043 = vadd.f32 %v2070, %v3858
      %v4044 = vadd.f32 %v2071, %v3884
      %v4045 = vadd.f32 %v2072, %v3910
      %v4046 = vadd.f32 %v2073, %v3936
      %v4047 = vadd.f32 %v2074, %v3962
      %v4048 = vadd.f32 %v2075, %v3988
      %v4049 = vadd.f32 %v2076, %v4014
      %v4050 = vadd.f32 %v2077, %v4040
      %v4051 = vxor.u32 %v3056, 2147483648
      %v4052 = vxor.u32 %v3057, 2147483648
      %v4053 = vxor.u32 %v3058, 2147483648
      %v4054 = vxor.u32 %v3059, 2147483648
      %v4055 = vxor.u32 %v3060, 2147483648
      %v4056 = vxor.u32 %v3061, 2147483648
      %v4057 = vmul.f32 %v4051, 1.442695
      %v4058 = vpow.pop %v4057
      %v4059 = vmul.f32 %v4052, 1.442695
      %v4060 = vpow.pop %v4059
      %v4061 = vmul.f32 %v4053, 1.442695
      %v4062 = vpow.pop %v4061
      %v4063 = vmul.f32 %v4054, 1.442695
      %v4064 = vpow.pop %v4063
      %v4065 = vmul.f32 %v4055, 1.442695
      %v4066 = vpow.pop %v4065
      %v4067 = vmul.f32 %v4056, 1.442695
      %v4068 = vpow.pop %v4067
      %v4069 = vadd.f32 %v4058, 1.0
      %v4070 = vadd.f32 %v4060, 1.0
      %v4071 = vadd.f32 %v4062, 1.0
      %v4072 = vadd.f32 %v4064, 1.0
      %v4073 = vadd.f32 %v4066, 1.0
      %v4074 = vadd.f32 %v4068, 1.0
      %v4075 = vrcp.pop %v4069
      %v4076 = vmul.f32 %v4069, %v4075
      %v4077 = vsub.f32 1.0, %v4076
      %v4078 = vmul.f32 %v4075, %v4077
      %v4079 = vadd.f32 %v4075, %v4078
      %vm4080 = vweird.f32 %v4069
      %vm4081 = vweird.f32 %v4075
      %vm4082 = vmor %vm4080, %vm4081
      %v4083 = vsel %vm4082, %v4075, %v4079
      %v4084 = vand.u32 2147483647, %v4069
      %vm4085 = vcmp.eq.f32.partialorder %v4084, 8.507059e+37
      %v4086 = vand.u32 %v4069, 2147483648
      %v4087 = vor.u32 1.1754944e-38, %v4086
      %v4088 = vsel %vm4085, %v4087, %v4083
      %v4089 = vmul.f32 1.0, %v4088
      %v4090 = vrcp.pop %v4070
      %v4091 = vmul.f32 %v4070, %v4090
      %v4092 = vsub.f32 1.0, %v4091
      %v4093 = vmul.f32 %v4090, %v4092
      %v4094 = vadd.f32 %v4090, %v4093
      %vm4095 = vweird.f32 %v4070
      %vm4096 = vweird.f32 %v4090
      %vm4097 = vmor %vm4095, %vm4096
      %v4098 = vsel %vm4097, %v4090, %v4094
      %v4099 = vand.u32 2147483647, %v4070
      %vm4100 = vcmp.eq.f32.partialorder %v4099, 8.507059e+37
      %v4101 = vand.u32 %v4070, 2147483648
      %v4102 = vor.u32 1.1754944e-38, %v4101
      %v4103 = vsel %vm4100, %v4102, %v4098
      %v4104 = vmul.f32 1.0, %v4103
      %v4105 = vrcp.pop %v4071
      %v4106 = vmul.f32 %v4071, %v4105
      %v4107 = vsub.f32 1.0, %v4106
      %v4108 = vmul.f32 %v4105, %v4107
      %v4109 = vadd.f32 %v4105, %v4108
      %vm4110 = vweird.f32 %v4071
      %vm4111 = vweird.f32 %v4105
      %vm4112 = vmor %vm4110, %vm4111
      %v4113 = vsel %vm4112, %v4105, %v4109
      %v4114 = vand.u32 2147483647, %v4071
      %vm4115 = vcmp.eq.f32.partialorder %v4114, 8.507059e+37
      %v4116 = vand.u32 %v4071, 2147483648
      %v4117 = vor.u32 1.1754944e-38, %v4116
      %v4118 = vsel %vm4115, %v4117, %v4113
      %v4119 = vmul.f32 1.0, %v4118
      %v4120 = vrcp.pop %v4072
      %v4121 = vmul.f32 %v4072, %v4120
      %v4122 = vsub.f32 1.0, %v4121
      %v4123 = vmul.f32 %v4120, %v4122
      %v4124 = vadd.f32 %v4120, %v4123
      %vm4125 = vweird.f32 %v4072
      %vm4126 = vweird.f32 %v4120
      %vm4127 = vmor %vm4125, %vm4126
      %v4128 = vsel %vm4127, %v4120, %v4124
      %v4129 = vand.u32 2147483647, %v4072
      %vm4130 = vcmp.eq.f32.partialorder %v4129, 8.507059e+37
      %v4131 = vand.u32 %v4072, 2147483648
      %v4132 = vor.u32 1.1754944e-38, %v4131
      %v4133 = vsel %vm4130, %v4132, %v4128
      %v4134 = vmul.f32 1.0, %v4133
      %v4135 = vrcp.pop %v4073
      %v4136 = vmul.f32 %v4073, %v4135
      %v4137 = vsub.f32 1.0, %v4136
      %v4138 = vmul.f32 %v4135, %v4137
      %v4139 = vadd.f32 %v4135, %v4138
      %vm4140 = vweird.f32 %v4073
      %vm4141 = vweird.f32 %v4135
      %vm4142 = vmor %vm4140, %vm4141
      %v4143 = vsel %vm4142, %v4135, %v4139
      %v4144 = vand.u32 2147483647, %v4073
      %vm4145 = vcmp.eq.f32.partialorder %v4144, 8.507059e+37
      %v4146 = vand.u32 %v4073, 2147483648
      %v4147 = vor.u32 1.1754944e-38, %v4146
      %v4148 = vsel %vm4145, %v4147, %v4143
      %v4149 = vmul.f32 1.0, %v4148
      %v4150 = vrcp.pop %v4074
      %v4151 = vmul.f32 %v4074, %v4150
      %v4152 = vsub.f32 1.0, %v4151
      %v4153 = vmul.f32 %v4150, %v4152
      %v4154 = vadd.f32 %v4150, %v4153
      %vm4155 = vweird.f32 %v4074
      %vm4156 = vweird.f32 %v4150
      %vm4157 = vmor %vm4155, %vm4156
      %v4158 = vsel %vm4157, %v4150, %v4154
      %v4159 = vand.u32 2147483647, %v4074
      %vm4160 = vcmp.eq.f32.partialorder %v4159, 8.507059e+37
      %v4161 = vand.u32 %v4074, 2147483648
      %v4162 = vor.u32 1.1754944e-38, %v4161
      %v4163 = vsel %vm4160, %v4162, %v4158
      %v4164 = vmul.f32 1.0, %v4163
      %v4165 = vtanh.pop %v3062
      %v4166 = vtanh.pop %v3063
      %v4167 = vmul.f32 %v4119, %v2043
      %v4168 = vmul.f32 %v4134, %v2044
      %v4169 = vmul.f32 %v4089, %v4165
      %v4170 = vmul.f32 %v4104, %v4166
      %v4171 = vadd.f32 %v4167, %v4169
      %v4172 = vadd.f32 %v4168, %v4170
      %v4173 = vtanh.pop %v4171
      %v4174 = vtanh.pop %v4172
      %v4175 = vmul.f32 %v4149, %v4173
      %v4176 = vmul.f32 %v4164, %v4174
      %v4177 = vxor.u32 %v4043, 2147483648
      %v4178 = vxor.u32 %v4044, 2147483648
      %v4179 = vxor.u32 %v4045, 2147483648
      %v4180 = vxor.u32 %v4046, 2147483648
      %v4181 = vxor.u32 %v4047, 2147483648
      %v4182 = vxor.u32 %v4048, 2147483648
      %v4183 = vmul.f32 %v4177, 1.442695
      %v4184 = vpow.pop %v4183
      %v4185 = vmul.f32 %v4178, 1.442695
      %v4186 = vpow.pop %v4185
      %v4187 = vmul.f32 %v4179, 1.442695
      %v4188 = vpow.pop %v4187
      %v4189 = vmul.f32 %v4180, 1.442695
      %v4190 = vpow.pop %v4189
      %v4191 = vmul.f32 %v4181, 1.442695
      %v4192 = vpow.pop %v4191
      %v4193 = vmul.f32 %v4182, 1.442695
      %v4194 = vpow.pop %v4193
      %v4195 = vadd.f32 %v4184, 1.0
      %v4196 = vadd.f32 %v4186, 1.0
      %v4197 = vadd.f32 %v4188, 1.0
      %v4198 = vadd.f32 %v4190, 1.0
      %v4199 = vadd.f32 %v4192, 1.0
      %v4200 = vadd.f32 %v4194, 1.0
      %v4201 = vrcp.pop %v4195
      %v4202 = vmul.f32 %v4195, %v4201
      %v4203 = vsub.f32 1.0, %v4202
      %v4204 = vmul.f32 %v4201, %v4203
      %v4205 = vadd.f32 %v4201, %v4204
      %vm4206 = vweird.f32 %v4195
      %vm4207 = vweird.f32 %v4201
      %vm4208 = vmor %vm4206, %vm4207
      %v4209 = vsel %vm4208, %v4201, %v4205
      %v4210 = vand.u32 2147483647, %v4195
      %vm4211 = vcmp.eq.f32.partialorder %v4210, 8.507059e+37
      %v4212 = vand.u32 %v4195, 2147483648
      %v4213 = vor.u32 1.1754944e-38, %v4212
      %v4214 = vsel %vm4211, %v4213, %v4209
      %v4215 = vmul.f32 1.0, %v4214
      %v4216 = vrcp.pop %v4196
      %v4217 = vmul.f32 %v4196, %v4216
      %v4218 = vsub.f32 1.0, %v4217
      %v4219 = vmul.f32 %v4216, %v4218
      %v4220 = vadd.f32 %v4216, %v4219
      %vm4221 = vweird.f32 %v4196
      %vm4222 = vweird.f32 %v4216
      %vm4223 = vmor %vm4221, %vm4222
      %v4224 = vsel %vm4223, %v4216, %v4220
      %v4225 = vand.u32 2147483647, %v4196
      %vm4226 = vcmp.eq.f32.partialorder %v4225, 8.507059e+37
      %v4227 = vand.u32 %v4196, 2147483648
      %v4228 = vor.u32 1.1754944e-38, %v4227
      %v4229 = vsel %vm4226, %v4228, %v4224
      %v4230 = vmul.f32 1.0, %v4229
      %v4231 = vrcp.pop %v4197
      %v4232 = vmul.f32 %v4197, %v4231
      %v4233 = vsub.f32 1.0, %v4232
      %v4234 = vmul.f32 %v4231, %v4233
      %v4235 = vadd.f32 %v4231, %v4234
      %vm4236 = vweird.f32 %v4197
      %vm4237 = vweird.f32 %v4231
      %vm4238 = vmor %vm4236, %vm4237
      %v4239 = vsel %vm4238, %v4231, %v4235
      %v4240 = vand.u32 2147483647, %v4197
      %vm4241 = vcmp.eq.f32.partialorder %v4240, 8.507059e+37
      %v4242 = vand.u32 %v4197, 2147483648
      %v4243 = vor.u32 1.1754944e-38, %v4242
      %v4244 = vsel %vm4241, %v4243, %v4239
      %v4245 = vmul.f32 1.0, %v4244
      %v4246 = vrcp.pop %v4198
      %v4247 = vmul.f32 %v4198, %v4246
      %v4248 = vsub.f32 1.0, %v4247
      %v4249 = vmul.f32 %v4246, %v4248
      %v4250 = vadd.f32 %v4246, %v4249
      %vm4251 = vweird.f32 %v4198
      %vm4252 = vweird.f32 %v4246
      %vm4253 = vmor %vm4251, %vm4252
      %v4254 = vsel %vm4253, %v4246, %v4250
      %v4255 = vand.u32 2147483647, %v4198
      %vm4256 = vcmp.eq.f32.partialorder %v4255, 8.507059e+37
      %v4257 = vand.u32 %v4198, 2147483648
      %v4258 = vor.u32 1.1754944e-38, %v4257
      %v4259 = vsel %vm4256, %v4258, %v4254
      %v4260 = vmul.f32 1.0, %v4259
      %v4261 = vrcp.pop %v4199
      %v4262 = vmul.f32 %v4199, %v4261
      %v4263 = vsub.f32 1.0, %v4262
      %v4264 = vmul.f32 %v4261, %v4263
      %v4265 = vadd.f32 %v4261, %v4264
      %vm4266 = vweird.f32 %v4199
      %vm4267 = vweird.f32 %v4261
      %vm4268 = vmor %vm4266, %vm4267
      %v4269 = vsel %vm4268, %v4261, %v4265
      %v4270 = vand.u32 2147483647, %v4199
      %vm4271 = vcmp.eq.f32.partialorder %v4270, 8.507059e+37
      %v4272 = vand.u32 %v4199, 2147483648
      %v4273 = vor.u32 1.1754944e-38, %v4272
      %v4274 = vsel %vm4271, %v4273, %v4269
      %v4275 = vmul.f32 1.0, %v4274
      %v4276 = vrcp.pop %v4200
      %v4277 = vmul.f32 %v4200, %v4276
      %v4278 = vsub.f32 1.0, %v4277
      %v4279 = vmul.f32 %v4276, %v4278
      %v4280 = vadd.f32 %v4276, %v4279
      %vm4281 = vweird.f32 %v4200
      %vm4282 = vweird.f32 %v4276
      %vm4283 = vmor %vm4281, %vm4282
      %v4284 = vsel %vm4283, %v4276, %v4280
      %v4285 = vand.u32 2147483647, %v4200
      %vm4286 = vcmp.eq.f32.partialorder %v4285, 8.507059e+37
      %v4287 = vand.u32 %v4200, 2147483648
      %v4288 = vor.u32 1.1754944e-38, %v4287
      %v4289 = vsel %vm4286, %v4288, %v4284
      %v4290 = vmul.f32 1.0, %v4289
      %v4291 = vtanh.pop %v4049
      %v4292 = vtanh.pop %v4050
      %v4293 = vmul.f32 %v4245, %v2047
      %v4294 = vmul.f32 %v4260, %v2048
      %v4295 = vmul.f32 %v4215, %v4291
      %v4296 = vmul.f32 %v4230, %v4292
      %v4297 = vadd.f32 %v4293, %v4295
      %v4298 = vadd.f32 %v4294, %v4296
      %v4299 = vtanh.pop %v4297
      %v4300 = vtanh.pop %v4298
      %v4301 = vmul.f32 %v4275, %v4299
      %v4302 = vmul.f32 %v4290, %v4300
      %s4303 = smul.u32 %s2052, 2
      %s4304 = smul.addr %s4303, 8
      %s4305 = scalar_lea.vmem [#allocation3], %s4304
      %4306 = vst [vmem:[%s4305] sm:$0xff] %v4175
      %4307 = vst [vmem:[%s4305 + $0x8] sm:$0xff] %v4176
      %s4308 = smul.u32 %s2065, 2
      %s4309 = smul.addr %s4308, 8
      %s4310 = scalar_lea.vmem [#allocation4], %s4309
      %4311 = vst [vmem:[%s4310] sm:$0xff] %v4301
      %4312 = vst [vmem:[%s4310 + $0x8] sm:$0xff] %v4302
    $region46: #{multi_head_forward.1} parent=1 // loop_footer
      %s2040 = sadd.s32 1, %s2036
    $region47: #{multi_head_forward.1} parent=1 // loop_footer_branch
      %2035 = sbr.rel target = $region43
    $region48: #{multi_head_forward.1} parent=1 // loop_exit
      _
    %v4313 = vld [vmem:[#allocation3] sm:$0xff]
    %v4314 = vld [vmem:[#allocation3 + $0x8] sm:$0xff]
    %v4315 = vld [vmem:[#allocation3 + $0x10] sm:$0xff]
    %v4316 = vld [vmem:[#allocation3 + $0x18] sm:$0xff]
    %v4317 = vld [vmem:[#allocation3 + $0x20] sm:$0xff]
    %v4318 = vld [vmem:[#allocation3 + $0x28] sm:$0xff]
    %v4319 = vld [vmem:[#allocation3 + $0x30] sm:$0xff]
    %v4320 = vld [vmem:[#allocation3 + $0x38] sm:$0xff]
    %v4321 = vld [vmem:[#allocation3 + $0x40] sm:$0xff]
    %v4322 = vld [vmem:[#allocation3 + $0x48] sm:$0xff]
    %v4323 = vld [vmem:[#allocation3 + $0x50] sm:$0xff]
    %v4324 = vld [vmem:[#allocation3 + $0x58] sm:$0xff]
    %v4325 = vld [vmem:[#allocation3 + $0x60] sm:$0xff]
    %v4326 = vld [vmem:[#allocation3 + $0x68] sm:$0xff]
    %v4327 = vld [vmem:[#allocation3 + $0x70] sm:$0xff]
    %v4328 = vld [vmem:[#allocation3 + $0x78] sm:$0xff]
    %v4329 = vld [vmem:[#allocation3 + $0x80] sm:$0xff]
    %v4330 = vld [vmem:[#allocation3 + $0x88] sm:$0xff]
    %v4331 = vld [vmem:[#allocation3 + $0x90] sm:$0xff]
    %v4332 = vld [vmem:[#allocation3 + $0x98] sm:$0xff]
    %v4333 = vld [vmem:[#allocation3 + $0xa0] sm:$0xff]
    %v4334 = vld [vmem:[#allocation3 + $0xa8] sm:$0xff]
    %v4335 = vld [vmem:[#allocation3 + $0xb0] sm:$0xff]
    %v4336 = vld [vmem:[#allocation3 + $0xb8] sm:$0xff]
    %v4337 = vld [vmem:[#allocation3 + $0xc0] sm:$0xff]
    %v4338 = vld [vmem:[#allocation3 + $0xc8] sm:$0xff]
    %v4339 = vld [vmem:[#allocation3 + $0xd0] sm:$0xff]
    %v4340 = vld [vmem:[#allocation3 + $0xd8] sm:$0xff]
    %v4341 = vld [vmem:[#allocation3 + $0xe0] sm:$0xff]
    %v4342 = vld [vmem:[#allocation3 + $0xe8] sm:$0xff]
    %v4343 = vld [vmem:[#allocation3 + $0xf0] sm:$0xff]
    %v4344 = vld [vmem:[#allocation3 + $0xf8] sm:$0xff]
    %v4345 = vpack.c.bf16 %v4315, %v4313
    %v4346 = vpack.c.bf16 %v4316, %v4314
    %v4347 = vpack.c.bf16 %v4319, %v4317
    %v4348 = vpack.c.bf16 %v4320, %v4318
    %v4349 = vpack.c.bf16 %v4323, %v4321
    %v4350 = vpack.c.bf16 %v4324, %v4322
    %v4351 = vpack.c.bf16 %v4327, %v4325
    %v4352 = vpack.c.bf16 %v4328, %v4326
    %v4353 = vpack.c.bf16 %v4331, %v4329
    %v4354 = vpack.c.bf16 %v4332, %v4330
    %v4355 = vpack.c.bf16 %v4335, %v4333
    %v4356 = vpack.c.bf16 %v4336, %v4334
    %v4357 = vpack.c.bf16 %v4339, %v4337
    %v4358 = vpack.c.bf16 %v4340, %v4338
    %v4359 = vpack.c.bf16 %v4343, %v4341
    %v4360 = vpack.c.bf16 %v4344, %v4342
    %v4361 = vld [vmem:[%s6] sm:$0xf]
    %v4362 = vld [vmem:[%s6 + $0x4] sm:$0xf]
    %v4363 = vld [vmem:[%s6 + $0x8] sm:$0xf]
    %v4364 = vld [vmem:[%s6 + $0xc] sm:$0xf]
    %v4365 = vld [vmem:[%s6 + $0x10] sm:$0xf]
    %v4366 = vld [vmem:[%s6 + $0x14] sm:$0xf]
    %v4367 = vld [vmem:[%s6 + $0x18] sm:$0xf]
    %v4368 = vld [vmem:[%s6 + $0x1c] sm:$0xf]
    %v4369 = vld [vmem:[%s6 + $0x20] sm:$0xf]
    %v4370 = vld [vmem:[%s6 + $0x24] sm:$0xf]
    %v4371 = vld [vmem:[%s6 + $0x28] sm:$0xf]
    %v4372 = vld [vmem:[%s6 + $0x2c] sm:$0xf]
    %v4373 = vld [vmem:[%s6 + $0x30] sm:$0xf]
    %v4374 = vld [vmem:[%s6 + $0x34] sm:$0xf]
    %v4375 = vld [vmem:[%s6 + $0x38] sm:$0xf]
    %v4376 = vld [vmem:[%s6 + $0x3c] sm:$0xf]
    %v4377 = vld [vmem:[%s6 + $0x40] sm:$0xf]
    %v4378 = vld [vmem:[%s6 + $0x44] sm:$0xf]
    %v4379 = vld [vmem:[%s6 + $0x48] sm:$0xf]
    %v4380 = vld [vmem:[%s6 + $0x4c] sm:$0xf]
    %v4381 = vld [vmem:[%s6 + $0x50] sm:$0xf]
    %v4382 = vld [vmem:[%s6 + $0x54] sm:$0xf]
    %v4383 = vld [vmem:[%s6 + $0x58] sm:$0xf]
    %v4384 = vld [vmem:[%s6 + $0x5c] sm:$0xf]
    %v4385 = vld [vmem:[%s6 + $0x60] sm:$0xf]
    %v4386 = vld [vmem:[%s6 + $0x64] sm:$0xf]
    %v4387 = vld [vmem:[%s6 + $0x68] sm:$0xf]
    %v4388 = vld [vmem:[%s6 + $0x6c] sm:$0xf]
    %v4389 = vld [vmem:[%s6 + $0x70] sm:$0xf]
    %v4390 = vld [vmem:[%s6 + $0x74] sm:$0xf]
    %v4391 = vld [vmem:[%s6 + $0x78] sm:$0xf]
    %v4392 = vld [vmem:[%s6 + $0x7c] sm:$0xf]
    %v4393 = vld [vmem:[#allocation4] sm:$0xff]
    %v4394 = vld [vmem:[#allocation4 + $0x8] sm:$0xff]
    %v4395 = vld [vmem:[#allocation4 + $0x10] sm:$0xff]
    %v4396 = vld [vmem:[#allocation4 + $0x18] sm:$0xff]
    %v4397 = vld [vmem:[#allocation4 + $0x20] sm:$0xff]
    %v4398 = vld [vmem:[#allocation4 + $0x28] sm:$0xff]
    %v4399 = vld [vmem:[#allocation4 + $0x30] sm:$0xff]
    %v4400 = vld [vmem:[#allocation4 + $0x38] sm:$0xff]
    %v4401 = vld [vmem:[#allocation4 + $0x40] sm:$0xff]
    %v4402 = vld [vmem:[#allocation4 + $0x48] sm:$0xff]
    %v4403 = vld [vmem:[#allocation4 + $0x50] sm:$0xff]
    %v4404 = vld [vmem:[#allocation4 + $0x58] sm:$0xff]
    %v4405 = vld [vmem:[#allocation4 + $0x60] sm:$0xff]
    %v4406 = vld [vmem:[#allocation4 + $0x68] sm:$0xff]
    %v4407 = vld [vmem:[#allocation4 + $0x70] sm:$0xff]
    %v4408 = vld [vmem:[#allocation4 + $0x78] sm:$0xff]
    %v4409 = vld [vmem:[#allocation4 + $0x80] sm:$0xff]
    %v4410 = vld [vmem:[#allocation4 + $0x88] sm:$0xff]
    %v4411 = vld [vmem:[#allocation4 + $0x90] sm:$0xff]
    %v4412 = vld [vmem:[#allocation4 + $0x98] sm:$0xff]
    %v4413 = vld [vmem:[#allocation4 + $0xa0] sm:$0xff]
    %v4414 = vld [vmem:[#allocation4 + $0xa8] sm:$0xff]
    %v4415 = vld [vmem:[#allocation4 + $0xb0] sm:$0xff]
    %v4416 = vld [vmem:[#allocation4 + $0xb8] sm:$0xff]
    %v4417 = vld [vmem:[#allocation4 + $0xc0] sm:$0xff]
    %v4418 = vld [vmem:[#allocation4 + $0xc8] sm:$0xff]
    %v4419 = vld [vmem:[#allocation4 + $0xd0] sm:$0xff]
    %v4420 = vld [vmem:[#allocation4 + $0xd8] sm:$0xff]
    %v4421 = vld [vmem:[#allocation4 + $0xe0] sm:$0xff]
    %v4422 = vld [vmem:[#allocation4 + $0xe8] sm:$0xff]
    %v4423 = vld [vmem:[#allocation4 + $0xf0] sm:$0xff]
    %v4424 = vld [vmem:[#allocation4 + $0xf8] sm:$0xff]
    %v4425 = vpack.c.bf16 %v4395, %v4393
    %v4426 = vpack.c.bf16 %v4396, %v4394
    %v4427 = vpack.c.bf16 %v4399, %v4397
    %v4428 = vpack.c.bf16 %v4400, %v4398
    %v4429 = vpack.c.bf16 %v4403, %v4401
    %v4430 = vpack.c.bf16 %v4404, %v4402
    %v4431 = vpack.c.bf16 %v4407, %v4405
    %v4432 = vpack.c.bf16 %v4408, %v4406
    %v4433 = vpack.c.bf16 %v4411, %v4409
    %v4434 = vpack.c.bf16 %v4412, %v4410
    %v4435 = vpack.c.bf16 %v4415, %v4413
    %v4436 = vpack.c.bf16 %v4416, %v4414
    %v4437 = vpack.c.bf16 %v4419, %v4417
    %v4438 = vpack.c.bf16 %v4420, %v4418
    %v4439 = vpack.c.bf16 %v4423, %v4421
    %v4440 = vpack.c.bf16 %v4424, %v4422
    %s4441 = scalar_lea.vmem %s6, 128
    %v4442 = vld [vmem:[%s4441] sm:$0xf]
    %v4443 = vld [vmem:[%s4441 + $0x4] sm:$0xf]
    %v4444 = vld [vmem:[%s4441 + $0x8] sm:$0xf]
    %v4445 = vld [vmem:[%s4441 + $0xc] sm:$0xf]
    %v4446 = vld [vmem:[%s4441 + $0x10] sm:$0xf]
    %v4447 = vld [vmem:[%s4441 + $0x14] sm:$0xf]
    %v4448 = vld [vmem:[%s4441 + $0x18] sm:$0xf]
    %v4449 = vld [vmem:[%s4441 + $0x1c] sm:$0xf]
    %v4450 = vld [vmem:[%s4441 + $0x20] sm:$0xf]
    %v4451 = vld [vmem:[%s4441 + $0x24] sm:$0xf]
    %v4452 = vld [vmem:[%s4441 + $0x28] sm:$0xf]
    %v4453 = vld [vmem:[%s4441 + $0x2c] sm:$0xf]
    %v4454 = vld [vmem:[%s4441 + $0x30] sm:$0xf]
    %v4455 = vld [vmem:[%s4441 + $0x34] sm:$0xf]
    %v4456 = vld [vmem:[%s4441 + $0x38] sm:$0xf]
    %v4457 = vld [vmem:[%s4441 + $0x3c] sm:$0xf]
    %v4458 = vld [vmem:[%s4441 + $0x40] sm:$0xf]
    %v4459 = vld [vmem:[%s4441 + $0x44] sm:$0xf]
    %v4460 = vld [vmem:[%s4441 + $0x48] sm:$0xf]
    %v4461 = vld [vmem:[%s4441 + $0x4c] sm:$0xf]
    %v4462 = vld [vmem:[%s4441 + $0x50] sm:$0xf]
    %v4463 = vld [vmem:[%s4441 + $0x54] sm:$0xf]
    %v4464 = vld [vmem:[%s4441 + $0x58] sm:$0xf]
    %v4465 = vld [vmem:[%s4441 + $0x5c] sm:$0xf]
    %v4466 = vld [vmem:[%s4441 + $0x60] sm:$0xf]
    %v4467 = vld [vmem:[%s4441 + $0x64] sm:$0xf]
    %v4468 = vld [vmem:[%s4441 + $0x68] sm:$0xf]
    %v4469 = vld [vmem:[%s4441 + $0x6c] sm:$0xf]
    %v4470 = vld [vmem:[%s4441 + $0x70] sm:$0xf]
    %v4471 = vld [vmem:[%s4441 + $0x74] sm:$0xf]
    %v4472 = vld [vmem:[%s4441 + $0x78] sm:$0xf]
    %v4473 = vld [vmem:[%s4441 + $0x7c] sm:$0xf]
    %v4506 = vunpack.c.l.b16 %v4442
    %v4507 = vunpack.c.l.b16 %v4443
    %v4508 = vunpack.c.l.b16 %v4444
    %v4509 = vunpack.c.l.b16 %v4445
    %v4510 = vunpack.c.l.b16 %v4446
    %v4511 = vunpack.c.l.b16 %v4447
    %v4512 = vunpack.c.l.b16 %v4448
    %v4513 = vunpack.c.l.b16 %v4449
    %v4514 = vunpack.c.l.b16 %v4450
    %v4515 = vunpack.c.l.b16 %v4451
    %v4516 = vunpack.c.l.b16 %v4452
    %v4517 = vunpack.c.l.b16 %v4453
    %v4518 = vunpack.c.l.b16 %v4454
    %v4519 = vunpack.c.l.b16 %v4455
    %v4520 = vunpack.c.l.b16 %v4456
    %v4521 = vunpack.c.l.b16 %v4457
    %v4522 = vunpack.c.l.b16 %v4458
    %v4523 = vunpack.c.l.b16 %v4459
    %v4524 = vunpack.c.l.b16 %v4460
    %v4525 = vunpack.c.l.b16 %v4461
    %v4526 = vunpack.c.l.b16 %v4462
    %v4527 = vunpack.c.l.b16 %v4463
    %v4528 = vunpack.c.l.b16 %v4464
    %v4529 = vunpack.c.l.b16 %v4465
    %v4530 = vunpack.c.l.b16 %v4466
    %v4531 = vunpack.c.l.b16 %v4467
    %v4532 = vunpack.c.l.b16 %v4468
    %v4533 = vunpack.c.l.b16 %v4469
    %v4534 = vunpack.c.l.b16 %v4470
    %v4535 = vunpack.c.l.b16 %v4471
    %v4536 = vunpack.c.l.b16 %v4472
    %v4537 = vunpack.c.l.b16 %v4473
    %v4538 = vpack.c.b16 %v4507, %v4506
    %v4539 = vpack.c.b16 %v4509, %v4508
    %v4540 = vpack.c.b16 %v4511, %v4510
    %v4541 = vpack.c.b16 %v4513, %v4512
    %v4542 = vpack.c.b16 %v4515, %v4514
    %v4543 = vpack.c.b16 %v4517, %v4516
    %v4544 = vpack.c.b16 %v4519, %v4518
    %v4545 = vpack.c.b16 %v4521, %v4520
    %v4546 = vpack.c.b16 %v4523, %v4522
    %v4547 = vpack.c.b16 %v4525, %v4524
    %v4548 = vpack.c.b16 %v4527, %v4526
    %v4549 = vpack.c.b16 %v4529, %v4528
    %v4550 = vpack.c.b16 %v4531, %v4530
    %v4551 = vpack.c.b16 %v4533, %v4532
    %v4552 = vpack.c.b16 %v4535, %v4534
    %v4553 = vpack.c.b16 %v4537, %v4536
    %4570 = vmatpush.bf16.msra.mxu0 %v4545
    %4571 = vmatpush.bf16.msra.mxu0 %v4544
    %4572 = vmatpush.bf16.msra.mxu0 %v4543
    %4573 = vmatpush.bf16.msra.mxu0 %v4542
    %4574 = vmatpush.bf16.msra.mxu0 %v4541
    %4575 = vmatpush.bf16.msra.mxu0 %v4540
    %4576 = vmatpush.bf16.msra.mxu0 %v4539
    %4577 = vmatpush.bf16.msra.mxu0 %v4538
    %4578 = vmatmul.bf16.gmra.mxu0 %v4425
    %v4579 = vpop.f32.mrf.mxu0
    %v4580 = vadd.f32 0.0, %v4579
    %v4581 = vpop.f32.mrf.mxu0
    %v4582 = vadd.f32 0.0, %v4581
    %4583 = vmatmul.bf16.gmra.mxu0 %v4427
    %v4584 = vpop.f32.mrf.mxu0
    %v4585 = vadd.f32 0.0, %v4584
    %v4586 = vpop.f32.mrf.mxu0
    %v4587 = vadd.f32 0.0, %v4586
    %4588 = vmatmul.bf16.gmra.mxu0 %v4429
    %v4589 = vpop.f32.mrf.mxu0
    %v4590 = vadd.f32 0.0, %v4589
    %v4591 = vpop.f32.mrf.mxu0
    %v4592 = vadd.f32 0.0, %v4591
    %4593 = vmatmul.bf16.gmra.mxu0 %v4431
    %v4594 = vpop.f32.mrf.mxu0
    %v4595 = vadd.f32 0.0, %v4594
    %v4596 = vpop.f32.mrf.mxu0
    %v4597 = vadd.f32 0.0, %v4596
    %4598 = vmatmul.bf16.gmra.mxu0 %v4433
    %v4599 = vpop.f32.mrf.mxu0
    %v4600 = vadd.f32 0.0, %v4599
    %v4601 = vpop.f32.mrf.mxu0
    %v4602 = vadd.f32 0.0, %v4601
    %4603 = vmatmul.bf16.gmra.mxu0 %v4435
    %v4604 = vpop.f32.mrf.mxu0
    %v4605 = vadd.f32 0.0, %v4604
    %v4606 = vpop.f32.mrf.mxu0
    %v4607 = vadd.f32 0.0, %v4606
    %4608 = vmatmul.bf16.gmra.mxu0 %v4437
    %v4609 = vpop.f32.mrf.mxu0
    %v4610 = vadd.f32 0.0, %v4609
    %v4611 = vpop.f32.mrf.mxu0
    %v4612 = vadd.f32 0.0, %v4611
    %4613 = vmatmul.bf16.gmra.mxu0 %v4439
    %v4614 = vpop.f32.mrf.mxu0
    %v4615 = vadd.f32 0.0, %v4614
    %v4616 = vpop.f32.mrf.mxu0
    %v4617 = vadd.f32 0.0, %v4616
    %4618 = vdwg.mxu0
    %4619 = vmatpush.bf16.msra.mxu0 %v4553
    %4620 = vmatpush.bf16.msra.mxu0 %v4552
    %4621 = vmatpush.bf16.msra.mxu0 %v4551
    %4622 = vmatpush.bf16.msra.mxu0 %v4550
    %4623 = vmatpush.bf16.msra.mxu0 %v4549
    %4624 = vmatpush.bf16.msra.mxu0 %v4548
    %4625 = vmatpush.bf16.msra.mxu0 %v4547
    %4626 = vmatpush.bf16.msra.mxu0 %v4546
    %4627 = vmatmul.bf16.gmra.mxu0 %v4426
    %v4628 = vpop.f32.mrf.mxu0
    %v4629 = vadd.f32 %v4580, %v4628
    %v4630 = vpop.f32.mrf.mxu0
    %v4631 = vadd.f32 %v4582, %v4630
    %4632 = vmatmul.bf16.gmra.mxu0 %v4428
    %v4633 = vpop.f32.mrf.mxu0
    %v4634 = vadd.f32 %v4585, %v4633
    %v4635 = vpop.f32.mrf.mxu0
    %v4636 = vadd.f32 %v4587, %v4635
    %4637 = vmatmul.bf16.gmra.mxu0 %v4430
    %v4638 = vpop.f32.mrf.mxu0
    %v4639 = vadd.f32 %v4590, %v4638
    %v4640 = vpop.f32.mrf.mxu0
    %v4641 = vadd.f32 %v4592, %v4640
    %4642 = vmatmul.bf16.gmra.mxu0 %v4432
    %v4643 = vpop.f32.mrf.mxu0
    %v4644 = vadd.f32 %v4595, %v4643
    %v4645 = vpop.f32.mrf.mxu0
    %v4646 = vadd.f32 %v4597, %v4645
    %4647 = vmatmul.bf16.gmra.mxu0 %v4434
    %v4648 = vpop.f32.mrf.mxu0
    %v4649 = vadd.f32 %v4600, %v4648
    %v4650 = vpop.f32.mrf.mxu0
    %v4651 = vadd.f32 %v4602, %v4650
    %4652 = vmatmul.bf16.gmra.mxu0 %v4436
    %v4653 = vpop.f32.mrf.mxu0
    %v4654 = vadd.f32 %v4605, %v4653
    %v4655 = vpop.f32.mrf.mxu0
    %v4656 = vadd.f32 %v4607, %v4655
    %4657 = vmatmul.bf16.gmra.mxu0 %v4438
    %v4658 = vpop.f32.mrf.mxu0
    %v4659 = vadd.f32 %v4610, %v4658
    %v4660 = vpop.f32.mrf.mxu0
    %v4661 = vadd.f32 %v4612, %v4660
    %4662 = vmatmul.bf16.gmra.mxu0 %v4440
    %v4663 = vpop.f32.mrf.mxu0
    %v4664 = vadd.f32 %v4615, %v4663
    %v4665 = vpop.f32.mrf.mxu0
    %v4666 = vadd.f32 %v4617, %v4665
    %4667 = vdwg.mxu0
    %v4700 = vunpack.c.l.b16 %v4361
    %v4701 = vunpack.c.l.b16 %v4362
    %v4702 = vunpack.c.l.b16 %v4363
    %v4703 = vunpack.c.l.b16 %v4364
    %v4704 = vunpack.c.l.b16 %v4365
    %v4705 = vunpack.c.l.b16 %v4366
    %v4706 = vunpack.c.l.b16 %v4367
    %v4707 = vunpack.c.l.b16 %v4368
    %v4708 = vunpack.c.l.b16 %v4369
    %v4709 = vunpack.c.l.b16 %v4370
    %v4710 = vunpack.c.l.b16 %v4371
    %v4711 = vunpack.c.l.b16 %v4372
    %v4712 = vunpack.c.l.b16 %v4373
    %v4713 = vunpack.c.l.b16 %v4374
    %v4714 = vunpack.c.l.b16 %v4375
    %v4715 = vunpack.c.l.b16 %v4376
    %v4716 = vunpack.c.l.b16 %v4377
    %v4717 = vunpack.c.l.b16 %v4378
    %v4718 = vunpack.c.l.b16 %v4379
    %v4719 = vunpack.c.l.b16 %v4380
    %v4720 = vunpack.c.l.b16 %v4381
    %v4721 = vunpack.c.l.b16 %v4382
    %v4722 = vunpack.c.l.b16 %v4383
    %v4723 = vunpack.c.l.b16 %v4384
    %v4724 = vunpack.c.l.b16 %v4385
    %v4725 = vunpack.c.l.b16 %v4386
    %v4726 = vunpack.c.l.b16 %v4387
    %v4727 = vunpack.c.l.b16 %v4388
    %v4728 = vunpack.c.l.b16 %v4389
    %v4729 = vunpack.c.l.b16 %v4390
    %v4730 = vunpack.c.l.b16 %v4391
    %v4731 = vunpack.c.l.b16 %v4392
    %v4732 = vpack.c.b16 %v4701, %v4700
    %v4733 = vpack.c.b16 %v4703, %v4702
    %v4734 = vpack.c.b16 %v4705, %v4704
    %v4735 = vpack.c.b16 %v4707, %v4706
    %v4736 = vpack.c.b16 %v4709, %v4708
    %v4737 = vpack.c.b16 %v4711, %v4710
    %v4738 = vpack.c.b16 %v4713, %v4712
    %v4739 = vpack.c.b16 %v4715, %v4714
    %v4740 = vpack.c.b16 %v4717, %v4716
    %v4741 = vpack.c.b16 %v4719, %v4718
    %v4742 = vpack.c.b16 %v4721, %v4720
    %v4743 = vpack.c.b16 %v4723, %v4722
    %v4744 = vpack.c.b16 %v4725, %v4724
    %v4745 = vpack.c.b16 %v4727, %v4726
    %v4746 = vpack.c.b16 %v4729, %v4728
    %v4747 = vpack.c.b16 %v4731, %v4730
    %4764 = vmatpush.bf16.msra.mxu0 %v4739
    %4765 = vmatpush.bf16.msra.mxu0 %v4738
    %4766 = vmatpush.bf16.msra.mxu0 %v4737
    %4767 = vmatpush.bf16.msra.mxu0 %v4736
    %4768 = vmatpush.bf16.msra.mxu0 %v4735
    %4769 = vmatpush.bf16.msra.mxu0 %v4734
    %4770 = vmatpush.bf16.msra.mxu0 %v4733
    %4771 = vmatpush.bf16.msra.mxu0 %v4732
    %4772 = vmatmul.bf16.gmra.mxu0 %v4345
    %v4773 = vpop.f32.mrf.mxu0
    %v4774 = vadd.f32 %v4629, %v4773
    %v4775 = vpop.f32.mrf.mxu0
    %v4776 = vadd.f32 %v4631, %v4775
    %4777 = vmatmul.bf16.gmra.mxu0 %v4347
    %v4778 = vpop.f32.mrf.mxu0
    %v4779 = vadd.f32 %v4634, %v4778
    %v4780 = vpop.f32.mrf.mxu0
    %v4781 = vadd.f32 %v4636, %v4780
    %4782 = vmatmul.bf16.gmra.mxu0 %v4349
    %v4783 = vpop.f32.mrf.mxu0
    %v4784 = vadd.f32 %v4639, %v4783
    %v4785 = vpop.f32.mrf.mxu0
    %v4786 = vadd.f32 %v4641, %v4785
    %4787 = vmatmul.bf16.gmra.mxu0 %v4351
    %v4788 = vpop.f32.mrf.mxu0
    %v4789 = vadd.f32 %v4644, %v4788
    %v4790 = vpop.f32.mrf.mxu0
    %v4791 = vadd.f32 %v4646, %v4790
    %4792 = vmatmul.bf16.gmra.mxu0 %v4353
    %v4793 = vpop.f32.mrf.mxu0
    %v4794 = vadd.f32 %v4649, %v4793
    %v4795 = vpop.f32.mrf.mxu0
    %v4796 = vadd.f32 %v4651, %v4795
    %4797 = vmatmul.bf16.gmra.mxu0 %v4355
    %v4798 = vpop.f32.mrf.mxu0
    %v4799 = vadd.f32 %v4654, %v4798
    %v4800 = vpop.f32.mrf.mxu0
    %v4801 = vadd.f32 %v4656, %v4800
    %4802 = vmatmul.bf16.gmra.mxu0 %v4357
    %v4803 = vpop.f32.mrf.mxu0
    %v4804 = vadd.f32 %v4659, %v4803
    %v4805 = vpop.f32.mrf.mxu0
    %v4806 = vadd.f32 %v4661, %v4805
    %4807 = vmatmul.bf16.gmra.mxu0 %v4359
    %v4808 = vpop.f32.mrf.mxu0
    %v4809 = vadd.f32 %v4664, %v4808
    %v4810 = vpop.f32.mrf.mxu0
    %v4811 = vadd.f32 %v4666, %v4810
    %4812 = vdwg.mxu0
    %4813 = vmatpush.bf16.msra.mxu0 %v4747
    %4814 = vmatpush.bf16.msra.mxu0 %v4746
    %4815 = vmatpush.bf16.msra.mxu0 %v4745
    %4816 = vmatpush.bf16.msra.mxu0 %v4744
    %4817 = vmatpush.bf16.msra.mxu0 %v4743
    %4818 = vmatpush.bf16.msra.mxu0 %v4742
    %4819 = vmatpush.bf16.msra.mxu0 %v4741
    %4820 = vmatpush.bf16.msra.mxu0 %v4740
    %4821 = vmatmul.bf16.gmra.mxu0 %v4346
    %v4822 = vpop.f32.mrf.mxu0
    %v4823 = vadd.f32 %v4774, %v4822
    %v4824 = vpop.f32.mrf.mxu0
    %v4825 = vadd.f32 %v4776, %v4824
    %4826 = vmatmul.bf16.gmra.mxu0 %v4348
    %v4827 = vpop.f32.mrf.mxu0
    %v4828 = vadd.f32 %v4779, %v4827
    %v4829 = vpop.f32.mrf.mxu0
    %v4830 = vadd.f32 %v4781, %v4829
    %4831 = vmatmul.bf16.gmra.mxu0 %v4350
    %v4832 = vpop.f32.mrf.mxu0
    %v4833 = vadd.f32 %v4784, %v4832
    %v4834 = vpop.f32.mrf.mxu0
    %v4835 = vadd.f32 %v4786, %v4834
    %4836 = vmatmul.bf16.gmra.mxu0 %v4352
    %v4837 = vpop.f32.mrf.mxu0
    %v4838 = vadd.f32 %v4789, %v4837
    %v4839 = vpop.f32.mrf.mxu0
    %v4840 = vadd.f32 %v4791, %v4839
    %4841 = vmatmul.bf16.gmra.mxu0 %v4354
    %v4842 = vpop.f32.mrf.mxu0
    %v4843 = vadd.f32 %v4794, %v4842
    %v4844 = vpop.f32.mrf.mxu0
    %v4845 = vadd.f32 %v4796, %v4844
    %4846 = vmatmul.bf16.gmra.mxu0 %v4356
    %v4847 = vpop.f32.mrf.mxu0
    %v4848 = vadd.f32 %v4799, %v4847
    %v4849 = vpop.f32.mrf.mxu0
    %v4850 = vadd.f32 %v4801, %v4849
    %4851 = vmatmul.bf16.gmra.mxu0 %v4358
    %v4852 = vpop.f32.mrf.mxu0
    %v4853 = vadd.f32 %v4804, %v4852
    %v4854 = vpop.f32.mrf.mxu0
    %v4855 = vadd.f32 %v4806, %v4854
    %4856 = vmatmul.bf16.gmra.mxu0 %v4360
    %v4857 = vpop.f32.mrf.mxu0
    %v4858 = vadd.f32 %v4809, %v4857
    %v4859 = vpop.f32.mrf.mxu0
    %v4860 = vadd.f32 %v4811, %v4859
    %4861 = vdwg.mxu0
    %v4862 = vld [vmem:[%s7] sm:$0x1]
    %v4864 = vperm.slane %v4862, 0
    %v4866 = vadd.f32 %v4823, %v4864
    %v4867 = vadd.f32 %v4825, %v4864
    %v4868 = vadd.f32 %v4828, %v4864
    %v4869 = vadd.f32 %v4830, %v4864
    %v4870 = vadd.f32 %v4833, %v4864
    %v4871 = vadd.f32 %v4835, %v4864
    %v4872 = vadd.f32 %v4838, %v4864
    %v4873 = vadd.f32 %v4840, %v4864
    %v4874 = vadd.f32 %v4843, %v4864
    %v4875 = vadd.f32 %v4845, %v4864
    %v4876 = vadd.f32 %v4848, %v4864
    %v4877 = vadd.f32 %v4850, %v4864
    %v4878 = vadd.f32 %v4853, %v4864
    %v4879 = vadd.f32 %v4855, %v4864
    %v4880 = vadd.f32 %v4858, %v4864
    %v4881 = vadd.f32 %v4860, %v4864
    %4882 = vmax.xlane.f32.xlu0 %v4866
    %v4883 = vpop.xlane.xlu0 %4882
    %4884 = vmax.xlane.f32.xlu0 %v4867
    %v4885 = vpop.xlane.xlu0 %4884
    %4886 = vmax.xlane.f32.xlu0 %v4868
    %v4887 = vpop.xlane.xlu0 %4886
    %4888 = vmax.xlane.f32.xlu0 %v4869
    %v4889 = vpop.xlane.xlu0 %4888
    %4890 = vmax.xlane.f32.xlu0 %v4870
    %v4891 = vpop.xlane.xlu0 %4890
    %4892 = vmax.xlane.f32.xlu0 %v4871
    %v4893 = vpop.xlane.xlu0 %4892
    %4894 = vmax.xlane.f32.xlu0 %v4872
    %v4895 = vpop.xlane.xlu0 %4894
    %4896 = vmax.xlane.f32.xlu0 %v4873
    %v4897 = vpop.xlane.xlu0 %4896
    %4898 = vmax.xlane.f32.xlu0 %v4874
    %v4899 = vpop.xlane.xlu0 %4898
    %4900 = vmax.xlane.f32.xlu0 %v4875
    %v4901 = vpop.xlane.xlu0 %4900
    %4902 = vmax.xlane.f32.xlu0 %v4876
    %v4903 = vpop.xlane.xlu0 %4902
    %4904 = vmax.xlane.f32.xlu0 %v4877
    %v4905 = vpop.xlane.xlu0 %4904
    %4906 = vmax.xlane.f32.xlu0 %v4878
    %v4907 = vpop.xlane.xlu0 %4906
    %4908 = vmax.xlane.f32.xlu0 %v4879
    %v4909 = vpop.xlane.xlu0 %4908
    %4910 = vmax.xlane.f32.xlu0 %v4880
    %v4911 = vpop.xlane.xlu0 %4910
    %4912 = vmax.xlane.f32.xlu0 %v4881
    %v4913 = vpop.xlane.xlu0 %4912
    %v4914 = vsub.f32 %v4866, %v4883
    %v4915 = vsub.f32 %v4867, %v4885
    %v4916 = vsub.f32 %v4868, %v4887
    %v4917 = vsub.f32 %v4869, %v4889
    %v4918 = vsub.f32 %v4870, %v4891
    %v4919 = vsub.f32 %v4871, %v4893
    %v4920 = vsub.f32 %v4872, %v4895
    %v4921 = vsub.f32 %v4873, %v4897
    %v4922 = vsub.f32 %v4874, %v4899
    %v4923 = vsub.f32 %v4875, %v4901
    %v4924 = vsub.f32 %v4876, %v4903
    %v4925 = vsub.f32 %v4877, %v4905
    %v4926 = vsub.f32 %v4878, %v4907
    %v4927 = vsub.f32 %v4879, %v4909
    %v4928 = vsub.f32 %v4880, %v4911
    %v4929 = vsub.f32 %v4881, %v4913
    %v4930 = vmul.f32 %v4914, 1.442695
    %v4931 = vpow.pop %v4930
    %v4932 = vmul.f32 %v4915, 1.442695
    %v4933 = vpow.pop %v4932
    %v4934 = vmul.f32 %v4916, 1.442695
    %v4935 = vpow.pop %v4934
    %v4936 = vmul.f32 %v4917, 1.442695
    %v4937 = vpow.pop %v4936
    %v4938 = vmul.f32 %v4918, 1.442695
    %v4939 = vpow.pop %v4938
    %v4940 = vmul.f32 %v4919, 1.442695
    %v4941 = vpow.pop %v4940
    %v4942 = vmul.f32 %v4920, 1.442695
    %v4943 = vpow.pop %v4942
    %v4944 = vmul.f32 %v4921, 1.442695
    %v4945 = vpow.pop %v4944
    %v4946 = vmul.f32 %v4922, 1.442695
    %v4947 = vpow.pop %v4946
    %v4948 = vmul.f32 %v4923, 1.442695
    %v4949 = vpow.pop %v4948
    %v4950 = vmul.f32 %v4924, 1.442695
    %v4951 = vpow.pop %v4950
    %v4952 = vmul.f32 %v4925, 1.442695
    %v4953 = vpow.pop %v4952
    %v4954 = vmul.f32 %v4926, 1.442695
    %v4955 = vpow.pop %v4954
    %v4956 = vmul.f32 %v4927, 1.442695
    %v4957 = vpow.pop %v4956
    %v4958 = vmul.f32 %v4928, 1.442695
    %v4959 = vpow.pop %v4958
    %v4960 = vmul.f32 %v4929, 1.442695
    %v4961 = vpow.pop %v4960
    %4962 = vadd.xlane.f32.xlu0 %v4931
    %v4963 = vpop.xlane.xlu0 %4962
    %4964 = vadd.xlane.f32.xlu0 %v4933
    %v4965 = vpop.xlane.xlu0 %4964
    %4966 = vadd.xlane.f32.xlu0 %v4935
    %v4967 = vpop.xlane.xlu0 %4966
    %4968 = vadd.xlane.f32.xlu0 %v4937
    %v4969 = vpop.xlane.xlu0 %4968
    %4970 = vadd.xlane.f32.xlu0 %v4939
    %v4971 = vpop.xlane.xlu0 %4970
    %4972 = vadd.xlane.f32.xlu0 %v4941
    %v4973 = vpop.xlane.xlu0 %4972
    %4974 = vadd.xlane.f32.xlu0 %v4943
    %v4975 = vpop.xlane.xlu0 %4974
    %4976 = vadd.xlane.f32.xlu0 %v4945
    %v4977 = vpop.xlane.xlu0 %4976
    %4978 = vadd.xlane.f32.xlu0 %v4947
    %v4979 = vpop.xlane.xlu0 %4978
    %4980 = vadd.xlane.f32.xlu0 %v4949
    %v4981 = vpop.xlane.xlu0 %4980
    %4982 = vadd.xlane.f32.xlu0 %v4951
    %v4983 = vpop.xlane.xlu0 %4982
    %4984 = vadd.xlane.f32.xlu0 %v4953
    %v4985 = vpop.xlane.xlu0 %4984
    %4986 = vadd.xlane.f32.xlu0 %v4955
    %v4987 = vpop.xlane.xlu0 %4986
    %4988 = vadd.xlane.f32.xlu0 %v4957
    %v4989 = vpop.xlane.xlu0 %4988
    %4990 = vadd.xlane.f32.xlu0 %v4959
    %v4991 = vpop.xlane.xlu0 %4990
    %4992 = vadd.xlane.f32.xlu0 %v4961
    %v4993 = vpop.xlane.xlu0 %4992
    %v4994 = vlog2.pop %v4963
    %v4995 = vmul.f32 %v4994, 0.6931472
    %v4996 = vlog2.pop %v4965
    %v4997 = vmul.f32 %v4996, 0.6931472
    %v4998 = vlog2.pop %v4967
    %v4999 = vmul.f32 %v4998, 0.6931472
    %v5000 = vlog2.pop %v4969
    %v5001 = vmul.f32 %v5000, 0.6931472
    %v5002 = vlog2.pop %v4971
    %v5003 = vmul.f32 %v5002, 0.6931472
    %v5004 = vlog2.pop %v4973
    %v5005 = vmul.f32 %v5004, 0.6931472
    %v5006 = vlog2.pop %v4975
    %v5007 = vmul.f32 %v5006, 0.6931472
    %v5008 = vlog2.pop %v4977
    %v5009 = vmul.f32 %v5008, 0.6931472
    %v5010 = vlog2.pop %v4979
    %v5011 = vmul.f32 %v5010, 0.6931472
    %v5012 = vlog2.pop %v4981
    %v5013 = vmul.f32 %v5012, 0.6931472
    %v5014 = vlog2.pop %v4983
    %v5015 = vmul.f32 %v5014, 0.6931472
    %v5016 = vlog2.pop %v4985
    %v5017 = vmul.f32 %v5016, 0.6931472
    %v5018 = vlog2.pop %v4987
    %v5019 = vmul.f32 %v5018, 0.6931472
    %v5020 = vlog2.pop %v4989
    %v5021 = vmul.f32 %v5020, 0.6931472
    %v5022 = vlog2.pop %v4991
    %v5023 = vmul.f32 %v5022, 0.6931472
    %v5024 = vlog2.pop %v4993
    %v5025 = vmul.f32 %v5024, 0.6931472
    %v5026 = vsub.f32 %v4914, %v4995
    %v5027 = vsub.f32 %v4915, %v4997
    %v5028 = vsub.f32 %v4916, %v4999
    %v5029 = vsub.f32 %v4917, %v5001
    %v5030 = vsub.f32 %v4918, %v5003
    %v5031 = vsub.f32 %v4919, %v5005
    %v5032 = vsub.f32 %v4920, %v5007
    %v5033 = vsub.f32 %v4921, %v5009
    %v5034 = vsub.f32 %v4922, %v5011
    %v5035 = vsub.f32 %v4923, %v5013
    %v5036 = vsub.f32 %v4924, %v5015
    %v5037 = vsub.f32 %v4925, %v5017
    %v5038 = vsub.f32 %v4926, %v5019
    %v5039 = vsub.f32 %v4927, %v5021
    %v5040 = vsub.f32 %v4928, %v5023
    %v5041 = vsub.f32 %v4929, %v5025
    %5042 = vst [vmem:[%s9] sm:$0xff] %v5026
    %5043 = vst [vmem:[%s9 + $0x8] sm:$0xff] %v5027
    %5044 = vst [vmem:[%s9 + $0x10] sm:$0xff] %v5028
    %5045 = vst [vmem:[%s9 + $0x18] sm:$0xff] %v5029
    %5046 = vst [vmem:[%s9 + $0x20] sm:$0xff] %v5030
    %5047 = vst [vmem:[%s9 + $0x28] sm:$0xff] %v5031
    %5048 = vst [vmem:[%s9 + $0x30] sm:$0xff] %v5032
    %5049 = vst [vmem:[%s9 + $0x38] sm:$0xff] %v5033
    %5050 = vst [vmem:[%s9 + $0x40] sm:$0xff] %v5034
    %5051 = vst [vmem:[%s9 + $0x48] sm:$0xff] %v5035
    %5052 = vst [vmem:[%s9 + $0x50] sm:$0xff] %v5036
    %5053 = vst [vmem:[%s9 + $0x58] sm:$0xff] %v5037
    %5054 = vst [vmem:[%s9 + $0x60] sm:$0xff] %v5038
    %5055 = vst [vmem:[%s9 + $0x68] sm:$0xff] %v5039
    %5056 = vst [vmem:[%s9 + $0x70] sm:$0xff] %v5040
    %5057 = vst [vmem:[%s9 + $0x78] sm:$0xff] %v5041
    // Predicated region
    $region49: #{multi_head_forward.1} parent=1 // pred_check
      _
    $region50: #{multi_head_forward.1} parent=1 // pred_check_branch
      %5059 = sbr.rel (0) target = $region52
    $region51: #{multi_head_forward.1} parent=1 // pred_region
      _
    $region52: #{multi_head_forward.1} parent=1 // pred_fallthru
      _
    // Predicated region
    $region53: #{multi_head_forward.1} parent=1 // pred_check
      _
    $region54: #{multi_head_forward.1} parent=1 // pred_check_branch
      %5061 = sbr.rel (0) target = $region56
    $region55: #{multi_head_forward.1} parent=1 // pred_region
      _
    $region56: #{multi_head_forward.1} parent=1 // pred_fallthru
      _
    // Predicated region
    $region57: #{multi_head_forward.1} parent=1 // pred_check
      _
    $region58: #{multi_head_forward.1} parent=1 // pred_check_branch
      %5063 = sbr.rel (0) target = $region60
    $region59: #{multi_head_forward.1} parent=1 // pred_region
      _
    $region60: #{multi_head_forward.1} parent=1 // pred_fallthru
      _
    // Predicated region
    $region61: #{multi_head_forward.1} parent=1 // pred_check
      _
    $region62: #{multi_head_forward.1} parent=1 // pred_check_branch
      %5065 = sbr.rel (0) target = $region64
    $region63: #{multi_head_forward.1} parent=1 // pred_region
      _
    $region64: #{multi_head_forward.1} parent=1 // pred_fallthru
      _
    %5066 = vsyncpa [#allocation6], 1
    %5067 = vsyncpa [#allocation8], 1

</llo_original>
